<compile_context>
chip_gen: v6e
topology: v6e:2x2x1
jax: 0.10.0
libtpu: 0.0.40
codegen_flags: <defaults>
</compile_context>

<pallas_src>
import functools

import jax
import jax.numpy as jnp
import numpy as np
from jax.experimental import pallas as pl
from jax.experimental.pallas import tpu as pltpu

LANE = 128


def _round_up(x, m):
    return (x + m - 1) // m * m


# ----------------------------- Pallas kernel ------------------------------ #

def _riemann_agg(x, w_abs):
    """x: (M, C_pad) f32, w_abs: (1, C_pad) f32.  Matches torch RiemannAgg."""
    s = jnp.sum(jnp.square(x) * w_abs, axis=1, keepdims=True)   # (M, 1)
    sqrt_s = jnp.sqrt(s + 0.01)
    inv = pl.reciprocal(sqrt_s + 0.01, approx=True)             # EUP, not VALU
    return x * inv


def gprgnn_kernel(x_ref, w1_ref, b1_ref, w2_ref, b2_ref, wnorm_ref, temp_ref,
                  a_ref, out_ref, y_acc, z_buf, hid_buf, *, block_n):
    # grid = (K, row_tiles, col_tiles); j (reduction over A_hat columns) last.
    k = pl.program_id(0)
    i = pl.program_id(1)
    j = pl.program_id(2)
    n_k = pl.num_programs(0)
    n_i = pl.num_programs(1)
    n_j = pl.num_programs(2)

    w_abs = jnp.abs(wnorm_ref[...])                  # (1, C_pad), cheap

    # ---- one-time init: lin1 -> relu -> lin2 -> RiemannAgg, hidden = g0*z ----
    @pl.when((k == 0) & (i == 0) & (j == 0))
    def _init():
        h = jnp.dot(x_ref[...], w1_ref[...],
                    preferred_element_type=jnp.float32) + b1_ref[...]
        h = jnp.maximum(h, 0.0)
        z0 = jnp.dot(h, w2_ref[...],
                     preferred_element_type=jnp.float32) + b2_ref[...]
        z0 = _riemann_agg(z0, w_abs)
        hid_buf[...] = temp_ref[0] * z0
        z_buf[...] = z0.astype(z_buf.dtype)

    row = pl.multiple_of(i * block_n, block_n)
    col = pl.multiple_of(j * block_n, block_n)
    rows = pl.ds(row, block_n)
    cols = pl.ds(col, block_n)

    # ---- A_hat[i, j] @ z[j] (bf16 x bf16 -> f32 accumulate over j) ----
    partial = jnp.dot(a_ref[...], z_buf[cols, :],
                      preferred_element_type=jnp.float32)

    @pl.when(j == 0)
    def _set():
        y_acc[rows, :] = partial

    @pl.when(j > 0)
    def _acc():
        y_acc[rows, :] += partial

    # ---- end of propagation step k: RiemannAgg, gamma-accumulate, rotate z ----
    @pl.when((i == n_i - 1) & (j == n_j - 1))
    def _finalize_step():
        z_new = _riemann_agg(y_acc[...], w_abs)
        hid_buf[...] += temp_ref[k + 1] * z_new
        z_buf[...] = z_new.astype(z_buf.dtype)

    # ---- write the (lane-dense) output once, at the very last grid step ----
    @pl.when((k == n_k - 1) & (i == n_i - 1) & (j == n_j - 1))
    def _write_out():
        out_ref[...] = hid_buf[...]


def gprgnn_forward(x, w1, b1, w2, b2, a_hat, w_for_norm, temp, *, K,
                   block_n=128):
    assert K >= 1
    N, F = x.shape
    H = w1.shape[1]
    C = w2.shape[1]
    c_pad = _round_up(max(C, LANE), LANE)

    # Zero-pad the class dimension to a full lane width.  Padded columns of z
    # are exactly zero through lin2 / A_hat matmuls / RiemannAgg, so math is
    # unchanged while everything becomes lane-dense.
    w2_p = jnp.pad(w2.astype(jnp.float32), ((0, 0), (0, c_pad - C)))
    b2_p = jnp.pad(b2.astype(jnp.float32), ((0, 0), (0, c_pad - C)))
    wn_p = jnp.pad(w_for_norm.astype(jnp.float32), ((0, 0), (0, c_pad - C)))

    # bf16 adjacency: ~2x MXU throughput and half the HBM/VMEM traffic for the
    # K streamed passes; accumulation stays f32 via preferred_element_type.
    a_bf16 = a_hat.astype(jnp.bfloat16)

    if N % block_n != 0:
        block_n = N                     # fall back to a single tile
    n_blk = N // block_n

    kernel = functools.partial(gprgnn_kernel, block_n=block_n)
    full = lambda k, i, j: (0, 0)       # resident (never re-DMA'd) operands

    grid_spec = pltpu.PrefetchScalarGridSpec(
        num_scalar_prefetch=0,
        grid=(K, n_blk, n_blk),
        in_specs=[
            pl.BlockSpec((N, F), full),                               # x
            pl.BlockSpec((F, H), full),                               # w1
            pl.BlockSpec((1, H), full),                               # b1
            pl.BlockSpec((H, c_pad), full),                           # w2 (pad)
            pl.BlockSpec((1, c_pad), full),                           # b2 (pad)
            pl.BlockSpec((1, c_pad), full),                           # w_for_norm
            pl.BlockSpec(memory_space=pltpu.MemorySpace.SMEM),        # temp
            pl.BlockSpec((block_n, block_n), lambda k, i, j: (i, j)), # A_hat tile
        ],
        out_specs=pl.BlockSpec((N, c_pad), full),
        scratch_shapes=[
            pltpu.VMEM((N, c_pad), jnp.float32),    # y accumulator (A_hat @ z)
            pltpu.VMEM((N, c_pad), jnp.bfloat16),   # z propagation state
            pltpu.VMEM((N, c_pad), jnp.float32),    # hidden (GPR) accumulator
        ],
    )

    out_padded = pl.pallas_call(
        kernel,
        out_shape=jax.ShapeDtypeStruct((N, c_pad), jnp.float32),
        grid_spec=grid_spec,
        compiler_params=pltpu.CompilerParams(
            # k, i, j all carry state through scratch -> must stay sequential.
            dimension_semantics=("arbitrary", "arbitrary", "arbitrary"),
            vmem_limit_bytes=32 * 1024 * 1024,   # explicit (v5e default is 16 MiB)
        ),
    )(x.astype(jnp.float32), w1.astype(jnp.float32), b1.astype(jnp.float32),
      w2_p, b2_p, wn_p, temp.astype(jnp.float32), a_bf16)

    return out_padded[:, :C]


# ----------------------------- plain-JAX glue ------------------------------ #

def gcn_norm_dense(edge_index, num_nodes):
    """Dense equivalent of PyG gcn_norm + add-aggregation propagate."""
    row, col = edge_index[0], edge_index[1]
    loop = jnp.arange(num_nodes, dtype=row.dtype)
    row = jnp.concatenate([row, loop])
    col = jnp.concatenate([col, loop])
    ew = jnp.ones(row.shape[0], dtype=jnp.float32)
    deg = jnp.zeros((num_nodes,), jnp.float32).at[col].add(ew)
    dinv = jnp.where(deg > 0, 1.0 / jnp.sqrt(deg), 0.0)
    norm = dinv[row] * ew * dinv[col]
    # out[i] = sum over edges (j -> i) of norm * x[j]  =>  A_hat[i, j] += norm
    a_hat = jnp.zeros((num_nodes, num_nodes), jnp.float32).at[col, row].add(norm)
    return a_hat


def ppr_temp(K, alpha):
    temp = alpha * (1.0 - alpha) ** np.arange(K + 1)
    temp[-1] = (1.0 - alpha) ** K
    return jnp.asarray(temp, dtype=jnp.float32)


def reference_forward(x, w1, b1, w2, b2, a_hat, w_for_norm, temp, K):
    """Pure f32 reference with the exact module semantics."""
    def riemann(v, w_abs):
        s = jnp.sum(jnp.square(v) * w_abs, axis=1, keepdims=True)
        return v / (jnp.sqrt(s + 0.01) + 0.01)

    h = jnp.maximum(x @ w1 + b1, 0.0)
    z = h @ w2 + b2
    w_abs = jnp.abs(w_for_norm)
    z = riemann(z, w_abs)
    hidden = temp[0] * z
    for k in range(K):
        z = a_hat @ z
        z = riemann(z, w_abs)
        hidden = hidden + temp[k + 1] * z
    return hidden


# --------------------------------- main ------------------------------------ #

if __name__ == "__main__":
    # Small, deterministic configuration (args analogue).  N=256 with 128-wide
    # tiles exercises the (K, 2, 2) grid (row tiling + column reduction).
    N = 256
    NUM_FEATS = 32
    DIM_HIDDEN = 32
    NUM_CLASSES = 8
    K = 4             # num_layers (propagation steps)
    ALPHA = 0.1

    key = jax.random.PRNGKey(0)
    kx, kw1, kb1, kw2, kb2, kwn, ke = jax.random.split(key, 7)

    x = jax.random.normal(kx, (N, NUM_FEATS), dtype=jnp.float32)

    lim1 = 1.0 / np.sqrt(NUM_FEATS)
    w1 = jax.random.uniform(kw1, (NUM_FEATS, DIM_HIDDEN), jnp.float32, -lim1, lim1)
    b1 = jax.random.uniform(kb1, (1, DIM_HIDDEN), jnp.float32, -lim1, lim1)
    lim2 = 1.0 / np.sqrt(DIM_HIDDEN)
    w2 = jax.random.uniform(kw2, (DIM_HIDDEN, NUM_CLASSES), jnp.float32, -lim2, lim2)
    b2 = jax.random.uniform(kb2, (1, NUM_CLASSES), jnp.float32, -lim2, lim2)

    stdv = 1.0 / np.sqrt(NUM_CLASSES)
    w_for_norm = jax.random.uniform(kwn, (1, NUM_CLASSES), jnp.float32, -stdv, stdv)

    temp = ppr_temp(K, ALPHA)

    # deterministic small graph: bidirectional ring + a few extra edges
    src = np.arange(N, dtype=np.int32)
    dst = (src + 1) % N
    extra_src = np.asarray(jax.random.randint(ke, (64,), 0, N), dtype=np.int32)
    extra_dst = (extra_src * 7 + 3) % N
    rows = np.concatenate([src, dst, extra_src, extra_dst])
    cols = np.concatenate([dst, src, extra_dst, extra_src])
    edge_index = jnp.stack([jnp.asarray(rows), jnp.asarray(cols)], axis=0)

    a_hat = gcn_norm_dense(edge_index, N)

    out = gprgnn_forward(x, w1, b1, w2, b2, a_hat, w_for_norm, temp, K=K)
    out = jax.block_until_ready(out)

    ref = reference_forward(x, w1, b1, w2, b2, a_hat, w_for_norm, temp, K)
    ref = jax.block_until_ready(ref)

    # Tolerance reflects intentional bf16 adjacency / propagation inputs
    # (accumulation in f32) and the approximate EUP reciprocal.
    np.testing.assert_allclose(np.asarray(out), np.asarray(ref),
                               rtol=2e-2, atol=2e-2)
    print("KERNEL_OK")
</pallas_src>

<mosaic_0001>
module attributes {stable_mosaic.version = 11 : i64} {
  func.func @gprgnn_kernel(%arg0: i32, %arg1: i32, %arg2: i32, %arg3: memref<256x32xf32, #tpu.memory_space<vmem>>, %arg4: memref<32x32xf32, #tpu.memory_space<vmem>>, %arg5: memref<1x32xf32, #tpu.memory_space<vmem>>, %arg6: memref<32x128xf32, #tpu.memory_space<vmem>>, %arg7: memref<1x128xf32, #tpu.memory_space<vmem>>, %arg8: memref<1x128xf32, #tpu.memory_space<vmem>>, %arg9: memref<5xf32, #tpu.memory_space<smem>>, %arg10: memref<128x128xbf16, #tpu.memory_space<vmem>>, %arg11: memref<256x128xf32, #tpu.memory_space<vmem>>, %arg12: memref<256x128xf32, #tpu.memory_space<vmem>>, %arg13: memref<256x128xbf16, #tpu.memory_space<vmem>>, %arg14: memref<256x128xf32, #tpu.memory_space<vmem>>) attributes {dimension_semantics = [#tpu.dimension_semantics<arbitrary>, #tpu.dimension_semantics<arbitrary>, #tpu.dimension_semantics<arbitrary>], iteration_bounds = array<i64: 4, 2, 2>, scalar_prefetch = 0 : i64, scratch_operands = 3 : i64, tpu.core_type = #tpu.core_type<tc>, window_params = [{pipeline_mode = #tpu.pipeline_mode<synchronous>, transform_indices = @transform_0, window_bounds = array<i64: 256, 32>}, {pipeline_mode = #tpu.pipeline_mode<synchronous>, transform_indices = @transform_1, window_bounds = array<i64: 32, 32>}, {pipeline_mode = #tpu.pipeline_mode<synchronous>, transform_indices = @transform_2, window_bounds = array<i64: 1, 32>}, {pipeline_mode = #tpu.pipeline_mode<synchronous>, transform_indices = @transform_3, window_bounds = array<i64: 32, 128>}, {pipeline_mode = #tpu.pipeline_mode<synchronous>, transform_indices = @transform_4, window_bounds = array<i64: 1, 128>}, {pipeline_mode = #tpu.pipeline_mode<synchronous>, transform_indices = @transform_5, window_bounds = array<i64: 1, 128>}, {transform_indices = @transform_6, window_bounds = array<i64: 5>}, {transform_indices = @transform_7, window_bounds = array<i64: 128, 128>}, {pipeline_mode = #tpu.pipeline_mode<synchronous>, transform_indices = @transform_8, window_bounds = array<i64: 256, 128>}]} {
    %c0 = arith.constant 0 : index
    %c0_0 = arith.constant 0 : index
    %0 = vector.load %arg8[%c0, %c0_0] : memref<1x128xf32, #tpu.memory_space<vmem>>, vector<1x128xf32>
    %1 = math.absf %0 : vector<1x128xf32>
    %c0_i32 = arith.constant 0 : i32
    %2 = arith.cmpi eq, %arg0, %c0_i32 : i32
    %c0_i32_1 = arith.constant 0 : i32
    %3 = arith.cmpi eq, %arg1, %c0_i32_1 : i32
    %4 = arith.andi %2, %3 : i1
    %c0_i32_2 = arith.constant 0 : i32
    %5 = arith.cmpi eq, %arg2, %c0_i32_2 : i32
    %6 = arith.andi %4, %5 : i1
    %7 = arith.extui %6 : i1 to i32
    %c0_i32_3 = arith.constant 0 : i32
    %8 = arith.cmpi ne, %7, %c0_i32_3 : i32
    scf.if %8 {
      %c0_17 = arith.constant 0 : index
      %c0_18 = arith.constant 0 : index
      %35 = vector.load %arg3[%c0_17, %c0_18] : memref<256x32xf32, #tpu.memory_space<vmem>>, vector<256x32xf32>
      %c0_19 = arith.constant 0 : index
      %c0_20 = arith.constant 0 : index
      %36 = vector.load %arg4[%c0_19, %c0_20] : memref<32x32xf32, #tpu.memory_space<vmem>>, vector<32x32xf32>
      %cst_21 = arith.constant dense<0.000000e+00> : vector<256x32xf32>
      %37 = tpu.matmul %35, %36, %cst_21 {dimension_numbers = #tpu.dot_dimension_numbers<[1], [0], [0], [1], [0, 0, 1, 1], [], []>} : vector<256x32xf32>, vector<32x32xf32>, vector<256x32xf32> -> vector<256x32xf32>
      %c0_22 = arith.constant 0 : index
      %c0_23 = arith.constant 0 : index
      %38 = vector.load %arg5[%c0_22, %c0_23] : memref<1x32xf32, #tpu.memory_space<vmem>>, vector<1x32xf32>
      %39 = vector.broadcast %38 : vector<1x32xf32> to vector<256x32xf32>
      %40 = arith.addf %37, %39 : vector<256x32xf32>
      %cst_24 = arith.constant 0.000000e+00 : f32
      %41 = vector.broadcast %cst_24 : f32 to vector<256x32xf32>
      %42 = arith.maximumf %40, %41 : vector<256x32xf32>
      %c0_25 = arith.constant 0 : index
      %c0_26 = arith.constant 0 : index
      %43 = vector.load %arg6[%c0_25, %c0_26] : memref<32x128xf32, #tpu.memory_space<vmem>>, vector<32x128xf32>
      %cst_27 = arith.constant dense<0.000000e+00> : vector<256x128xf32>
      %44 = tpu.matmul %42, %43, %cst_27 {dimension_numbers = #tpu.dot_dimension_numbers<[1], [0], [0], [1], [0, 0, 1, 1], [], []>} : vector<256x32xf32>, vector<32x128xf32>, vector<256x128xf32> -> vector<256x128xf32>
      %c0_28 = arith.constant 0 : index
      %c0_29 = arith.constant 0 : index
      %45 = vector.load %arg7[%c0_28, %c0_29] : memref<1x128xf32, #tpu.memory_space<vmem>>, vector<1x128xf32>
      %46 = vector.broadcast %45 : vector<1x128xf32> to vector<256x128xf32>
      %47 = arith.addf %44, %46 : vector<256x128xf32>
      %48 = arith.mulf %47, %47 : vector<256x128xf32>
      %49 = vector.broadcast %1 : vector<1x128xf32> to vector<256x128xf32>
      %50 = arith.mulf %48, %49 : vector<256x128xf32>
      %cst_30 = arith.constant dense<0.000000e+00> : vector<256xf32>
      %51 = vector.multi_reduction <add>, %50, %cst_30 [1] : vector<256x128xf32> to vector<256xf32>
      %52 = vector.shape_cast %51 : vector<256xf32> to vector<256x1xf32>
      %cst_31 = arith.constant 0.00999999977 : f32
      %53 = vector.broadcast %cst_31 : f32 to vector<256x1xf32>
      %54 = arith.addf %52, %53 : vector<256x1xf32>
      %55 = math.sqrt %54 : vector<256x1xf32>
      %cst_32 = arith.constant 0.00999999977 : f32
      %56 = vector.broadcast %cst_32 : f32 to vector<256x1xf32>
      %57 = arith.addf %55, %56 : vector<256x1xf32>
      %58 = tpu.reciprocal %57 {approx = true} : vector<256x1xf32> -> vector<256x1xf32>
      %59 = vector.broadcast %58 : vector<256x1xf32> to vector<256x128xf32>
      %60 = arith.mulf %47, %59 : vector<256x128xf32>
      %c0_33 = arith.constant 0 : index
      %61 = memref.load %arg9[%c0_33] : memref<5xf32, #tpu.memory_space<smem>>
      %62 = vector.broadcast %61 : f32 to vector<256x128xf32>
      %63 = arith.mulf %62, %60 : vector<256x128xf32>
      %c0_34 = arith.constant 0 : index
      %c0_35 = arith.constant 0 : index
      %64 = vector.load %arg14[%c0_34, %c0_35] : memref<256x128xf32, #tpu.memory_space<vmem>>, vector<256x128xf32>
      tpu.vector_store %arg14[%c0_34, %c0_35], %63 {strides = array<i32>} : memref<256x128xf32, #tpu.memory_space<vmem>>, vector<256x128xf32>,
      %65 = arith.truncf %60 : vector<256x128xf32> to vector<256x128xbf16>
      %c0_36 = arith.constant 0 : index
      %c0_37 = arith.constant 0 : index
      %66 = vector.load %arg13[%c0_36, %c0_37] : memref<256x128xbf16, #tpu.memory_space<vmem>>, vector<256x128xbf16>
      tpu.vector_store %arg13[%c0_36, %c0_37], %65 {strides = array<i32>} : memref<256x128xbf16, #tpu.memory_space<vmem>>, vector<256x128xbf16>,
    } else {
    }
    %c128_i32 = arith.constant 128 : i32
    %9 = arith.muli %arg1, %c128_i32 : i32
    %10 = tpu.assume_multiple %9, 128 : i32
    %c128_i32_4 = arith.constant 128 : i32
    %11 = arith.muli %arg2, %c128_i32_4 : i32
    %12 = tpu.assume_multiple %11, 128 : i32
    %c0_5 = arith.constant 0 : index
    %c0_6 = arith.constant 0 : index
    %13 = vector.load %arg10[%c0_5, %c0_6] : memref<128x128xbf16, #tpu.memory_space<vmem>>, vector<128x128xbf16>
    %14 = arith.index_cast %12 : i32 to index
    %c0_7 = arith.constant 0 : index
    %15 = vector.load %arg13[%14, %c0_7] : memref<256x128xbf16, #tpu.memory_space<vmem>>, vector<128x128xbf16>
    %cst = arith.constant dense<0.000000e+00> : vector<128x128xf32>
    %16 = tpu.matmul %13, %15, %cst {dimension_numbers = #tpu.dot_dimension_numbers<[1], [0], [0], [1], [0, 0, 1, 1], [], []>} : vector<128x128xbf16>, vector<128x128xbf16>, vector<128x128xf32> -> vector<128x128xf32>
    %c0_i32_8 = arith.constant 0 : i32
    %17 = arith.cmpi eq, %arg2, %c0_i32_8 : i32
    %18 = arith.extui %17 : i1 to i32
    %c0_i32_9 = arith.constant 0 : i32
    %19 = arith.cmpi ne, %18, %c0_i32_9 : i32
    scf.if %19 {
      %35 = arith.index_cast %10 : i32 to index
      %c0_17 = arith.constant 0 : index
      %36 = vector.load %arg12[%35, %c0_17] : memref<256x128xf32, #tpu.memory_space<vmem>>, vector<128x128xf32>
      tpu.vector_store %arg12[%35, %c0_17], %16 {strides = array<i32>} : memref<256x128xf32, #tpu.memory_space<vmem>>, vector<128x128xf32>,
    } else {
    }
    %c0_i32_10 = arith.constant 0 : i32
    %20 = arith.cmpi sgt, %arg2, %c0_i32_10 : i32
    %21 = arith.extui %20 : i1 to i32
    %c0_i32_11 = arith.constant 0 : i32
    %22 = arith.cmpi ne, %21, %c0_i32_11 : i32
    scf.if %22 {
      %35 = arith.index_cast %10 : i32 to index
      %c0_17 = arith.constant 0 : index
      %36 = vector.load %arg12[%35, %c0_17] : memref<256x128xf32, #tpu.memory_space<vmem>>, vector<128x128xf32>
      %37 = arith.addf %36, %16 : vector<128x128xf32>
      %38 = arith.index_cast %10 : i32 to index
      %c0_18 = arith.constant 0 : index
      %39 = vector.load %arg12[%38, %c0_18] : memref<256x128xf32, #tpu.memory_space<vmem>>, vector<128x128xf32>
      tpu.vector_store %arg12[%38, %c0_18], %37 {strides = array<i32>} : memref<256x128xf32, #tpu.memory_space<vmem>>, vector<128x128xf32>,
    } else {
    }
    %c1_i32 = arith.constant 1 : i32
    %23 = arith.cmpi eq, %arg1, %c1_i32 : i32
    %c1_i32_12 = arith.constant 1 : i32
    %24 = arith.cmpi eq, %arg2, %c1_i32_12 : i32
    %25 = arith.andi %23, %24 : i1
    %26 = arith.extui %25 : i1 to i32
    %c0_i32_13 = arith.constant 0 : i32
    %27 = arith.cmpi ne, %26, %c0_i32_13 : i32
    scf.if %27 {
      %c0_17 = arith.constant 0 : index
      %c0_18 = arith.constant 0 : index
      %35 = vector.load %arg12[%c0_17, %c0_18] : memref<256x128xf32, #tpu.memory_space<vmem>>, vector<256x128xf32>
      %36 = arith.mulf %35, %35 : vector<256x128xf32>
      %37 = vector.broadcast %1 : vector<1x128xf32> to vector<256x128xf32>
      %38 = arith.mulf %36, %37 : vector<256x128xf32>
      %cst_19 = arith.constant dense<0.000000e+00> : vector<256xf32>
      %39 = vector.multi_reduction <add>, %38, %cst_19 [1] : vector<256x128xf32> to vector<256xf32>
      %40 = vector.shape_cast %39 : vector<256xf32> to vector<256x1xf32>
      %cst_20 = arith.constant 0.00999999977 : f32
      %41 = vector.broadcast %cst_20 : f32 to vector<256x1xf32>
      %42 = arith.addf %40, %41 : vector<256x1xf32>
      %43 = math.sqrt %42 : vector<256x1xf32>
      %cst_21 = arith.constant 0.00999999977 : f32
      %44 = vector.broadcast %cst_21 : f32 to vector<256x1xf32>
      %45 = arith.addf %43, %44 : vector<256x1xf32>
      %46 = tpu.reciprocal %45 {approx = true} : vector<256x1xf32> -> vector<256x1xf32>
      %47 = vector.broadcast %46 : vector<256x1xf32> to vector<256x128xf32>
      %48 = arith.mulf %35, %47 : vector<256x128xf32>
      %c0_22 = arith.constant 0 : index
      %c0_23 = arith.constant 0 : index
      %49 = vector.load %arg14[%c0_22, %c0_23] : memref<256x128xf32, #tpu.memory_space<vmem>>, vector<256x128xf32>
      %c1_i32_24 = arith.constant 1 : i32
      %50 = arith.addi %arg0, %c1_i32_24 : i32
      %51 = arith.index_cast %50 : i32 to index
      %52 = memref.load %arg9[%51] : memref<5xf32, #tpu.memory_space<smem>>
      %53 = vector.broadcast %52 : f32 to vector<256x128xf32>
      %54 = arith.mulf %53, %48 : vector<256x128xf32>
      %55 = arith.addf %49, %54 : vector<256x128xf32>
      %c0_25 = arith.constant 0 : index
      %c0_26 = arith.constant 0 : index
      %56 = vector.load %arg14[%c0_25, %c0_26] : memref<256x128xf32, #tpu.memory_space<vmem>>, vector<256x128xf32>
      tpu.vector_store %arg14[%c0_25, %c0_26], %55 {strides = array<i32>} : memref<256x128xf32, #tpu.memory_space<vmem>>, vector<256x128xf32>,
      %57 = arith.truncf %48 : vector<256x128xf32> to vector<256x128xbf16>
      %c0_27 = arith.constant 0 : index
      %c0_28 = arith.constant 0 : index
      %58 = vector.load %arg13[%c0_27, %c0_28] : memref<256x128xbf16, #tpu.memory_space<vmem>>, vector<256x128xbf16>
      tpu.vector_store %arg13[%c0_27, %c0_28], %57 {strides = array<i32>} : memref<256x128xbf16, #tpu.memory_space<vmem>>, vector<256x128xbf16>,
    } else {
    }
    %c3_i32 = arith.constant 3 : i32
    %28 = arith.cmpi eq, %arg0, %c3_i32 : i32
    %c1_i32_14 = arith.constant 1 : i32
    %29 = arith.cmpi eq, %arg1, %c1_i32_14 : i32
    %30 = arith.andi %28, %29 : i1
    %c1_i32_15 = arith.constant 1 : i32
    %31 = arith.cmpi eq, %arg2, %c1_i32_15 : i32
    %32 = arith.andi %30, %31 : i1
    %33 = arith.extui %32 : i1 to i32
    %c0_i32_16 = arith.constant 0 : i32
    %34 = arith.cmpi ne, %33, %c0_i32_16 : i32
    scf.if %34 {
      %c0_17 = arith.constant 0 : index
      %c0_18 = arith.constant 0 : index
      %35 = vector.load %arg14[%c0_17, %c0_18] : memref<256x128xf32, #tpu.memory_space<vmem>>, vector<256x128xf32>
      %c0_19 = arith.constant 0 : index
      %c0_20 = arith.constant 0 : index
      %36 = vector.load %arg11[%c0_19, %c0_20] : memref<256x128xf32, #tpu.memory_space<vmem>>, vector<256x128xf32>
      tpu.vector_store %arg11[%c0_19, %c0_20], %35 {strides = array<i32>} : memref<256x128xf32, #tpu.memory_space<vmem>>, vector<256x128xf32>,
    } else {
    }
    return
  }
  func.func @transform_0(%arg0: i32, %arg1: i32, %arg2: i32) -> (i32, i32) {
    %c0_i32 = arith.constant 0 : i32
    %c0_i32_0 = arith.constant 0 : i32
    %c0_i32_1 = arith.constant 0 : i32
    return %c0_i32, %c0_i32_0 : i32, i32
  }
  func.func @transform_1(%arg0: i32, %arg1: i32, %arg2: i32) -> (i32, i32) {
    %c0_i32 = arith.constant 0 : i32
    %c0_i32_0 = arith.constant 0 : i32
    %c0_i32_1 = arith.constant 0 : i32
    return %c0_i32, %c0_i32_0 : i32, i32
  }
  func.func @transform_2(%arg0: i32, %arg1: i32, %arg2: i32) -> (i32, i32) {
    %c0_i32 = arith.constant 0 : i32
    %c0_i32_0 = arith.constant 0 : i32
    %c0_i32_1 = arith.constant 0 : i32
    return %c0_i32, %c0_i32_0 : i32, i32
  }
  func.func @transform_3(%arg0: i32, %arg1: i32, %arg2: i32) -> (i32, i32) {
    %c0_i32 = arith.constant 0 : i32
    %c0_i32_0 = arith.constant 0 : i32
    %c0_i32_1 = arith.constant 0 : i32
    return %c0_i32, %c0_i32_0 : i32, i32
  }
  func.func @transform_4(%arg0: i32, %arg1: i32, %arg2: i32) -> (i32, i32) {
    %c0_i32 = arith.constant 0 : i32
    %c0_i32_0 = arith.constant 0 : i32
    %c0_i32_1 = arith.constant 0 : i32
    return %c0_i32, %c0_i32_0 : i32, i32
  }
  func.func @transform_5(%arg0: i32, %arg1: i32, %arg2: i32) -> (i32, i32) {
    %c0_i32 = arith.constant 0 : i32
    %c0_i32_0 = arith.constant 0 : i32
    %c0_i32_1 = arith.constant 0 : i32
    return %c0_i32, %c0_i32_0 : i32, i32
  }
  func.func @transform_6(%arg0: i32, %arg1: i32, %arg2: i32) -> i32 {
    %c0_i32 = arith.constant 0 : i32
    %c0_i32_0 = arith.constant 0 : i32
    return %c0_i32 : i32
  }
  func.func @transform_7(%arg0: i32, %arg1: i32, %arg2: i32) -> (i32, i32) {
    %c0_i32 = arith.constant 0 : i32
    return %arg1, %arg2 : i32, i32
  }
  func.func @transform_8(%arg0: i32, %arg1: i32, %arg2: i32) -> (i32, i32) {
    %c0_i32 = arith.constant 0 : i32
    %c0_i32_0 = arith.constant 0 : i32
    %c0_i32_1 = arith.constant 0 : i32
    return %c0_i32, %c0_i32_0 : i32, i32
  }
}

</mosaic_0001>

<llo_original>
// kernel: tpu_custom_call.1
$region0: #{tpu_custom_call.1}
  #allocation0 [shape = 'u32[]', space=smem, size = 0x4, offset = 0x4, fixed_abs, tag = 'smem constant byte address 0x4 - core index']
  #allocation1 [shape = 'u32[144,128]{1,0:T(1,128)}', space=vmem, size = 0x12000, scoped, tag = 'internal scratch']
  #allocation2 [shape = 'f32[256,128]{1,0:T(8,128)}', space=vmem, size = 0x20000, scoped, tag = 'scratch operand']
  #allocation3 [shape = 'bf16[256,128]{1,0:T(8,128)(2,1)}', space=vmem, size = 0x10000, scoped, tag = 'scratch operand']
  #allocation4 [shape = 'f32[256,128]{1,0:T(8,128)}', space=vmem, size = 0x20000, scoped, tag = 'scratch operand']
  %s0 = inlined_call_operand.vmem [shape: f32[256,32], index: 0, kind: input, shape index: {}]
  %s1 = inlined_call_operand.vmem [shape: f32[32,32], index: 1, kind: input, shape index: {}]
  %s2 = inlined_call_operand.vmem [shape: f32[1,32], index: 2, kind: input, shape index: {}]
  %s3 = inlined_call_operand.vmem [shape: f32[32,128], index: 3, kind: input, shape index: {}]
  %s4 = inlined_call_operand.vmem [shape: f32[1,128], index: 4, kind: input, shape index: {}]
  %s5 = inlined_call_operand.vmem [shape: f32[1,128], index: 5, kind: input, shape index: {}]
  %s6 = inlined_call_operand.vmem [shape: f32[5], index: 6, kind: input, shape index: {}]
  %s7 = inlined_call_operand.vmem [shape: bf16[256,256], index: 7, kind: input, shape index: {}]
  %s8 = inlined_call_operand.hbm [shape: f32[256,128], index: 8, kind: output, shape index: {}]
  %s9 = sld [smem:[#allocation0]]
  $region130: #{tpu_custom_call.1} parent=0
    _
  %s11 = ssub.s32 1, %s9
  %s12 = scalar_select 0, %s11, %s9
  $region1: #{tpu_custom_call.1} parent=0
    #allocation5 [shape = 'u8[512]{0}', space=smem, size = 0x200, scoped, tag = 'input window, operand 6, single buffered']
    #allocation6 [shape = 's32[2]{0}', space=sflag, size = 0x8, scoped, tag = 'scoped memory for tpu_custom_call.1']
    #allocation7 [shape = 's32[2]{0}', space=sflag, size = 0x8, scoped, tag = 'scoped memory for tpu_custom_call.1']
    #allocation8 [shape = 'u8[65536]{0}', space=vmem, size = 0x10000, scoped, tag = 'input window, operand 7']
    #allocation9 [shape = 'u8[131072]{0}', space=vmem, size = 0x20000, scoped, tag = 'output window, operand 0, single buffered']
    %13 = vsyncpa [#allocation7], 0
    %14 = vsyncpa [#allocation6], 0
    loop: start=0, step=1, limit=18
    $region2: #{tpu_custom_call.1} parent=1 // loop_pre_header
      _
    $region3: #{tpu_custom_call.1} parent=1 // loop_header
      %s16 = sphi 0, %s20
      %p17 = scmp.ge.s32.totalorder %s16, 18
      %s23 = sphi 0, %s42
      %s24 = sphi 0, %s38
      %s25 = sphi 0, %s34
      %s26 = sphi 0, %s23
      %s27 = sphi 0, %s24
      %s28 = sphi 0, %s25
      %s29 = sphi 0, %s26
      %s30 = sphi 0, %s27
      %s31 = sphi 0, %s28
      %s43 = sphi 0, %s43
      %s45 = sphi 0, %s43
      %s46 = sphi 0, %s45
      %s60 = sphi 0, %s46
      %s64 = sphi 0, %s64
      %s66 = sphi 0, %s64
      %s67 = sphi 0, %s66
      %s81 = sphi 0, %s67
      %s85 = sphi 0, %s85
      %s87 = sphi 0, %s85
      %s88 = sphi 0, %s87
      %s102 = sphi 0, %s88
      %s106 = sphi 0, %s106
      %s108 = sphi 0, %s106
      %s109 = sphi 0, %s108
      %s123 = sphi 0, %s109
      %s127 = sphi 0, %s127
      %s129 = sphi 0, %s127
      %s130 = sphi 0, %s129
      %s144 = sphi 0, %s130
      %s148 = sphi 0, %s148
      %s150 = sphi 0, %s148
      %s151 = sphi 0, %s150
      %s165 = sphi 0, %s151
      %s169 = sphi 0, %s169
      %s171 = sphi 0, %s169
      %s172 = sphi 0, %s171
      %s186 = sphi 0, %s172
      %s194 = sphi 0, %s196
      %s197 = sphi 0, %s194
      %s198 = sphi 0, %s197
      %s214 = sphi 0, %s198
      %s218 = sphi 0, %s218
      %s220 = sphi 0, %s218
      %s221 = sphi 0, %s220
      %s235 = sphi 0, %s221
    $region4: #{tpu_custom_call.1} parent=1 // loop_header_branch
      %19 = sbr.rel (%p17) target = $region8
    $region5: #{tpu_custom_call.1} parent=1 // loop_body
      %s21 = ssub.s32 %s16, 1
      %s22 = ssub.s32 %s16, 2
      %s32 = sadd.s32 1, %s25
      %p33 = scmp.ge.s32.totalorder %s32, 2
      %s34 = scalar_select %p33, 0, %s32
      %s35 = sadd.s32 1, %s24
      %s36 = scalar_select %p33, %s35, %s24
      %p37 = scmp.ge.s32.totalorder %s36, 2
      %s38 = scalar_select %p37, 0, %s36
      %s39 = sadd.s32 1, %s23
      %s40 = scalar_select %p37, %s39, %s23
      %p41 = scmp.ge.s32.totalorder %s40, 4
      %s42 = scalar_select %p41, 0, %s40
      %s44 = sadd.s32 %s43, 1
      %p47 = scmp.eq.s32.totalorder %s16, 15
      %p48 = scmp.ne.s32.totalorder %s43, %s45
      %p49 = scmp.eq.s32.totalorder %s16, 0
      %p50 = por %p48, %p49
      %p51 = scmp.ne.s32.totalorder %s43, %s45
      %p52 = scmp.eq.s32.totalorder %s21, 15
      %p53 = por %p51, %p52
      %p54 = scmp.ne.s32.totalorder %s45, %s46
      %p55 = scmp.eq.s32.totalorder %s21, 0
      %p56 = por %p54, %p55
      %p57 = scmp.ne.s32.totalorder %s45, %s46
      %p58 = scmp.eq.s32.totalorder %s22, 15
      %p59 = por %p57, %p58
      %p61 = scmp.ne.s32.totalorder %s46, %s60
      %p62 = scmp.eq.s32.totalorder %s22, 0
      %p63 = por %p61, %p62
      %s65 = sadd.s32 %s64, 1
      %p68 = scmp.eq.s32.totalorder %s16, 15
      %p69 = scmp.ne.s32.totalorder %s64, %s66
      %p70 = scmp.eq.s32.totalorder %s16, 0
      %p71 = por %p69, %p70
      %p72 = scmp.ne.s32.totalorder %s64, %s66
      %p73 = scmp.eq.s32.totalorder %s21, 15
      %p74 = por %p72, %p73
      %p75 = scmp.ne.s32.totalorder %s66, %s67
      %p76 = scmp.eq.s32.totalorder %s21, 0
      %p77 = por %p75, %p76
      %p78 = scmp.ne.s32.totalorder %s66, %s67
      %p79 = scmp.eq.s32.totalorder %s22, 15
      %p80 = por %p78, %p79
      %p82 = scmp.ne.s32.totalorder %s67, %s81
      %p83 = scmp.eq.s32.totalorder %s22, 0
      %p84 = por %p82, %p83
      %s86 = sadd.s32 %s85, 1
      %p89 = scmp.eq.s32.totalorder %s16, 15
      %p90 = scmp.ne.s32.totalorder %s85, %s87
      %p91 = scmp.eq.s32.totalorder %s16, 0
      %p92 = por %p90, %p91
      %p93 = scmp.ne.s32.totalorder %s85, %s87
      %p94 = scmp.eq.s32.totalorder %s21, 15
      %p95 = por %p93, %p94
      %p96 = scmp.ne.s32.totalorder %s87, %s88
      %p97 = scmp.eq.s32.totalorder %s21, 0
      %p98 = por %p96, %p97
      %p99 = scmp.ne.s32.totalorder %s87, %s88
      %p100 = scmp.eq.s32.totalorder %s22, 15
      %p101 = por %p99, %p100
      %p103 = scmp.ne.s32.totalorder %s88, %s102
      %p104 = scmp.eq.s32.totalorder %s22, 0
      %p105 = por %p103, %p104
      %s107 = sadd.s32 %s106, 1
      %p110 = scmp.eq.s32.totalorder %s16, 15
      %p111 = scmp.ne.s32.totalorder %s106, %s108
      %p112 = scmp.eq.s32.totalorder %s16, 0
      %p113 = por %p111, %p112
      %p114 = scmp.ne.s32.totalorder %s106, %s108
      %p115 = scmp.eq.s32.totalorder %s21, 15
      %p116 = por %p114, %p115
      %p117 = scmp.ne.s32.totalorder %s108, %s109
      %p118 = scmp.eq.s32.totalorder %s21, 0
      %p119 = por %p117, %p118
      %p120 = scmp.ne.s32.totalorder %s108, %s109
      %p121 = scmp.eq.s32.totalorder %s22, 15
      %p122 = por %p120, %p121
      %p124 = scmp.ne.s32.totalorder %s109, %s123
      %p125 = scmp.eq.s32.totalorder %s22, 0
      %p126 = por %p124, %p125
      %s128 = sadd.s32 %s127, 1
      %p131 = scmp.eq.s32.totalorder %s16, 15
      %p132 = scmp.ne.s32.totalorder %s127, %s129
      %p133 = scmp.eq.s32.totalorder %s16, 0
      %p134 = por %p132, %p133
      %p135 = scmp.ne.s32.totalorder %s127, %s129
      %p136 = scmp.eq.s32.totalorder %s21, 15
      %p137 = por %p135, %p136
      %p138 = scmp.ne.s32.totalorder %s129, %s130
      %p139 = scmp.eq.s32.totalorder %s21, 0
      %p140 = por %p138, %p139
      %p141 = scmp.ne.s32.totalorder %s129, %s130
      %p142 = scmp.eq.s32.totalorder %s22, 15
      %p143 = por %p141, %p142
      %p145 = scmp.ne.s32.totalorder %s130, %s144
      %p146 = scmp.eq.s32.totalorder %s22, 0
      %p147 = por %p145, %p146
      %s149 = sadd.s32 %s148, 1
      %p152 = scmp.eq.s32.totalorder %s16, 15
      %p153 = scmp.ne.s32.totalorder %s148, %s150
      %p154 = scmp.eq.s32.totalorder %s16, 0
      %p155 = por %p153, %p154
      %p156 = scmp.ne.s32.totalorder %s148, %s150
      %p157 = scmp.eq.s32.totalorder %s21, 15
      %p158 = por %p156, %p157
      %p159 = scmp.ne.s32.totalorder %s150, %s151
      %p160 = scmp.eq.s32.totalorder %s21, 0
      %p161 = por %p159, %p160
      %p162 = scmp.ne.s32.totalorder %s150, %s151
      %p163 = scmp.eq.s32.totalorder %s22, 15
      %p164 = por %p162, %p163
      %p166 = scmp.ne.s32.totalorder %s151, %s165
      %p167 = scmp.eq.s32.totalorder %s22, 0
      %p168 = por %p166, %p167
      %s170 = sadd.s32 %s169, 1
      %p173 = scmp.eq.s32.totalorder %s16, 15
      %p174 = scmp.ne.s32.totalorder %s169, %s171
      %p175 = scmp.eq.s32.totalorder %s16, 0
      %p176 = por %p174, %p175
      %p177 = scmp.ne.s32.totalorder %s169, %s171
      %p178 = scmp.eq.s32.totalorder %s21, 15
      %p179 = por %p177, %p178
      %p180 = scmp.ne.s32.totalorder %s171, %s172
      %p181 = scmp.eq.s32.totalorder %s21, 0
      %p182 = por %p180, %p181
      %p183 = scmp.ne.s32.totalorder %s171, %s172
      %p184 = scmp.eq.s32.totalorder %s22, 15
      %p185 = por %p183, %p184
      %p187 = scmp.ne.s32.totalorder %s172, %s186
      %p188 = scmp.eq.s32.totalorder %s22, 0
      %p189 = por %p187, %p188
      %s190 = ssub.s32 %s24, %s38
      %s191 = ssub.s32 %s25, %s34
      %s192 = sor.u32 %s190, %s191
      %p193 = scmp.eq.s32.totalorder %s192, 0
      %s195 = sadd.s32 %s194, 1
      %s196 = scalar_select %p193, %s194, %s195
      %p199 = pneg %p193
      %p200 = scmp.eq.s32.totalorder %s16, 15
      %p201 = por %p199, %p200
      %p202 = scmp.ne.s32.totalorder %s194, %s197
      %p203 = scmp.eq.s32.totalorder %s16, 0
      %p204 = por %p202, %p203
      %p205 = scmp.ne.s32.totalorder %s194, %s197
      %p206 = scmp.eq.s32.totalorder %s21, 15
      %p207 = por %p205, %p206
      %p208 = scmp.ne.s32.totalorder %s197, %s198
      %p209 = scmp.eq.s32.totalorder %s21, 0
      %p210 = por %p208, %p209
      %p211 = scmp.ne.s32.totalorder %s197, %s198
      %p212 = scmp.eq.s32.totalorder %s22, 15
      %p213 = por %p211, %p212
      %p215 = scmp.ne.s32.totalorder %s198, %s214
      %p216 = scmp.eq.s32.totalorder %s22, 0
      %p217 = por %p215, %p216
      %s219 = sadd.s32 %s218, 1
      %p222 = scmp.eq.s32.totalorder %s16, 15
      %p223 = scmp.ne.s32.totalorder %s218, %s220
      %p224 = scmp.eq.s32.totalorder %s16, 0
      %p225 = por %p223, %p224
      %p226 = scmp.ne.s32.totalorder %s218, %s220
      %p227 = scmp.eq.s32.totalorder %s21, 15
      %p228 = por %p226, %p227
      %p229 = scmp.ne.s32.totalorder %s220, %s221
      %p230 = scmp.eq.s32.totalorder %s21, 0
      %p231 = por %p229, %p230
      %p232 = scmp.ne.s32.totalorder %s220, %s221
      %p233 = scmp.eq.s32.totalorder %s22, 15
      %p234 = por %p232, %p233
      %p236 = scmp.ne.s32.totalorder %s221, %s235
      %p237 = scmp.eq.s32.totalorder %s22, 0
      %p238 = por %p236, %p237
      %p239 = scmp.le.s32.totalorder 1, %s16
      %p240 = scmp.lt.s32.totalorder %s16, 17
      %p241 = pnand %p239, %p240
      %p242 = pneg %p241
      // Predicated region
      $region9: #{tpu_custom_call.1} parent=5 // pred_check
        _
      $region10: #{tpu_custom_call.1} parent=5 // pred_check_branch
        %244 = sbr.rel (%p241) target = $region12
      $region11: #{tpu_custom_call.1} parent=5 // pred_region
        %s245 = ssub.s32 %s16, 1
        // Predicated region
        $region13: #{tpu_custom_call.1} parent=11 // pred_check
          %p246 = pneg %p56
        $region14: #{tpu_custom_call.1} parent=11 // pred_check_branch
          %248 = sbr.rel (%p246) target = $region16
        $region15: #{tpu_custom_call.1} parent=11 // pred_region
          _
        $region16: #{tpu_custom_call.1} parent=11 // pred_fallthru
          _
        // Predicated region
        $region17: #{tpu_custom_call.1} parent=11 // pred_check
          %p249 = pneg %p77
        $region18: #{tpu_custom_call.1} parent=11 // pred_check_branch
          %251 = sbr.rel (%p249) target = $region20
        $region19: #{tpu_custom_call.1} parent=11 // pred_region
          _
        $region20: #{tpu_custom_call.1} parent=11 // pred_fallthru
          _
        // Predicated region
        $region21: #{tpu_custom_call.1} parent=11 // pred_check
          %p252 = pneg %p98
        $region22: #{tpu_custom_call.1} parent=11 // pred_check_branch
          %254 = sbr.rel (%p252) target = $region24
        $region23: #{tpu_custom_call.1} parent=11 // pred_region
          _
        $region24: #{tpu_custom_call.1} parent=11 // pred_fallthru
          _
        // Predicated region
        $region25: #{tpu_custom_call.1} parent=11 // pred_check
          %p255 = pneg %p119
        $region26: #{tpu_custom_call.1} parent=11 // pred_check_branch
          %257 = sbr.rel (%p255) target = $region28
        $region27: #{tpu_custom_call.1} parent=11 // pred_region
          _
        $region28: #{tpu_custom_call.1} parent=11 // pred_fallthru
          _
        // Predicated region
        $region29: #{tpu_custom_call.1} parent=11 // pred_check
          %p258 = pneg %p140
        $region30: #{tpu_custom_call.1} parent=11 // pred_check_branch
          %260 = sbr.rel (%p258) target = $region32
        $region31: #{tpu_custom_call.1} parent=11 // pred_region
          _
        $region32: #{tpu_custom_call.1} parent=11 // pred_fallthru
          _
        // Predicated region
        $region33: #{tpu_custom_call.1} parent=11 // pred_check
          %p261 = pneg %p161
        $region34: #{tpu_custom_call.1} parent=11 // pred_check_branch
          %263 = sbr.rel (%p261) target = $region36
        $region35: #{tpu_custom_call.1} parent=11 // pred_region
          _
        $region36: #{tpu_custom_call.1} parent=11 // pred_fallthru
          _
        // Predicated region
        $region37: #{tpu_custom_call.1} parent=11 // pred_check
          %p264 = pneg %p182
        $region38: #{tpu_custom_call.1} parent=11 // pred_check_branch
          %266 = sbr.rel (%p264) target = $region40
        $region39: #{tpu_custom_call.1} parent=11 // pred_region
          %s268 = ssub.s32 16, 16
          %269 = vsyncadd [#allocation7], %s268
          %s271 = sshll.u32 %s6, 4
          %s272 = int_to_ptr.vmem [resolvable:$true] %s271
          %274 = dma.vmem_to_smem %s272, 16, [#allocation5], [#allocation7]
        $region40: #{tpu_custom_call.1} parent=11 // pred_fallthru
          _
      $region12: #{tpu_custom_call.1} parent=5 // pred_fallthru
        _
      %p275 = scmp.lt.s32.totalorder %s16, 16
      // Predicated region
      $region41: #{tpu_custom_call.1} parent=5 // pred_check
        %p276 = pneg %p275
      $region42: #{tpu_custom_call.1} parent=5 // pred_check_branch
        %278 = sbr.rel (%p276) target = $region44
      $region43: #{tpu_custom_call.1} parent=5 // pred_region
        // Predicated region
        $region45: #{tpu_custom_call.1} parent=43 // pred_check
          %p279 = pneg %p204
        $region46: #{tpu_custom_call.1} parent=43 // pred_check_branch
          %281 = sbr.rel (%p279) target = $region48
        $region47: #{tpu_custom_call.1} parent=43 // pred_region
          %s282 = sand.u32 %s194, 1
          %s283 = sand.u32 %s194, 1
          %s284 = smul.addr %s283, 64
          %s285 = scalar_lea.vmem [#allocation8], %s284
          %s286 = smul.u32 16, %s24
          %s287 = smul.addr %s286, 2
          %s288 = sadd.s32 %s25, %s287
          %s289 = smul.addr %s288, 4
          %s290 = scalar_lea.vmem %s7, %s289
          // Predicated region
          $region49: #{tpu_custom_call.1} parent=47 // pred_check
            _
          $region50: #{tpu_custom_call.1} parent=47 // pred_check_branch
            %292 = sbr.rel (0) target = $region52
          $region51: #{tpu_custom_call.1} parent=47 // pred_region
            // Predicated region
            $region53: #{tpu_custom_call.1} parent=51 // pred_check
              _
            $region54: #{tpu_custom_call.1} parent=51 // pred_check_branch
              %294 = sbr.rel target = $region56
            $region55: #{tpu_custom_call.1} parent=51 // pred_region
              // Predicated region
              $region68: #{tpu_custom_call.1} parent=55 // pred_check
                _
              $region69: #{tpu_custom_call.1} parent=55 // pred_check_branch
                %340 = sbr.rel (0) target = $region71
              $region70: #{tpu_custom_call.1} parent=55 // pred_region
                loop: start=0, step=1, limit=1
                $region72: #{tpu_custom_call.1} parent=70 // loop_pre_header
                  _
                $region73: #{tpu_custom_call.1} parent=70 // loop_header
                  %s342 = sphi 0, %s346
                  %p343 = scmp.ge.s32.totalorder %s342, 1
                  %s347 = sphi %s290, %s290
                  %s348 = sphi %s285, %s285
                $region74: #{tpu_custom_call.1} parent=70 // loop_header_branch
                  %345 = sbr.rel (%p343) target = $region78
                $region75: #{tpu_custom_call.1} parent=70 // loop_body
                  _
                $region76: #{tpu_custom_call.1} parent=70 // loop_footer
                  %s346 = sadd.s32 1, %s342
                $region77: #{tpu_custom_call.1} parent=70 // loop_footer_branch
                  %341 = sbr.rel target = $region73
                $region78: #{tpu_custom_call.1} parent=70 // loop_exit
                  _
                %s350 = ssub.s32 16, 1
                loop: start=0, step=1, limit=1
                $region79: #{tpu_custom_call.1} parent=70 // loop_pre_header
                  _
                $region80: #{tpu_custom_call.1} parent=70 // loop_header
                  %s352 = sphi 0, %s356
                  %p353 = scmp.ge.s32.totalorder %s352, 1
                  %s357 = sphi %s290, %s290
                  %s358 = sphi %s285, %s285
                $region81: #{tpu_custom_call.1} parent=70 // loop_header_branch
                  %355 = sbr.rel (%p353) target = $region85
                $region82: #{tpu_custom_call.1} parent=70 // loop_body
                  %v359 = vld [vmem:[%s357] sm:%s350]
                  %360 = vst [vmem:[%s358] sm:%s350] %v359
                  %v361 = vld [vmem:[%s357 + $0x8] sm:%s350]
                  %362 = vst [vmem:[%s358 + $0x4] sm:%s350] %v361
                  %v363 = vld [vmem:[%s357 + $0x10] sm:%s350]
                  %364 = vst [vmem:[%s358 + $0x8] sm:%s350] %v363
                  %v365 = vld [vmem:[%s357 + $0x18] sm:%s350]
                  %366 = vst [vmem:[%s358 + $0xc] sm:%s350] %v365
                  %v367 = vld [vmem:[%s357 + $0x20] sm:%s350]
                  %368 = vst [vmem:[%s358 + $0x10] sm:%s350] %v367
                  %v369 = vld [vmem:[%s357 + $0x28] sm:%s350]
                  %370 = vst [vmem:[%s358 + $0x14] sm:%s350] %v369
                  %v371 = vld [vmem:[%s357 + $0x30] sm:%s350]
                  %372 = vst [vmem:[%s358 + $0x18] sm:%s350] %v371
                  %v373 = vld [vmem:[%s357 + $0x38] sm:%s350]
                  %374 = vst [vmem:[%s358 + $0x1c] sm:%s350] %v373
                  %v375 = vld [vmem:[%s357 + $0x40] sm:%s350]
                  %376 = vst [vmem:[%s358 + $0x20] sm:%s350] %v375
                  %v377 = vld [vmem:[%s357 + $0x48] sm:%s350]
                  %378 = vst [vmem:[%s358 + $0x24] sm:%s350] %v377
                  %v379 = vld [vmem:[%s357 + $0x50] sm:%s350]
                  %380 = vst [vmem:[%s358 + $0x28] sm:%s350] %v379
                  %v381 = vld [vmem:[%s357 + $0x58] sm:%s350]
                  %382 = vst [vmem:[%s358 + $0x2c] sm:%s350] %v381
                  %v383 = vld [vmem:[%s357 + $0x60] sm:%s350]
                  %384 = vst [vmem:[%s358 + $0x30] sm:%s350] %v383
                  %v385 = vld [vmem:[%s357 + $0x68] sm:%s350]
                  %386 = vst [vmem:[%s358 + $0x34] sm:%s350] %v385
                  %v387 = vld [vmem:[%s357 + $0x70] sm:%s350]
                  %388 = vst [vmem:[%s358 + $0x38] sm:%s350] %v387
                  %v389 = vld [vmem:[%s357 + $0x78] sm:%s350]
                  %390 = vst [vmem:[%s358 + $0x3c] sm:%s350] %v389
                $region83: #{tpu_custom_call.1} parent=70 // loop_footer
                  %s356 = sadd.s32 1, %s352
                $region84: #{tpu_custom_call.1} parent=70 // loop_footer_branch
                  %351 = sbr.rel target = $region80
                $region85: #{tpu_custom_call.1} parent=70 // loop_exit
                  _
              $region71: #{tpu_custom_call.1} parent=55 // pred_fallthru
                _
            $region56: #{tpu_custom_call.1} parent=51 // pred_fallthru
              _
            // Predicated region
            $region57: #{tpu_custom_call.1} parent=51 // pred_check
              _
            $region58: #{tpu_custom_call.1} parent=51 // pred_check_branch
              %296 = sbr.rel (0) target = $region60
            $region59: #{tpu_custom_call.1} parent=51 // pred_region
              %s298 = ssub.s32 16, 1
              loop: start=0, step=1, limit=1
              $region61: #{tpu_custom_call.1} parent=59 // loop_pre_header
                _
              $region62: #{tpu_custom_call.1} parent=59 // loop_header
                %s300 = sphi 0, %s304
                %p301 = scmp.ge.s32.totalorder %s300, 1
                %s305 = sphi %s290, %s290
                %s306 = sphi %s285, %s285
              $region63: #{tpu_custom_call.1} parent=59 // loop_header_branch
                %303 = sbr.rel (%p301) target = $region67
              $region64: #{tpu_custom_call.1} parent=59 // loop_body
                %v307 = vld [vmem:[%s305] sm:%s298]
                %308 = vst [vmem:[%s306] sm:%s298] %v307
                %v309 = vld [vmem:[%s305 + $0x8] sm:%s298]
                %310 = vst [vmem:[%s306 + $0x4] sm:%s298] %v309
                %v311 = vld [vmem:[%s305 + $0x10] sm:%s298]
                %312 = vst [vmem:[%s306 + $0x8] sm:%s298] %v311
                %v313 = vld [vmem:[%s305 + $0x18] sm:%s298]
                %314 = vst [vmem:[%s306 + $0xc] sm:%s298] %v313
                %v315 = vld [vmem:[%s305 + $0x20] sm:%s298]
                %316 = vst [vmem:[%s306 + $0x10] sm:%s298] %v315
                %v317 = vld [vmem:[%s305 + $0x28] sm:%s298]
                %318 = vst [vmem:[%s306 + $0x14] sm:%s298] %v317
                %v319 = vld [vmem:[%s305 + $0x30] sm:%s298]
                %320 = vst [vmem:[%s306 + $0x18] sm:%s298] %v319
                %v321 = vld [vmem:[%s305 + $0x38] sm:%s298]
                %322 = vst [vmem:[%s306 + $0x1c] sm:%s298] %v321
                %v323 = vld [vmem:[%s305 + $0x40] sm:%s298]
                %324 = vst [vmem:[%s306 + $0x20] sm:%s298] %v323
                %v325 = vld [vmem:[%s305 + $0x48] sm:%s298]
                %326 = vst [vmem:[%s306 + $0x24] sm:%s298] %v325
                %v327 = vld [vmem:[%s305 + $0x50] sm:%s298]
                %328 = vst [vmem:[%s306 + $0x28] sm:%s298] %v327
                %v329 = vld [vmem:[%s305 + $0x58] sm:%s298]
                %330 = vst [vmem:[%s306 + $0x2c] sm:%s298] %v329
                %v331 = vld [vmem:[%s305 + $0x60] sm:%s298]
                %332 = vst [vmem:[%s306 + $0x30] sm:%s298] %v331
                %v333 = vld [vmem:[%s305 + $0x68] sm:%s298]
                %334 = vst [vmem:[%s306 + $0x34] sm:%s298] %v333
                %v335 = vld [vmem:[%s305 + $0x70] sm:%s298]
                %336 = vst [vmem:[%s306 + $0x38] sm:%s298] %v335
                %v337 = vld [vmem:[%s305 + $0x78] sm:%s298]
                %338 = vst [vmem:[%s306 + $0x3c] sm:%s298] %v337
              $region65: #{tpu_custom_call.1} parent=59 // loop_footer
                %s304 = sadd.s32 1, %s300
              $region66: #{tpu_custom_call.1} parent=59 // loop_footer_branch
                %299 = sbr.rel target = $region62
              $region67: #{tpu_custom_call.1} parent=59 // loop_exit
                _
            $region60: #{tpu_custom_call.1} parent=51 // pred_fallthru
              _
          $region52: #{tpu_custom_call.1} parent=47 // pred_fallthru
            _
          %391 = vnop
        $region48: #{tpu_custom_call.1} parent=43 // pred_fallthru
          _
      $region44: #{tpu_custom_call.1} parent=5 // pred_fallthru
        _
      %p392 = scmp.le.s32.totalorder 1, %s16
      %p393 = scmp.lt.s32.totalorder %s16, 17
      %p394 = pnand %p392, %p393
      %p395 = pneg %p394
      // Predicated region
      $region86: #{tpu_custom_call.1} parent=5 // pred_check
        _
      $region87: #{tpu_custom_call.1} parent=5 // pred_check_branch
        %397 = sbr.rel (%p394) target = $region89
      $region88: #{tpu_custom_call.1} parent=5 // pred_region
        %s398 = ssub.s32 %s16, 1
        // Predicated region
        $region90: #{tpu_custom_call.1} parent=88 // pred_check
          %p399 = pneg %p182
        $region91: #{tpu_custom_call.1} parent=88 // pred_check_branch
          %401 = sbr.rel (%p399) target = $region93
        $region92: #{tpu_custom_call.1} parent=88 // pred_region
          %402 = dma.done [#allocation7], 16
        $region93: #{tpu_custom_call.1} parent=88 // pred_fallthru
          _
        %s403 = sand.u32 %s197, 1
        %s404 = sand.u32 %s197, 1
        %s405 = smul.addr %s404, 64
        %s406 = scalar_lea.vmem [#allocation8], %s405
        // Predicated region
        $region94: #{tpu_custom_call.1} parent=88 // pred_check
          %p407 = pneg %p210
        $region95: #{tpu_custom_call.1} parent=88 // pred_check_branch
          %409 = sbr.rel (%p407) target = $region97
        $region96: #{tpu_custom_call.1} parent=88 // pred_region
          _
        $region97: #{tpu_custom_call.1} parent=88 // pred_fallthru
          _
        %410 = sfence
        %p411 = pneg %p56
        %p412 = pneg %p53
        %p413 = pneg %p77
        %p414 = pneg %p74
        %p415 = pneg %p98
        %p416 = pneg %p95
        %p417 = pneg %p119
        %p418 = pneg %p116
        %p419 = pneg %p140
        %p420 = pneg %p137
        %p421 = pneg %p161
        %p422 = pneg %p158
        %p423 = pneg %p182
        %p424 = pneg %p179
        %s425 = sand.u32 %s197, 1
        %s426 = sand.u32 %s197, 1
        %s427 = smul.addr %s426, 64
        %s428 = scalar_lea.vmem [#allocation8], %s427
        %p429 = pneg %p210
        %p430 = pneg %p207
        %p431 = pneg %p231
        %p432 = pneg %p228
        %s433 = smul.u32 16, %s27
        %v435 = vld [vmem:[%s5] sm:$0x1]
        %v436 = vand.u32 2147483647, %v435
        %p437 = scmp.eq.s32.totalorder %s26, 0
        %p438 = scmp.eq.s32.totalorder %s27, 0
        %p439 = pnand %p437, %p438
        %p440 = pneg %p439
        %p441 = scmp.eq.s32.totalorder %s28, 0
        %p442 = pnand %p440, %p441
        %p443 = pneg %p442
        // Predicated region
        $region98: #{tpu_custom_call.1} parent=88 // pred_check
          _
        $region99: #{tpu_custom_call.1} parent=88 // pred_check_branch
          %445 = sbr.rel (%p442) target = $region101
        $region100: #{tpu_custom_call.1} parent=88 // pred_region
          %v446 = vld [vmem:[%s0] sm:$0xff]
          %v447 = vld [vmem:[%s0 + $0x8] sm:$0xff]
          %v448 = vld [vmem:[%s0 + $0x10] sm:$0xff]
          %v449 = vld [vmem:[%s0 + $0x18] sm:$0xff]
          %v450 = vld [vmem:[%s0 + $0x20] sm:$0xff]
          %v451 = vld [vmem:[%s0 + $0x28] sm:$0xff]
          %v452 = vld [vmem:[%s0 + $0x30] sm:$0xff]
          %v453 = vld [vmem:[%s0 + $0x38] sm:$0xff]
          %v454 = vld [vmem:[%s0 + $0x40] sm:$0xff]
          %v455 = vld [vmem:[%s0 + $0x48] sm:$0xff]
          %v456 = vld [vmem:[%s0 + $0x50] sm:$0xff]
          %v457 = vld [vmem:[%s0 + $0x58] sm:$0xff]
          %v458 = vld [vmem:[%s0 + $0x60] sm:$0xff]
          %v459 = vld [vmem:[%s0 + $0x68] sm:$0xff]
          %v460 = vld [vmem:[%s0 + $0x70] sm:$0xff]
          %v461 = vld [vmem:[%s0 + $0x78] sm:$0xff]
          %v462 = vld [vmem:[%s0 + $0x80] sm:$0xff]
          %v463 = vld [vmem:[%s0 + $0x88] sm:$0xff]
          %v464 = vld [vmem:[%s0 + $0x90] sm:$0xff]
          %v465 = vld [vmem:[%s0 + $0x98] sm:$0xff]
          %v466 = vld [vmem:[%s0 + $0xa0] sm:$0xff]
          %v467 = vld [vmem:[%s0 + $0xa8] sm:$0xff]
          %v468 = vld [vmem:[%s0 + $0xb0] sm:$0xff]
          %v469 = vld [vmem:[%s0 + $0xb8] sm:$0xff]
          %v470 = vld [vmem:[%s0 + $0xc0] sm:$0xff]
          %v471 = vld [vmem:[%s0 + $0xc8] sm:$0xff]
          %v472 = vld [vmem:[%s0 + $0xd0] sm:$0xff]
          %v473 = vld [vmem:[%s0 + $0xd8] sm:$0xff]
          %v474 = vld [vmem:[%s0 + $0xe0] sm:$0xff]
          %v475 = vld [vmem:[%s0 + $0xe8] sm:$0xff]
          %v476 = vld [vmem:[%s0 + $0xf0] sm:$0xff]
          %v477 = vld [vmem:[%s0 + $0xf8] sm:$0xff]
          %v478 = vld [vmem:[%s1] sm:$0xff]
          %v479 = vld [vmem:[%s1 + $0x8] sm:$0xff]
          %v480 = vld [vmem:[%s1 + $0x10] sm:$0xff]
          %v481 = vld [vmem:[%s1 + $0x18] sm:$0xff]
          %v482 = vld [vmem:[%s2] sm:$0x1]
          %v484 = vlaneseq
          %v485 = vshrl.u32 %v484, 7
          %v486 = vsub.s32 0, %v485
          %v487 = vrot.slane %v482, %v486
          %vm489 = vcmask 261120
          %v491 = vsel %vm489, %v446, 0
          %v494 = vsel %vm489, %v447, 0
          %v497 = vsel %vm489, %v448, 0
          %v500 = vsel %vm489, %v449, 0
          %v503 = vsel %vm489, %v450, 0
          %v506 = vsel %vm489, %v451, 0
          %v509 = vsel %vm489, %v452, 0
          %v512 = vsel %vm489, %v453, 0
          %v515 = vsel %vm489, %v454, 0
          %v518 = vsel %vm489, %v455, 0
          %v521 = vsel %vm489, %v456, 0
          %v524 = vsel %vm489, %v457, 0
          %v527 = vsel %vm489, %v458, 0
          %v530 = vsel %vm489, %v459, 0
          %v533 = vsel %vm489, %v460, 0
          %v536 = vsel %vm489, %v461, 0
          %v539 = vsel %vm489, %v462, 0
          %v542 = vsel %vm489, %v463, 0
          %v545 = vsel %vm489, %v464, 0
          %v548 = vsel %vm489, %v465, 0
          %v551 = vsel %vm489, %v466, 0
          %v554 = vsel %vm489, %v467, 0
          %v557 = vsel %vm489, %v468, 0
          %v560 = vsel %vm489, %v469, 0
          %v563 = vsel %vm489, %v470, 0
          %v566 = vsel %vm489, %v471, 0
          %v569 = vsel %vm489, %v472, 0
          %v572 = vsel %vm489, %v473, 0
          %v575 = vsel %vm489, %v474, 0
          %v578 = vsel %vm489, %v475, 0
          %v581 = vsel %vm489, %v476, 0
          %v584 = vsel %vm489, %v477, 0
          %586 = vmatprep.subr.mxu0 0.0
          %587 = vmatpush1.msra.mxu0 0.0
          %588 = vmatprep.subr.mxu0 0.0
          %589 = vmatpush1.msra.mxu0 0.0
          %590 = vmatprep.subr.mxu0 0.0
          %591 = vmatpush1.msra.mxu0 0.0
          %592 = vmatprep.subr.mxu0 0.0
          %593 = vmatpush1.msra.mxu0 0.0
          %594 = vmatprep.subr.mxu0 0.0
          %595 = vmatpush1.msra.mxu0 0.0
          %596 = vmatprep.subr.mxu0 0.0
          %597 = vmatpush1.msra.mxu0 0.0
          %598 = vmatprep.subr.mxu0 0.0
          %599 = vmatpush1.msra.mxu0 0.0
          %600 = vmatprep.subr.mxu0 0.0
          %601 = vmatpush1.msra.mxu0 0.0
          %602 = vmatprep.subr.mxu0 0.0
          %603 = vmatpush1.msra.mxu0 0.0
          %604 = vmatprep.subr.mxu0 0.0
          %605 = vmatpush1.msra.mxu0 0.0
          %606 = vmatprep.subr.mxu0 0.0
          %607 = vmatpush1.msra.mxu0 0.0
          %608 = vmatprep.subr.mxu0 0.0
          %609 = vmatpush1.msra.mxu0 0.0
          %610 = vmatprep.subr.mxu0 0.0
          %611 = vmatpush1.msra.mxu0 %v481
          %612 = vmatprep.subr.mxu0 0.0
          %613 = vmatpush1.msra.mxu0 %v480
          %614 = vmatprep.subr.mxu0 0.0
          %615 = vmatpush1.msra.mxu0 %v479
          %616 = vmatprep.subr.mxu0 0.0
          %617 = vmatpush1.msra.mxu0 %v478
          %618 = vmatprep.subr.mxu0 0.0
          %619 = vmatpush2.msra.mxu0 0.0
          %620 = vmatprep.subr.mxu0 0.0
          %621 = vmatpush2.msra.mxu0 0.0
          %622 = vmatprep.subr.mxu0 0.0
          %623 = vmatpush2.msra.mxu0 0.0
          %624 = vmatprep.subr.mxu0 0.0
          %625 = vmatpush2.msra.mxu0 0.0
          %626 = vmatprep.subr.mxu0 0.0
          %627 = vmatpush2.msra.mxu0 0.0
          %628 = vmatprep.subr.mxu0 0.0
          %629 = vmatpush2.msra.mxu0 0.0
          %630 = vmatprep.subr.mxu0 0.0
          %631 = vmatpush2.msra.mxu0 0.0
          %632 = vmatprep.subr.mxu0 0.0
          %633 = vmatpush2.msra.mxu0 0.0
          %634 = vmatprep.subr.mxu0 0.0
          %635 = vmatpush2.msra.mxu0 0.0
          %636 = vmatprep.subr.mxu0 0.0
          %637 = vmatpush2.msra.mxu0 0.0
          %638 = vmatprep.subr.mxu0 0.0
          %639 = vmatpush2.msra.mxu0 0.0
          %640 = vmatprep.subr.mxu0 0.0
          %641 = vmatpush2.msra.mxu0 0.0
          %642 = vmatprep.subr.mxu0 0.0
          %643 = vmatpush2.msra.mxu0 0.0
          %644 = vmatprep.subr.mxu0 0.0
          %645 = vmatpush2.msra.mxu0 0.0
          %646 = vmatprep.subr.mxu0 0.0
          %647 = vmatpush2.msra.mxu0 0.0
          %648 = vmatprep.subr.mxu0 0.0
          %649 = vmatpush2.msra.mxu0 0.0
          %650 = vmatprep.mubr.f32.mxu0 0.0
          %651 = vmatmul.mubr.f32.gmra.mxu0 %v491
          %v652 = vpop.f32.mrf.mxu0
          %v653 = vadd.f32 %v487, %v652
          %v654 = vpop.f32.mrf.mxu0
          %655 = vmatprep.mubr.f32.mxu0 0.0
          %656 = vmatmul.mubr.f32.gmra.mxu0 %v494
          %v657 = vpop.f32.mrf.mxu0
          %v658 = vadd.f32 %v487, %v657
          %v659 = vpop.f32.mrf.mxu0
          %660 = vmatprep.mubr.f32.mxu0 0.0
          %661 = vmatmul.mubr.f32.gmra.mxu0 %v497
          %v662 = vpop.f32.mrf.mxu0
          %v663 = vadd.f32 %v487, %v662
          %v664 = vpop.f32.mrf.mxu0
          %665 = vmatprep.mubr.f32.mxu0 0.0
          %666 = vmatmul.mubr.f32.gmra.mxu0 %v500
          %v667 = vpop.f32.mrf.mxu0
          %v668 = vadd.f32 %v487, %v667
          %v669 = vpop.f32.mrf.mxu0
          %670 = vmatprep.mubr.f32.mxu0 0.0
          %671 = vmatmul.mubr.f32.gmra.mxu0 %v503
          %v672 = vpop.f32.mrf.mxu0
          %v673 = vadd.f32 %v487, %v672
          %v674 = vpop.f32.mrf.mxu0
          %675 = vmatprep.mubr.f32.mxu0 0.0
          %676 = vmatmul.mubr.f32.gmra.mxu0 %v506
          %v677 = vpop.f32.mrf.mxu0
          %v678 = vadd.f32 %v487, %v677
          %v679 = vpop.f32.mrf.mxu0
          %680 = vmatprep.mubr.f32.mxu0 0.0
          %681 = vmatmul.mubr.f32.gmra.mxu0 %v509
          %v682 = vpop.f32.mrf.mxu0
          %v683 = vadd.f32 %v487, %v682
          %v684 = vpop.f32.mrf.mxu0
          %685 = vmatprep.mubr.f32.mxu0 0.0
          %686 = vmatmul.mubr.f32.gmra.mxu0 %v512
          %v687 = vpop.f32.mrf.mxu0
          %v688 = vadd.f32 %v487, %v687
          %v689 = vpop.f32.mrf.mxu0
          %690 = vmatprep.mubr.f32.mxu0 0.0
          %691 = vmatmul.mubr.f32.gmra.mxu0 %v515
          %v692 = vpop.f32.mrf.mxu0
          %v693 = vadd.f32 %v487, %v692
          %v694 = vpop.f32.mrf.mxu0
          %695 = vmatprep.mubr.f32.mxu0 0.0
          %696 = vmatmul.mubr.f32.gmra.mxu0 %v518
          %v697 = vpop.f32.mrf.mxu0
          %v698 = vadd.f32 %v487, %v697
          %v699 = vpop.f32.mrf.mxu0
          %700 = vmatprep.mubr.f32.mxu0 0.0
          %701 = vmatmul.mubr.f32.gmra.mxu0 %v521
          %v702 = vpop.f32.mrf.mxu0
          %v703 = vadd.f32 %v487, %v702
          %v704 = vpop.f32.mrf.mxu0
          %705 = vmatprep.mubr.f32.mxu0 0.0
          %706 = vmatmul.mubr.f32.gmra.mxu0 %v524
          %v707 = vpop.f32.mrf.mxu0
          %v708 = vadd.f32 %v487, %v707
          %v709 = vpop.f32.mrf.mxu0
          %710 = vmatprep.mubr.f32.mxu0 0.0
          %711 = vmatmul.mubr.f32.gmra.mxu0 %v527
          %v712 = vpop.f32.mrf.mxu0
          %v713 = vadd.f32 %v487, %v712
          %v714 = vpop.f32.mrf.mxu0
          %715 = vmatprep.mubr.f32.mxu0 0.0
          %716 = vmatmul.mubr.f32.gmra.mxu0 %v530
          %v717 = vpop.f32.mrf.mxu0
          %v718 = vadd.f32 %v487, %v717
          %v719 = vpop.f32.mrf.mxu0
          %720 = vmatprep.mubr.f32.mxu0 0.0
          %721 = vmatmul.mubr.f32.gmra.mxu0 %v533
          %v722 = vpop.f32.mrf.mxu0
          %v723 = vadd.f32 %v487, %v722
          %v724 = vpop.f32.mrf.mxu0
          %725 = vmatprep.mubr.f32.mxu0 0.0
          %726 = vmatmul.mubr.f32.gmra.mxu0 %v536
          %v727 = vpop.f32.mrf.mxu0
          %v728 = vadd.f32 %v487, %v727
          %v729 = vpop.f32.mrf.mxu0
          %730 = vmatprep.mubr.f32.mxu0 0.0
          %731 = vmatmul.mubr.f32.gmra.mxu0 %v539
          %v732 = vpop.f32.mrf.mxu0
          %v733 = vadd.f32 %v487, %v732
          %v734 = vpop.f32.mrf.mxu0
          %735 = vmatprep.mubr.f32.mxu0 0.0
          %736 = vmatmul.mubr.f32.gmra.mxu0 %v542
          %v737 = vpop.f32.mrf.mxu0
          %v738 = vadd.f32 %v487, %v737
          %v739 = vpop.f32.mrf.mxu0
          %740 = vmatprep.mubr.f32.mxu0 0.0
          %741 = vmatmul.mubr.f32.gmra.mxu0 %v545
          %v742 = vpop.f32.mrf.mxu0
          %v743 = vadd.f32 %v487, %v742
          %v744 = vpop.f32.mrf.mxu0
          %745 = vmatprep.mubr.f32.mxu0 0.0
          %746 = vmatmul.mubr.f32.gmra.mxu0 %v548
          %v747 = vpop.f32.mrf.mxu0
          %v748 = vadd.f32 %v487, %v747
          %v749 = vpop.f32.mrf.mxu0
          %750 = vmatprep.mubr.f32.mxu0 0.0
          %751 = vmatmul.mubr.f32.gmra.mxu0 %v551
          %v752 = vpop.f32.mrf.mxu0
          %v753 = vadd.f32 %v487, %v752
          %v754 = vpop.f32.mrf.mxu0
          %755 = vmatprep.mubr.f32.mxu0 0.0
          %756 = vmatmul.mubr.f32.gmra.mxu0 %v554
          %v757 = vpop.f32.mrf.mxu0
          %v758 = vadd.f32 %v487, %v757
          %v759 = vpop.f32.mrf.mxu0
          %760 = vmatprep.mubr.f32.mxu0 0.0
          %761 = vmatmul.mubr.f32.gmra.mxu0 %v557
          %v762 = vpop.f32.mrf.mxu0
          %v763 = vadd.f32 %v487, %v762
          %v764 = vpop.f32.mrf.mxu0
          %765 = vmatprep.mubr.f32.mxu0 0.0
          %766 = vmatmul.mubr.f32.gmra.mxu0 %v560
          %v767 = vpop.f32.mrf.mxu0
          %v768 = vadd.f32 %v487, %v767
          %v769 = vpop.f32.mrf.mxu0
          %770 = vmatprep.mubr.f32.mxu0 0.0
          %771 = vmatmul.mubr.f32.gmra.mxu0 %v563
          %v772 = vpop.f32.mrf.mxu0
          %v773 = vadd.f32 %v487, %v772
          %v774 = vpop.f32.mrf.mxu0
          %775 = vmatprep.mubr.f32.mxu0 0.0
          %776 = vmatmul.mubr.f32.gmra.mxu0 %v566
          %v777 = vpop.f32.mrf.mxu0
          %v778 = vadd.f32 %v487, %v777
          %v779 = vpop.f32.mrf.mxu0
          %780 = vmatprep.mubr.f32.mxu0 0.0
          %781 = vmatmul.mubr.f32.gmra.mxu0 %v569
          %v782 = vpop.f32.mrf.mxu0
          %v783 = vadd.f32 %v487, %v782
          %v784 = vpop.f32.mrf.mxu0
          %785 = vmatprep.mubr.f32.mxu0 0.0
          %786 = vmatmul.mubr.f32.gmra.mxu0 %v572
          %v787 = vpop.f32.mrf.mxu0
          %v788 = vadd.f32 %v487, %v787
          %v789 = vpop.f32.mrf.mxu0
          %790 = vmatprep.mubr.f32.mxu0 0.0
          %791 = vmatmul.mubr.f32.gmra.mxu0 %v575
          %v792 = vpop.f32.mrf.mxu0
          %v793 = vadd.f32 %v487, %v792
          %v794 = vpop.f32.mrf.mxu0
          %795 = vmatprep.mubr.f32.mxu0 0.0
          %796 = vmatmul.mubr.f32.gmra.mxu0 %v578
          %v797 = vpop.f32.mrf.mxu0
          %v798 = vadd.f32 %v487, %v797
          %v799 = vpop.f32.mrf.mxu0
          %800 = vmatprep.mubr.f32.mxu0 0.0
          %801 = vmatmul.mubr.f32.gmra.mxu0 %v581
          %v802 = vpop.f32.mrf.mxu0
          %v803 = vadd.f32 %v487, %v802
          %v804 = vpop.f32.mrf.mxu0
          %805 = vmatprep.mubr.f32.mxu0 0.0
          %806 = vmatmul.mubr.f32.gmra.mxu0 %v584
          %v807 = vpop.f32.mrf.mxu0
          %v808 = vadd.f32 %v487, %v807
          %v809 = vpop.f32.mrf.mxu0
          %810 = vdwg.mxu0
          %v811 = vmax.f32 %v653, 0.0
          %v812 = vmax.f32 %v658, 0.0
          %v813 = vmax.f32 %v663, 0.0
          %v814 = vmax.f32 %v668, 0.0
          %v815 = vmax.f32 %v673, 0.0
          %v816 = vmax.f32 %v678, 0.0
          %v817 = vmax.f32 %v683, 0.0
          %v818 = vmax.f32 %v688, 0.0
          %v819 = vmax.f32 %v693, 0.0
          %v820 = vmax.f32 %v698, 0.0
          %v821 = vmax.f32 %v703, 0.0
          %v822 = vmax.f32 %v708, 0.0
          %v823 = vmax.f32 %v713, 0.0
          %v824 = vmax.f32 %v718, 0.0
          %v825 = vmax.f32 %v723, 0.0
          %v826 = vmax.f32 %v728, 0.0
          %v827 = vmax.f32 %v733, 0.0
          %v828 = vmax.f32 %v738, 0.0
          %v829 = vmax.f32 %v743, 0.0
          %v830 = vmax.f32 %v748, 0.0
          %v831 = vmax.f32 %v753, 0.0
          %v832 = vmax.f32 %v758, 0.0
          %v833 = vmax.f32 %v763, 0.0
          %v834 = vmax.f32 %v768, 0.0
          %v835 = vmax.f32 %v773, 0.0
          %v836 = vmax.f32 %v778, 0.0
          %v837 = vmax.f32 %v783, 0.0
          %v838 = vmax.f32 %v788, 0.0
          %v839 = vmax.f32 %v793, 0.0
          %v840 = vmax.f32 %v798, 0.0
          %v841 = vmax.f32 %v803, 0.0
          %v842 = vmax.f32 %v808, 0.0
          %v843 = vld [vmem:[%s3] sm:$0xff]
          %v844 = vld [vmem:[%s3 + $0x8] sm:$0xff]
          %v845 = vld [vmem:[%s3 + $0x10] sm:$0xff]
          %v846 = vld [vmem:[%s3 + $0x18] sm:$0xff]
          %v847 = vld [vmem:[%s4] sm:$0x1]
          %v849 = vlaneseq
          %v850 = vshrl.u32 %v849, 7
          %v851 = vsub.s32 0, %v850
          %v852 = vrot.slane %v847, %v851
          %v855 = vsel %vm489, %v811, 0
          %v858 = vsel %vm489, %v812, 0
          %v861 = vsel %vm489, %v813, 0
          %v864 = vsel %vm489, %v814, 0
          %v867 = vsel %vm489, %v815, 0
          %v870 = vsel %vm489, %v816, 0
          %v873 = vsel %vm489, %v817, 0
          %v876 = vsel %vm489, %v818, 0
          %v879 = vsel %vm489, %v819, 0
          %v882 = vsel %vm489, %v820, 0
          %v885 = vsel %vm489, %v821, 0
          %v888 = vsel %vm489, %v822, 0
          %v891 = vsel %vm489, %v823, 0
          %v894 = vsel %vm489, %v824, 0
          %v897 = vsel %vm489, %v825, 0
          %v900 = vsel %vm489, %v826, 0
          %v903 = vsel %vm489, %v827, 0
          %v906 = vsel %vm489, %v828, 0
          %v909 = vsel %vm489, %v829, 0
          %v912 = vsel %vm489, %v830, 0
          %v915 = vsel %vm489, %v831, 0
          %v918 = vsel %vm489, %v832, 0
          %v921 = vsel %vm489, %v833, 0
          %v924 = vsel %vm489, %v834, 0
          %v927 = vsel %vm489, %v835, 0
          %v930 = vsel %vm489, %v836, 0
          %v933 = vsel %vm489, %v837, 0
          %v936 = vsel %vm489, %v838, 0
          %v939 = vsel %vm489, %v839, 0
          %v942 = vsel %vm489, %v840, 0
          %v945 = vsel %vm489, %v841, 0
          %v948 = vsel %vm489, %v842, 0
          %950 = vmatprep.subr.mxu0 0.0
          %951 = vmatpush1.msra.mxu0 0.0
          %952 = vmatprep.subr.mxu0 0.0
          %953 = vmatpush1.msra.mxu0 0.0
          %954 = vmatprep.subr.mxu0 0.0
          %955 = vmatpush1.msra.mxu0 0.0
          %956 = vmatprep.subr.mxu0 0.0
          %957 = vmatpush1.msra.mxu0 0.0
          %958 = vmatprep.subr.mxu0 0.0
          %959 = vmatpush1.msra.mxu0 0.0
          %960 = vmatprep.subr.mxu0 0.0
          %961 = vmatpush1.msra.mxu0 0.0
          %962 = vmatprep.subr.mxu0 0.0
          %963 = vmatpush1.msra.mxu0 0.0
          %964 = vmatprep.subr.mxu0 0.0
          %965 = vmatpush1.msra.mxu0 0.0
          %966 = vmatprep.subr.mxu0 0.0
          %967 = vmatpush1.msra.mxu0 0.0
          %968 = vmatprep.subr.mxu0 0.0
          %969 = vmatpush1.msra.mxu0 0.0
          %970 = vmatprep.subr.mxu0 0.0
          %971 = vmatpush1.msra.mxu0 0.0
          %972 = vmatprep.subr.mxu0 0.0
          %973 = vmatpush1.msra.mxu0 0.0
          %974 = vmatprep.subr.mxu0 0.0
          %975 = vmatpush1.msra.mxu0 %v846
          %976 = vmatprep.subr.mxu0 0.0
          %977 = vmatpush1.msra.mxu0 %v845
          %978 = vmatprep.subr.mxu0 0.0
          %979 = vmatpush1.msra.mxu0 %v844
          %980 = vmatprep.subr.mxu0 0.0
          %981 = vmatpush1.msra.mxu0 %v843
          %982 = vmatprep.subr.mxu0 0.0
          %983 = vmatpush2.msra.mxu0 0.0
          %984 = vmatprep.subr.mxu0 0.0
          %985 = vmatpush2.msra.mxu0 0.0
          %986 = vmatprep.subr.mxu0 0.0
          %987 = vmatpush2.msra.mxu0 0.0
          %988 = vmatprep.subr.mxu0 0.0
          %989 = vmatpush2.msra.mxu0 0.0
          %990 = vmatprep.subr.mxu0 0.0
          %991 = vmatpush2.msra.mxu0 0.0
          %992 = vmatprep.subr.mxu0 0.0
          %993 = vmatpush2.msra.mxu0 0.0
          %994 = vmatprep.subr.mxu0 0.0
          %995 = vmatpush2.msra.mxu0 0.0
          %996 = vmatprep.subr.mxu0 0.0
          %997 = vmatpush2.msra.mxu0 0.0
          %998 = vmatprep.subr.mxu0 0.0
          %999 = vmatpush2.msra.mxu0 0.0
          %1000 = vmatprep.subr.mxu0 0.0
          %1001 = vmatpush2.msra.mxu0 0.0
          %1002 = vmatprep.subr.mxu0 0.0
          %1003 = vmatpush2.msra.mxu0 0.0
          %1004 = vmatprep.subr.mxu0 0.0
          %1005 = vmatpush2.msra.mxu0 0.0
          %1006 = vmatprep.subr.mxu0 0.0
          %1007 = vmatpush2.msra.mxu0 0.0
          %1008 = vmatprep.subr.mxu0 0.0
          %1009 = vmatpush2.msra.mxu0 0.0
          %1010 = vmatprep.subr.mxu0 0.0
          %1011 = vmatpush2.msra.mxu0 0.0
          %1012 = vmatprep.subr.mxu0 0.0
          %1013 = vmatpush2.msra.mxu0 0.0
          %1014 = vmatprep.mubr.f32.mxu0 0.0
          %1015 = vmatmul.mubr.f32.gmra.mxu0 %v855
          %v1016 = vpop.f32.mrf.mxu0
          %v1017 = vadd.f32 %v852, %v1016
          %v1018 = vpop.f32.mrf.mxu0
          %1019 = vmatprep.mubr.f32.mxu0 0.0
          %1020 = vmatmul.mubr.f32.gmra.mxu0 %v858
          %v1021 = vpop.f32.mrf.mxu0
          %v1022 = vadd.f32 %v852, %v1021
          %v1023 = vpop.f32.mrf.mxu0
          %1024 = vmatprep.mubr.f32.mxu0 0.0
          %1025 = vmatmul.mubr.f32.gmra.mxu0 %v861
          %v1026 = vpop.f32.mrf.mxu0
          %v1027 = vadd.f32 %v852, %v1026
          %v1028 = vpop.f32.mrf.mxu0
          %1029 = vmatprep.mubr.f32.mxu0 0.0
          %1030 = vmatmul.mubr.f32.gmra.mxu0 %v864
          %v1031 = vpop.f32.mrf.mxu0
          %v1032 = vadd.f32 %v852, %v1031
          %v1033 = vpop.f32.mrf.mxu0
          %1034 = vmatprep.mubr.f32.mxu0 0.0
          %1035 = vmatmul.mubr.f32.gmra.mxu0 %v867
          %v1036 = vpop.f32.mrf.mxu0
          %v1037 = vadd.f32 %v852, %v1036
          %v1038 = vpop.f32.mrf.mxu0
          %1039 = vmatprep.mubr.f32.mxu0 0.0
          %1040 = vmatmul.mubr.f32.gmra.mxu0 %v870
          %v1041 = vpop.f32.mrf.mxu0
          %v1042 = vadd.f32 %v852, %v1041
          %v1043 = vpop.f32.mrf.mxu0
          %1044 = vmatprep.mubr.f32.mxu0 0.0
          %1045 = vmatmul.mubr.f32.gmra.mxu0 %v873
          %v1046 = vpop.f32.mrf.mxu0
          %v1047 = vadd.f32 %v852, %v1046
          %v1048 = vpop.f32.mrf.mxu0
          %1049 = vmatprep.mubr.f32.mxu0 0.0
          %1050 = vmatmul.mubr.f32.gmra.mxu0 %v876
          %v1051 = vpop.f32.mrf.mxu0
          %v1052 = vadd.f32 %v852, %v1051
          %v1053 = vpop.f32.mrf.mxu0
          %1054 = vmatprep.mubr.f32.mxu0 0.0
          %1055 = vmatmul.mubr.f32.gmra.mxu0 %v879
          %v1056 = vpop.f32.mrf.mxu0
          %v1057 = vadd.f32 %v852, %v1056
          %v1058 = vpop.f32.mrf.mxu0
          %1059 = vmatprep.mubr.f32.mxu0 0.0
          %1060 = vmatmul.mubr.f32.gmra.mxu0 %v882
          %v1061 = vpop.f32.mrf.mxu0
          %v1062 = vadd.f32 %v852, %v1061
          %v1063 = vpop.f32.mrf.mxu0
          %1064 = vmatprep.mubr.f32.mxu0 0.0
          %1065 = vmatmul.mubr.f32.gmra.mxu0 %v885
          %v1066 = vpop.f32.mrf.mxu0
          %v1067 = vadd.f32 %v852, %v1066
          %v1068 = vpop.f32.mrf.mxu0
          %1069 = vmatprep.mubr.f32.mxu0 0.0
          %1070 = vmatmul.mubr.f32.gmra.mxu0 %v888
          %v1071 = vpop.f32.mrf.mxu0
          %v1072 = vadd.f32 %v852, %v1071
          %v1073 = vpop.f32.mrf.mxu0
          %1074 = vmatprep.mubr.f32.mxu0 0.0
          %1075 = vmatmul.mubr.f32.gmra.mxu0 %v891
          %v1076 = vpop.f32.mrf.mxu0
          %v1077 = vadd.f32 %v852, %v1076
          %v1078 = vpop.f32.mrf.mxu0
          %1079 = vmatprep.mubr.f32.mxu0 0.0
          %1080 = vmatmul.mubr.f32.gmra.mxu0 %v894
          %v1081 = vpop.f32.mrf.mxu0
          %v1082 = vadd.f32 %v852, %v1081
          %v1083 = vpop.f32.mrf.mxu0
          %1084 = vmatprep.mubr.f32.mxu0 0.0
          %1085 = vmatmul.mubr.f32.gmra.mxu0 %v897
          %v1086 = vpop.f32.mrf.mxu0
          %v1087 = vadd.f32 %v852, %v1086
          %v1088 = vpop.f32.mrf.mxu0
          %1089 = vmatprep.mubr.f32.mxu0 0.0
          %1090 = vmatmul.mubr.f32.gmra.mxu0 %v900
          %v1091 = vpop.f32.mrf.mxu0
          %v1092 = vadd.f32 %v852, %v1091
          %v1093 = vpop.f32.mrf.mxu0
          %1094 = vmatprep.mubr.f32.mxu0 0.0
          %1095 = vmatmul.mubr.f32.gmra.mxu0 %v903
          %v1096 = vpop.f32.mrf.mxu0
          %v1097 = vadd.f32 %v852, %v1096
          %v1098 = vpop.f32.mrf.mxu0
          %1099 = vmatprep.mubr.f32.mxu0 0.0
          %1100 = vmatmul.mubr.f32.gmra.mxu0 %v906
          %v1101 = vpop.f32.mrf.mxu0
          %v1102 = vadd.f32 %v852, %v1101
          %v1103 = vpop.f32.mrf.mxu0
          %1104 = vmatprep.mubr.f32.mxu0 0.0
          %1105 = vmatmul.mubr.f32.gmra.mxu0 %v909
          %v1106 = vpop.f32.mrf.mxu0
          %v1107 = vadd.f32 %v852, %v1106
          %v1108 = vpop.f32.mrf.mxu0
          %1109 = vmatprep.mubr.f32.mxu0 0.0
          %1110 = vmatmul.mubr.f32.gmra.mxu0 %v912
          %v1111 = vpop.f32.mrf.mxu0
          %v1112 = vadd.f32 %v852, %v1111
          %v1113 = vpop.f32.mrf.mxu0
          %1114 = vmatprep.mubr.f32.mxu0 0.0
          %1115 = vmatmul.mubr.f32.gmra.mxu0 %v915
          %v1116 = vpop.f32.mrf.mxu0
          %v1117 = vadd.f32 %v852, %v1116
          %v1118 = vpop.f32.mrf.mxu0
          %1119 = vmatprep.mubr.f32.mxu0 0.0
          %1120 = vmatmul.mubr.f32.gmra.mxu0 %v918
          %v1121 = vpop.f32.mrf.mxu0
          %v1122 = vadd.f32 %v852, %v1121
          %v1123 = vpop.f32.mrf.mxu0
          %1124 = vmatprep.mubr.f32.mxu0 0.0
          %1125 = vmatmul.mubr.f32.gmra.mxu0 %v921
          %v1126 = vpop.f32.mrf.mxu0
          %v1127 = vadd.f32 %v852, %v1126
          %v1128 = vpop.f32.mrf.mxu0
          %1129 = vmatprep.mubr.f32.mxu0 0.0
          %1130 = vmatmul.mubr.f32.gmra.mxu0 %v924
          %v1131 = vpop.f32.mrf.mxu0
          %v1132 = vadd.f32 %v852, %v1131
          %v1133 = vpop.f32.mrf.mxu0
          %1134 = vmatprep.mubr.f32.mxu0 0.0
          %1135 = vmatmul.mubr.f32.gmra.mxu0 %v927
          %v1136 = vpop.f32.mrf.mxu0
          %v1137 = vadd.f32 %v852, %v1136
          %v1138 = vpop.f32.mrf.mxu0
          %1139 = vmatprep.mubr.f32.mxu0 0.0
          %1140 = vmatmul.mubr.f32.gmra.mxu0 %v930
          %v1141 = vpop.f32.mrf.mxu0
          %v1142 = vadd.f32 %v852, %v1141
          %v1143 = vpop.f32.mrf.mxu0
          %1144 = vmatprep.mubr.f32.mxu0 0.0
          %1145 = vmatmul.mubr.f32.gmra.mxu0 %v933
          %v1146 = vpop.f32.mrf.mxu0
          %v1147 = vadd.f32 %v852, %v1146
          %v1148 = vpop.f32.mrf.mxu0
          %1149 = vmatprep.mubr.f32.mxu0 0.0
          %1150 = vmatmul.mubr.f32.gmra.mxu0 %v936
          %v1151 = vpop.f32.mrf.mxu0
          %v1152 = vadd.f32 %v852, %v1151
          %v1153 = vpop.f32.mrf.mxu0
          %1154 = vmatprep.mubr.f32.mxu0 0.0
          %1155 = vmatmul.mubr.f32.gmra.mxu0 %v939
          %v1156 = vpop.f32.mrf.mxu0
          %v1157 = vadd.f32 %v852, %v1156
          %v1158 = vpop.f32.mrf.mxu0
          %1159 = vmatprep.mubr.f32.mxu0 0.0
          %1160 = vmatmul.mubr.f32.gmra.mxu0 %v942
          %v1161 = vpop.f32.mrf.mxu0
          %v1162 = vadd.f32 %v852, %v1161
          %v1163 = vpop.f32.mrf.mxu0
          %1164 = vmatprep.mubr.f32.mxu0 0.0
          %1165 = vmatmul.mubr.f32.gmra.mxu0 %v945
          %v1166 = vpop.f32.mrf.mxu0
          %v1167 = vadd.f32 %v852, %v1166
          %v1168 = vpop.f32.mrf.mxu0
          %1169 = vmatprep.mubr.f32.mxu0 0.0
          %1170 = vmatmul.mubr.f32.gmra.mxu0 %v948
          %v1171 = vpop.f32.mrf.mxu0
          %v1172 = vadd.f32 %v852, %v1171
          %v1173 = vpop.f32.mrf.mxu0
          %1174 = vdwg.mxu0
          %v1175 = vmul.f32 %v1017, %v1017
          %v1176 = vmul.f32 %v1022, %v1022
          %v1177 = vmul.f32 %v1027, %v1027
          %v1178 = vmul.f32 %v1032, %v1032
          %v1179 = vmul.f32 %v1037, %v1037
          %v1180 = vmul.f32 %v1042, %v1042
          %v1181 = vmul.f32 %v1047, %v1047
          %v1182 = vmul.f32 %v1052, %v1052
          %v1183 = vmul.f32 %v1057, %v1057
          %v1184 = vmul.f32 %v1062, %v1062
          %v1185 = vmul.f32 %v1067, %v1067
          %v1186 = vmul.f32 %v1072, %v1072
          %v1187 = vmul.f32 %v1077, %v1077
          %v1188 = vmul.f32 %v1082, %v1082
          %v1189 = vmul.f32 %v1087, %v1087
          %v1190 = vmul.f32 %v1092, %v1092
          %v1191 = vmul.f32 %v1097, %v1097
          %v1192 = vmul.f32 %v1102, %v1102
          %v1193 = vmul.f32 %v1107, %v1107
          %v1194 = vmul.f32 %v1112, %v1112
          %v1195 = vmul.f32 %v1117, %v1117
          %v1196 = vmul.f32 %v1122, %v1122
          %v1197 = vmul.f32 %v1127, %v1127
          %v1198 = vmul.f32 %v1132, %v1132
          %v1199 = vmul.f32 %v1137, %v1137
          %v1200 = vmul.f32 %v1142, %v1142
          %v1201 = vmul.f32 %v1147, %v1147
          %v1202 = vmul.f32 %v1152, %v1152
          %v1203 = vmul.f32 %v1157, %v1157
          %v1204 = vmul.f32 %v1162, %v1162
          %v1205 = vmul.f32 %v1167, %v1167
          %v1206 = vmul.f32 %v1172, %v1172
          %v1208 = vlaneseq
          %v1209 = vshrl.u32 %v1208, 7
          %v1210 = vsub.s32 0, %v1209
          %v1211 = vrot.slane %v436, %v1210
          %v1213 = vmul.f32 %v1175, %v1211
          %v1214 = vmul.f32 %v1176, %v1211
          %v1215 = vmul.f32 %v1177, %v1211
          %v1216 = vmul.f32 %v1178, %v1211
          %v1217 = vmul.f32 %v1179, %v1211
          %v1218 = vmul.f32 %v1180, %v1211
          %v1219 = vmul.f32 %v1181, %v1211
          %v1220 = vmul.f32 %v1182, %v1211
          %v1221 = vmul.f32 %v1183, %v1211
          %v1222 = vmul.f32 %v1184, %v1211
          %v1223 = vmul.f32 %v1185, %v1211
          %v1224 = vmul.f32 %v1186, %v1211
          %v1225 = vmul.f32 %v1187, %v1211
          %v1226 = vmul.f32 %v1188, %v1211
          %v1227 = vmul.f32 %v1189, %v1211
          %v1228 = vmul.f32 %v1190, %v1211
          %v1229 = vmul.f32 %v1191, %v1211
          %v1230 = vmul.f32 %v1192, %v1211
          %v1231 = vmul.f32 %v1193, %v1211
          %v1232 = vmul.f32 %v1194, %v1211
          %v1233 = vmul.f32 %v1195, %v1211
          %v1234 = vmul.f32 %v1196, %v1211
          %v1235 = vmul.f32 %v1197, %v1211
          %v1236 = vmul.f32 %v1198, %v1211
          %v1237 = vmul.f32 %v1199, %v1211
          %v1238 = vmul.f32 %v1200, %v1211
          %v1239 = vmul.f32 %v1201, %v1211
          %v1240 = vmul.f32 %v1202, %v1211
          %v1241 = vmul.f32 %v1203, %v1211
          %v1242 = vmul.f32 %v1204, %v1211
          %v1243 = vmul.f32 %v1205, %v1211
          %v1244 = vmul.f32 %v1206, %v1211
          %1245 = vadd.xlane.f32.xlu0 %v1213
          %v1246 = vpop.xlane.xlu0 %1245
          %1247 = vadd.xlane.f32.xlu0 %v1214
          %v1248 = vpop.xlane.xlu0 %1247
          %1249 = vadd.xlane.f32.xlu0 %v1215
          %v1250 = vpop.xlane.xlu0 %1249
          %1251 = vadd.xlane.f32.xlu0 %v1216
          %v1252 = vpop.xlane.xlu0 %1251
          %1253 = vadd.xlane.f32.xlu0 %v1217
          %v1254 = vpop.xlane.xlu0 %1253
          %1255 = vadd.xlane.f32.xlu0 %v1218
          %v1256 = vpop.xlane.xlu0 %1255
          %1257 = vadd.xlane.f32.xlu0 %v1219
          %v1258 = vpop.xlane.xlu0 %1257
          %1259 = vadd.xlane.f32.xlu0 %v1220
          %v1260 = vpop.xlane.xlu0 %1259
          %1261 = vadd.xlane.f32.xlu0 %v1221
          %v1262 = vpop.xlane.xlu0 %1261
          %1263 = vadd.xlane.f32.xlu0 %v1222
          %v1264 = vpop.xlane.xlu0 %1263
          %1265 = vadd.xlane.f32.xlu0 %v1223
          %v1266 = vpop.xlane.xlu0 %1265
          %1267 = vadd.xlane.f32.xlu0 %v1224
          %v1268 = vpop.xlane.xlu0 %1267
          %1269 = vadd.xlane.f32.xlu0 %v1225
          %v1270 = vpop.xlane.xlu0 %1269
          %1271 = vadd.xlane.f32.xlu0 %v1226
          %v1272 = vpop.xlane.xlu0 %1271
          %1273 = vadd.xlane.f32.xlu0 %v1227
          %v1274 = vpop.xlane.xlu0 %1273
          %1275 = vadd.xlane.f32.xlu0 %v1228
          %v1276 = vpop.xlane.xlu0 %1275
          %1277 = vadd.xlane.f32.xlu0 %v1229
          %v1278 = vpop.xlane.xlu0 %1277
          %1279 = vadd.xlane.f32.xlu0 %v1230
          %v1280 = vpop.xlane.xlu0 %1279
          %1281 = vadd.xlane.f32.xlu0 %v1231
          %v1282 = vpop.xlane.xlu0 %1281
          %1283 = vadd.xlane.f32.xlu0 %v1232
          %v1284 = vpop.xlane.xlu0 %1283
          %1285 = vadd.xlane.f32.xlu0 %v1233
          %v1286 = vpop.xlane.xlu0 %1285
          %1287 = vadd.xlane.f32.xlu0 %v1234
          %v1288 = vpop.xlane.xlu0 %1287
          %1289 = vadd.xlane.f32.xlu0 %v1235
          %v1290 = vpop.xlane.xlu0 %1289
          %1291 = vadd.xlane.f32.xlu0 %v1236
          %v1292 = vpop.xlane.xlu0 %1291
          %1293 = vadd.xlane.f32.xlu0 %v1237
          %v1294 = vpop.xlane.xlu0 %1293
          %1295 = vadd.xlane.f32.xlu0 %v1238
          %v1296 = vpop.xlane.xlu0 %1295
          %1297 = vadd.xlane.f32.xlu0 %v1239
          %v1298 = vpop.xlane.xlu0 %1297
          %1299 = vadd.xlane.f32.xlu0 %v1240
          %v1300 = vpop.xlane.xlu0 %1299
          %1301 = vadd.xlane.f32.xlu0 %v1241
          %v1302 = vpop.xlane.xlu0 %1301
          %1303 = vadd.xlane.f32.xlu0 %v1242
          %v1304 = vpop.xlane.xlu0 %1303
          %1305 = vadd.xlane.f32.xlu0 %v1243
          %v1306 = vpop.xlane.xlu0 %1305
          %1307 = vadd.xlane.f32.xlu0 %v1244
          %v1308 = vpop.xlane.xlu0 %1307
          %v1309 = vadd.f32 %v1246, 0.01
          %v1310 = vadd.f32 %v1248, 0.01
          %v1311 = vadd.f32 %v1250, 0.01
          %v1312 = vadd.f32 %v1252, 0.01
          %v1313 = vadd.f32 %v1254, 0.01
          %v1314 = vadd.f32 %v1256, 0.01
          %v1315 = vadd.f32 %v1258, 0.01
          %v1316 = vadd.f32 %v1260, 0.01
          %v1317 = vadd.f32 %v1262, 0.01
          %v1318 = vadd.f32 %v1264, 0.01
          %v1319 = vadd.f32 %v1266, 0.01
          %v1320 = vadd.f32 %v1268, 0.01
          %v1321 = vadd.f32 %v1270, 0.01
          %v1322 = vadd.f32 %v1272, 0.01
          %v1323 = vadd.f32 %v1274, 0.01
          %v1324 = vadd.f32 %v1276, 0.01
          %v1325 = vadd.f32 %v1278, 0.01
          %v1326 = vadd.f32 %v1280, 0.01
          %v1327 = vadd.f32 %v1282, 0.01
          %v1328 = vadd.f32 %v1284, 0.01
          %v1329 = vadd.f32 %v1286, 0.01
          %v1330 = vadd.f32 %v1288, 0.01
          %v1331 = vadd.f32 %v1290, 0.01
          %v1332 = vadd.f32 %v1292, 0.01
          %v1333 = vadd.f32 %v1294, 0.01
          %v1334 = vadd.f32 %v1296, 0.01
          %v1335 = vadd.f32 %v1298, 0.01
          %v1336 = vadd.f32 %v1300, 0.01
          %v1337 = vadd.f32 %v1302, 0.01
          %v1338 = vadd.f32 %v1304, 0.01
          %v1339 = vadd.f32 %v1306, 0.01
          %v1340 = vadd.f32 %v1308, 0.01
          %v1341 = vrsqrt.pop %v1309
          %v1342 = vmul.f32 %v1309, %v1341
          %vm1343 = vcmp.eq.f32.partialorder %v1309, inf
          %v1344 = vsel %vm1343, %v1309, %v1342
          %vm1345 = vcmp.eq.f32.partialorder %v1309, 0.0
          %v1346 = vand.u32 %v1309, 2147483648
          %v1347 = vsel %vm1345, %v1346, %v1344
          %v1348 = vrsqrt.pop %v1310
          %v1349 = vmul.f32 %v1310, %v1348
          %vm1350 = vcmp.eq.f32.partialorder %v1310, inf
          %v1351 = vsel %vm1350, %v1310, %v1349
          %vm1352 = vcmp.eq.f32.partialorder %v1310, 0.0
          %v1353 = vand.u32 %v1310, 2147483648
          %v1354 = vsel %vm1352, %v1353, %v1351
          %v1355 = vrsqrt.pop %v1311
          %v1356 = vmul.f32 %v1311, %v1355
          %vm1357 = vcmp.eq.f32.partialorder %v1311, inf
          %v1358 = vsel %vm1357, %v1311, %v1356
          %vm1359 = vcmp.eq.f32.partialorder %v1311, 0.0
          %v1360 = vand.u32 %v1311, 2147483648
          %v1361 = vsel %vm1359, %v1360, %v1358
          %v1362 = vrsqrt.pop %v1312
          %v1363 = vmul.f32 %v1312, %v1362
          %vm1364 = vcmp.eq.f32.partialorder %v1312, inf
          %v1365 = vsel %vm1364, %v1312, %v1363
          %vm1366 = vcmp.eq.f32.partialorder %v1312, 0.0
          %v1367 = vand.u32 %v1312, 2147483648
          %v1368 = vsel %vm1366, %v1367, %v1365
          %v1369 = vrsqrt.pop %v1313
          %v1370 = vmul.f32 %v1313, %v1369
          %vm1371 = vcmp.eq.f32.partialorder %v1313, inf
          %v1372 = vsel %vm1371, %v1313, %v1370
          %vm1373 = vcmp.eq.f32.partialorder %v1313, 0.0
          %v1374 = vand.u32 %v1313, 2147483648
          %v1375 = vsel %vm1373, %v1374, %v1372
          %v1376 = vrsqrt.pop %v1314
          %v1377 = vmul.f32 %v1314, %v1376
          %vm1378 = vcmp.eq.f32.partialorder %v1314, inf
          %v1379 = vsel %vm1378, %v1314, %v1377
          %vm1380 = vcmp.eq.f32.partialorder %v1314, 0.0
          %v1381 = vand.u32 %v1314, 2147483648
          %v1382 = vsel %vm1380, %v1381, %v1379
          %v1383 = vrsqrt.pop %v1315
          %v1384 = vmul.f32 %v1315, %v1383
          %vm1385 = vcmp.eq.f32.partialorder %v1315, inf
          %v1386 = vsel %vm1385, %v1315, %v1384
          %vm1387 = vcmp.eq.f32.partialorder %v1315, 0.0
          %v1388 = vand.u32 %v1315, 2147483648
          %v1389 = vsel %vm1387, %v1388, %v1386
          %v1390 = vrsqrt.pop %v1316
          %v1391 = vmul.f32 %v1316, %v1390
          %vm1392 = vcmp.eq.f32.partialorder %v1316, inf
          %v1393 = vsel %vm1392, %v1316, %v1391
          %vm1394 = vcmp.eq.f32.partialorder %v1316, 0.0
          %v1395 = vand.u32 %v1316, 2147483648
          %v1396 = vsel %vm1394, %v1395, %v1393
          %v1397 = vrsqrt.pop %v1317
          %v1398 = vmul.f32 %v1317, %v1397
          %vm1399 = vcmp.eq.f32.partialorder %v1317, inf
          %v1400 = vsel %vm1399, %v1317, %v1398
          %vm1401 = vcmp.eq.f32.partialorder %v1317, 0.0
          %v1402 = vand.u32 %v1317, 2147483648
          %v1403 = vsel %vm1401, %v1402, %v1400
          %v1404 = vrsqrt.pop %v1318
          %v1405 = vmul.f32 %v1318, %v1404
          %vm1406 = vcmp.eq.f32.partialorder %v1318, inf
          %v1407 = vsel %vm1406, %v1318, %v1405
          %vm1408 = vcmp.eq.f32.partialorder %v1318, 0.0
          %v1409 = vand.u32 %v1318, 2147483648
          %v1410 = vsel %vm1408, %v1409, %v1407
          %v1411 = vrsqrt.pop %v1319
          %v1412 = vmul.f32 %v1319, %v1411
          %vm1413 = vcmp.eq.f32.partialorder %v1319, inf
          %v1414 = vsel %vm1413, %v1319, %v1412
          %vm1415 = vcmp.eq.f32.partialorder %v1319, 0.0
          %v1416 = vand.u32 %v1319, 2147483648
          %v1417 = vsel %vm1415, %v1416, %v1414
          %v1418 = vrsqrt.pop %v1320
          %v1419 = vmul.f32 %v1320, %v1418
          %vm1420 = vcmp.eq.f32.partialorder %v1320, inf
          %v1421 = vsel %vm1420, %v1320, %v1419
          %vm1422 = vcmp.eq.f32.partialorder %v1320, 0.0
          %v1423 = vand.u32 %v1320, 2147483648
          %v1424 = vsel %vm1422, %v1423, %v1421
          %v1425 = vrsqrt.pop %v1321
          %v1426 = vmul.f32 %v1321, %v1425
          %vm1427 = vcmp.eq.f32.partialorder %v1321, inf
          %v1428 = vsel %vm1427, %v1321, %v1426
          %vm1429 = vcmp.eq.f32.partialorder %v1321, 0.0
          %v1430 = vand.u32 %v1321, 2147483648
          %v1431 = vsel %vm1429, %v1430, %v1428
          %v1432 = vrsqrt.pop %v1322
          %v1433 = vmul.f32 %v1322, %v1432
          %vm1434 = vcmp.eq.f32.partialorder %v1322, inf
          %v1435 = vsel %vm1434, %v1322, %v1433
          %vm1436 = vcmp.eq.f32.partialorder %v1322, 0.0
          %v1437 = vand.u32 %v1322, 2147483648
          %v1438 = vsel %vm1436, %v1437, %v1435
          %v1439 = vrsqrt.pop %v1323
          %v1440 = vmul.f32 %v1323, %v1439
          %vm1441 = vcmp.eq.f32.partialorder %v1323, inf
          %v1442 = vsel %vm1441, %v1323, %v1440
          %vm1443 = vcmp.eq.f32.partialorder %v1323, 0.0
          %v1444 = vand.u32 %v1323, 2147483648
          %v1445 = vsel %vm1443, %v1444, %v1442
          %v1446 = vrsqrt.pop %v1324
          %v1447 = vmul.f32 %v1324, %v1446
          %vm1448 = vcmp.eq.f32.partialorder %v1324, inf
          %v1449 = vsel %vm1448, %v1324, %v1447
          %vm1450 = vcmp.eq.f32.partialorder %v1324, 0.0
          %v1451 = vand.u32 %v1324, 2147483648
          %v1452 = vsel %vm1450, %v1451, %v1449
          %v1453 = vrsqrt.pop %v1325
          %v1454 = vmul.f32 %v1325, %v1453
          %vm1455 = vcmp.eq.f32.partialorder %v1325, inf
          %v1456 = vsel %vm1455, %v1325, %v1454
          %vm1457 = vcmp.eq.f32.partialorder %v1325, 0.0
          %v1458 = vand.u32 %v1325, 2147483648
          %v1459 = vsel %vm1457, %v1458, %v1456
          %v1460 = vrsqrt.pop %v1326
          %v1461 = vmul.f32 %v1326, %v1460
          %vm1462 = vcmp.eq.f32.partialorder %v1326, inf
          %v1463 = vsel %vm1462, %v1326, %v1461
          %vm1464 = vcmp.eq.f32.partialorder %v1326, 0.0
          %v1465 = vand.u32 %v1326, 2147483648
          %v1466 = vsel %vm1464, %v1465, %v1463
          %v1467 = vrsqrt.pop %v1327
          %v1468 = vmul.f32 %v1327, %v1467
          %vm1469 = vcmp.eq.f32.partialorder %v1327, inf
          %v1470 = vsel %vm1469, %v1327, %v1468
          %vm1471 = vcmp.eq.f32.partialorder %v1327, 0.0
          %v1472 = vand.u32 %v1327, 2147483648
          %v1473 = vsel %vm1471, %v1472, %v1470
          %v1474 = vrsqrt.pop %v1328
          %v1475 = vmul.f32 %v1328, %v1474
          %vm1476 = vcmp.eq.f32.partialorder %v1328, inf
          %v1477 = vsel %vm1476, %v1328, %v1475
          %vm1478 = vcmp.eq.f32.partialorder %v1328, 0.0
          %v1479 = vand.u32 %v1328, 2147483648
          %v1480 = vsel %vm1478, %v1479, %v1477
          %v1481 = vrsqrt.pop %v1329
          %v1482 = vmul.f32 %v1329, %v1481
          %vm1483 = vcmp.eq.f32.partialorder %v1329, inf
          %v1484 = vsel %vm1483, %v1329, %v1482
          %vm1485 = vcmp.eq.f32.partialorder %v1329, 0.0
          %v1486 = vand.u32 %v1329, 2147483648
          %v1487 = vsel %vm1485, %v1486, %v1484
          %v1488 = vrsqrt.pop %v1330
          %v1489 = vmul.f32 %v1330, %v1488
          %vm1490 = vcmp.eq.f32.partialorder %v1330, inf
          %v1491 = vsel %vm1490, %v1330, %v1489
          %vm1492 = vcmp.eq.f32.partialorder %v1330, 0.0
          %v1493 = vand.u32 %v1330, 2147483648
          %v1494 = vsel %vm1492, %v1493, %v1491
          %v1495 = vrsqrt.pop %v1331
          %v1496 = vmul.f32 %v1331, %v1495
          %vm1497 = vcmp.eq.f32.partialorder %v1331, inf
          %v1498 = vsel %vm1497, %v1331, %v1496
          %vm1499 = vcmp.eq.f32.partialorder %v1331, 0.0
          %v1500 = vand.u32 %v1331, 2147483648
          %v1501 = vsel %vm1499, %v1500, %v1498
          %v1502 = vrsqrt.pop %v1332
          %v1503 = vmul.f32 %v1332, %v1502
          %vm1504 = vcmp.eq.f32.partialorder %v1332, inf
          %v1505 = vsel %vm1504, %v1332, %v1503
          %vm1506 = vcmp.eq.f32.partialorder %v1332, 0.0
          %v1507 = vand.u32 %v1332, 2147483648
          %v1508 = vsel %vm1506, %v1507, %v1505
          %v1509 = vrsqrt.pop %v1333
          %v1510 = vmul.f32 %v1333, %v1509
          %vm1511 = vcmp.eq.f32.partialorder %v1333, inf
          %v1512 = vsel %vm1511, %v1333, %v1510
          %vm1513 = vcmp.eq.f32.partialorder %v1333, 0.0
          %v1514 = vand.u32 %v1333, 2147483648
          %v1515 = vsel %vm1513, %v1514, %v1512
          %v1516 = vrsqrt.pop %v1334
          %v1517 = vmul.f32 %v1334, %v1516
          %vm1518 = vcmp.eq.f32.partialorder %v1334, inf
          %v1519 = vsel %vm1518, %v1334, %v1517
          %vm1520 = vcmp.eq.f32.partialorder %v1334, 0.0
          %v1521 = vand.u32 %v1334, 2147483648
          %v1522 = vsel %vm1520, %v1521, %v1519
          %v1523 = vrsqrt.pop %v1335
          %v1524 = vmul.f32 %v1335, %v1523
          %vm1525 = vcmp.eq.f32.partialorder %v1335, inf
          %v1526 = vsel %vm1525, %v1335, %v1524
          %vm1527 = vcmp.eq.f32.partialorder %v1335, 0.0
          %v1528 = vand.u32 %v1335, 2147483648
          %v1529 = vsel %vm1527, %v1528, %v1526
          %v1530 = vrsqrt.pop %v1336
          %v1531 = vmul.f32 %v1336, %v1530
          %vm1532 = vcmp.eq.f32.partialorder %v1336, inf
          %v1533 = vsel %vm1532, %v1336, %v1531
          %vm1534 = vcmp.eq.f32.partialorder %v1336, 0.0
          %v1535 = vand.u32 %v1336, 2147483648
          %v1536 = vsel %vm1534, %v1535, %v1533
          %v1537 = vrsqrt.pop %v1337
          %v1538 = vmul.f32 %v1337, %v1537
          %vm1539 = vcmp.eq.f32.partialorder %v1337, inf
          %v1540 = vsel %vm1539, %v1337, %v1538
          %vm1541 = vcmp.eq.f32.partialorder %v1337, 0.0
          %v1542 = vand.u32 %v1337, 2147483648
          %v1543 = vsel %vm1541, %v1542, %v1540
          %v1544 = vrsqrt.pop %v1338
          %v1545 = vmul.f32 %v1338, %v1544
          %vm1546 = vcmp.eq.f32.partialorder %v1338, inf
          %v1547 = vsel %vm1546, %v1338, %v1545
          %vm1548 = vcmp.eq.f32.partialorder %v1338, 0.0
          %v1549 = vand.u32 %v1338, 2147483648
          %v1550 = vsel %vm1548, %v1549, %v1547
          %v1551 = vrsqrt.pop %v1339
          %v1552 = vmul.f32 %v1339, %v1551
          %vm1553 = vcmp.eq.f32.partialorder %v1339, inf
          %v1554 = vsel %vm1553, %v1339, %v1552
          %vm1555 = vcmp.eq.f32.partialorder %v1339, 0.0
          %v1556 = vand.u32 %v1339, 2147483648
          %v1557 = vsel %vm1555, %v1556, %v1554
          %v1558 = vrsqrt.pop %v1340
          %v1559 = vmul.f32 %v1340, %v1558
          %vm1560 = vcmp.eq.f32.partialorder %v1340, inf
          %v1561 = vsel %vm1560, %v1340, %v1559
          %vm1562 = vcmp.eq.f32.partialorder %v1340, 0.0
          %v1563 = vand.u32 %v1340, 2147483648
          %v1564 = vsel %vm1562, %v1563, %v1561
          %v1565 = vadd.f32 %v1347, 0.01
          %v1566 = vadd.f32 %v1354, 0.01
          %v1567 = vadd.f32 %v1361, 0.01
          %v1568 = vadd.f32 %v1368, 0.01
          %v1569 = vadd.f32 %v1375, 0.01
          %v1570 = vadd.f32 %v1382, 0.01
          %v1571 = vadd.f32 %v1389, 0.01
          %v1572 = vadd.f32 %v1396, 0.01
          %v1573 = vadd.f32 %v1403, 0.01
          %v1574 = vadd.f32 %v1410, 0.01
          %v1575 = vadd.f32 %v1417, 0.01
          %v1576 = vadd.f32 %v1424, 0.01
          %v1577 = vadd.f32 %v1431, 0.01
          %v1578 = vadd.f32 %v1438, 0.01
          %v1579 = vadd.f32 %v1445, 0.01
          %v1580 = vadd.f32 %v1452, 0.01
          %v1581 = vadd.f32 %v1459, 0.01
          %v1582 = vadd.f32 %v1466, 0.01
          %v1583 = vadd.f32 %v1473, 0.01
          %v1584 = vadd.f32 %v1480, 0.01
          %v1585 = vadd.f32 %v1487, 0.01
          %v1586 = vadd.f32 %v1494, 0.01
          %v1587 = vadd.f32 %v1501, 0.01
          %v1588 = vadd.f32 %v1508, 0.01
          %v1589 = vadd.f32 %v1515, 0.01
          %v1590 = vadd.f32 %v1522, 0.01
          %v1591 = vadd.f32 %v1529, 0.01
          %v1592 = vadd.f32 %v1536, 0.01
          %v1593 = vadd.f32 %v1543, 0.01
          %v1594 = vadd.f32 %v1550, 0.01
          %v1595 = vadd.f32 %v1557, 0.01
          %v1596 = vadd.f32 %v1564, 0.01
          %v1597 = vrcp.pop %v1565
          %v1598 = vrcp.pop %v1566
          %v1599 = vrcp.pop %v1567
          %v1600 = vrcp.pop %v1568
          %v1601 = vrcp.pop %v1569
          %v1602 = vrcp.pop %v1570
          %v1603 = vrcp.pop %v1571
          %v1604 = vrcp.pop %v1572
          %v1605 = vrcp.pop %v1573
          %v1606 = vrcp.pop %v1574
          %v1607 = vrcp.pop %v1575
          %v1608 = vrcp.pop %v1576
          %v1609 = vrcp.pop %v1577
          %v1610 = vrcp.pop %v1578
          %v1611 = vrcp.pop %v1579
          %v1612 = vrcp.pop %v1580
          %v1613 = vrcp.pop %v1581
          %v1614 = vrcp.pop %v1582
          %v1615 = vrcp.pop %v1583
          %v1616 = vrcp.pop %v1584
          %v1617 = vrcp.pop %v1585
          %v1618 = vrcp.pop %v1586
          %v1619 = vrcp.pop %v1587
          %v1620 = vrcp.pop %v1588
          %v1621 = vrcp.pop %v1589
          %v1622 = vrcp.pop %v1590
          %v1623 = vrcp.pop %v1591
          %v1624 = vrcp.pop %v1592
          %v1625 = vrcp.pop %v1593
          %v1626 = vrcp.pop %v1594
          %v1627 = vrcp.pop %v1595
          %v1628 = vrcp.pop %v1596
          %v1629 = vmul.f32 %v1017, %v1597
          %v1630 = vmul.f32 %v1022, %v1598
          %v1631 = vmul.f32 %v1027, %v1599
          %v1632 = vmul.f32 %v1032, %v1600
          %v1633 = vmul.f32 %v1037, %v1601
          %v1634 = vmul.f32 %v1042, %v1602
          %v1635 = vmul.f32 %v1047, %v1603
          %v1636 = vmul.f32 %v1052, %v1604
          %v1637 = vmul.f32 %v1057, %v1605
          %v1638 = vmul.f32 %v1062, %v1606
          %v1639 = vmul.f32 %v1067, %v1607
          %v1640 = vmul.f32 %v1072, %v1608
          %v1641 = vmul.f32 %v1077, %v1609
          %v1642 = vmul.f32 %v1082, %v1610
          %v1643 = vmul.f32 %v1087, %v1611
          %v1644 = vmul.f32 %v1092, %v1612
          %v1645 = vmul.f32 %v1097, %v1613
          %v1646 = vmul.f32 %v1102, %v1614
          %v1647 = vmul.f32 %v1107, %v1615
          %v1648 = vmul.f32 %v1112, %v1616
          %v1649 = vmul.f32 %v1117, %v1617
          %v1650 = vmul.f32 %v1122, %v1618
          %v1651 = vmul.f32 %v1127, %v1619
          %v1652 = vmul.f32 %v1132, %v1620
          %v1653 = vmul.f32 %v1137, %v1621
          %v1654 = vmul.f32 %v1142, %v1622
          %v1655 = vmul.f32 %v1147, %v1623
          %v1656 = vmul.f32 %v1152, %v1624
          %v1657 = vmul.f32 %v1157, %v1625
          %v1658 = vmul.f32 %v1162, %v1626
          %v1659 = vmul.f32 %v1167, %v1627
          %v1660 = vmul.f32 %v1172, %v1628
          %s1661 = sld [smem:[#allocation5]]
          %v1662 = vstv %s1661
          %v1663 = vmul.f32 %v1662, %v1629
          %v1664 = vmul.f32 %v1662, %v1630
          %v1665 = vmul.f32 %v1662, %v1631
          %v1666 = vmul.f32 %v1662, %v1632
          %v1667 = vmul.f32 %v1662, %v1633
          %v1668 = vmul.f32 %v1662, %v1634
          %v1669 = vmul.f32 %v1662, %v1635
          %v1670 = vmul.f32 %v1662, %v1636
          %v1671 = vmul.f32 %v1662, %v1637
          %v1672 = vmul.f32 %v1662, %v1638
          %v1673 = vmul.f32 %v1662, %v1639
          %v1674 = vmul.f32 %v1662, %v1640
          %v1675 = vmul.f32 %v1662, %v1641
          %v1676 = vmul.f32 %v1662, %v1642
          %v1677 = vmul.f32 %v1662, %v1643
          %v1678 = vmul.f32 %v1662, %v1644
          %v1679 = vmul.f32 %v1662, %v1645
          %v1680 = vmul.f32 %v1662, %v1646
          %v1681 = vmul.f32 %v1662, %v1647
          %v1682 = vmul.f32 %v1662, %v1648
          %v1683 = vmul.f32 %v1662, %v1649
          %v1684 = vmul.f32 %v1662, %v1650
          %v1685 = vmul.f32 %v1662, %v1651
          %v1686 = vmul.f32 %v1662, %v1652
          %v1687 = vmul.f32 %v1662, %v1653
          %v1688 = vmul.f32 %v1662, %v1654
          %v1689 = vmul.f32 %v1662, %v1655
          %v1690 = vmul.f32 %v1662, %v1656
          %v1691 = vmul.f32 %v1662, %v1657
          %v1692 = vmul.f32 %v1662, %v1658
          %v1693 = vmul.f32 %v1662, %v1659
          %v1694 = vmul.f32 %v1662, %v1660
          %1695 = vst [vmem:[#allocation4] sm:$0xff] %v1663
          %1696 = vst [vmem:[#allocation4 + $0x8] sm:$0xff] %v1664
          %1697 = vst [vmem:[#allocation4 + $0x10] sm:$0xff] %v1665
          %1698 = vst [vmem:[#allocation4 + $0x18] sm:$0xff] %v1666
          %1699 = vst [vmem:[#allocation4 + $0x20] sm:$0xff] %v1667
          %1700 = vst [vmem:[#allocation4 + $0x28] sm:$0xff] %v1668
          %1701 = vst [vmem:[#allocation4 + $0x30] sm:$0xff] %v1669
          %1702 = vst [vmem:[#allocation4 + $0x38] sm:$0xff] %v1670
          %1703 = vst [vmem:[#allocation4 + $0x40] sm:$0xff] %v1671
          %1704 = vst [vmem:[#allocation4 + $0x48] sm:$0xff] %v1672
          %1705 = vst [vmem:[#allocation4 + $0x50] sm:$0xff] %v1673
          %1706 = vst [vmem:[#allocation4 + $0x58] sm:$0xff] %v1674
          %1707 = vst [vmem:[#allocation4 + $0x60] sm:$0xff] %v1675
          %1708 = vst [vmem:[#allocation4 + $0x68] sm:$0xff] %v1676
          %1709 = vst [vmem:[#allocation4 + $0x70] sm:$0xff] %v1677
          %1710 = vst [vmem:[#allocation4 + $0x78] sm:$0xff] %v1678
          %1711 = vst [vmem:[#allocation4 + $0x80] sm:$0xff] %v1679
          %1712 = vst [vmem:[#allocation4 + $0x88] sm:$0xff] %v1680
          %1713 = vst [vmem:[#allocation4 + $0x90] sm:$0xff] %v1681
          %1714 = vst [vmem:[#allocation4 + $0x98] sm:$0xff] %v1682
          %1715 = vst [vmem:[#allocation4 + $0xa0] sm:$0xff] %v1683
          %1716 = vst [vmem:[#allocation4 + $0xa8] sm:$0xff] %v1684
          %1717 = vst [vmem:[#allocation4 + $0xb0] sm:$0xff] %v1685
          %1718 = vst [vmem:[#allocation4 + $0xb8] sm:$0xff] %v1686
          %1719 = vst [vmem:[#allocation4 + $0xc0] sm:$0xff] %v1687
          %1720 = vst [vmem:[#allocation4 + $0xc8] sm:$0xff] %v1688
          %1721 = vst [vmem:[#allocation4 + $0xd0] sm:$0xff] %v1689
          %1722 = vst [vmem:[#allocation4 + $0xd8] sm:$0xff] %v1690
          %1723 = vst [vmem:[#allocation4 + $0xe0] sm:$0xff] %v1691
          %1724 = vst [vmem:[#allocation4 + $0xe8] sm:$0xff] %v1692
          %1725 = vst [vmem:[#allocation4 + $0xf0] sm:$0xff] %v1693
          %1726 = vst [vmem:[#allocation4 + $0xf8] sm:$0xff] %v1694
          %v1727 = vpack.c.bf16 %v1630, %v1629
          %v1728 = vpack.c.bf16 %v1632, %v1631
          %v1729 = vpack.c.bf16 %v1634, %v1633
          %v1730 = vpack.c.bf16 %v1636, %v1635
          %v1731 = vpack.c.bf16 %v1638, %v1637
          %v1732 = vpack.c.bf16 %v1640, %v1639
          %v1733 = vpack.c.bf16 %v1642, %v1641
          %v1734 = vpack.c.bf16 %v1644, %v1643
          %v1735 = vpack.c.bf16 %v1646, %v1645
          %v1736 = vpack.c.bf16 %v1648, %v1647
          %v1737 = vpack.c.bf16 %v1650, %v1649
          %v1738 = vpack.c.bf16 %v1652, %v1651
          %v1739 = vpack.c.bf16 %v1654, %v1653
          %v1740 = vpack.c.bf16 %v1656, %v1655
          %v1741 = vpack.c.bf16 %v1658, %v1657
          %v1742 = vpack.c.bf16 %v1660, %v1659
          %v1759 = vunpack.c.l.b16 %v1727
          %v1760 = vunpack.c.h.b16 %v1727
          %v1761 = vunpack.c.l.b16 %v1728
          %v1762 = vunpack.c.h.b16 %v1728
          %v1763 = vunpack.c.l.b16 %v1729
          %v1764 = vunpack.c.h.b16 %v1729
          %v1765 = vunpack.c.l.b16 %v1730
          %v1766 = vunpack.c.h.b16 %v1730
          %v1767 = vunpack.c.l.b16 %v1731
          %v1768 = vunpack.c.h.b16 %v1731
          %v1769 = vunpack.c.l.b16 %v1732
          %v1770 = vunpack.c.h.b16 %v1732
          %v1771 = vunpack.c.l.b16 %v1733
          %v1772 = vunpack.c.h.b16 %v1733
          %v1773 = vunpack.c.l.b16 %v1734
          %v1774 = vunpack.c.h.b16 %v1734
          %v1775 = vunpack.c.l.b16 %v1735
          %v1776 = vunpack.c.h.b16 %v1735
          %v1777 = vunpack.c.l.b16 %v1736
          %v1778 = vunpack.c.h.b16 %v1736
          %v1779 = vunpack.c.l.b16 %v1737
          %v1780 = vunpack.c.h.b16 %v1737
          %v1781 = vunpack.c.l.b16 %v1738
          %v1782 = vunpack.c.h.b16 %v1738
          %v1783 = vunpack.c.l.b16 %v1739
          %v1784 = vunpack.c.h.b16 %v1739
          %v1785 = vunpack.c.l.b16 %v1740
          %v1786 = vunpack.c.h.b16 %v1740
          %v1787 = vunpack.c.l.b16 %v1741
          %v1788 = vunpack.c.h.b16 %v1741
          %v1789 = vunpack.c.l.b16 %v1742
          %v1790 = vunpack.c.h.b16 %v1742
          %v1791 = vpack.c.b16 %v1759, %v1759
          %v1792 = vpack.c.b16 %v1760, %v1760
          %v1793 = vpack.c.b16 %v1761, %v1761
          %v1794 = vpack.c.b16 %v1762, %v1762
          %v1795 = vpack.c.b16 %v1763, %v1763
          %v1796 = vpack.c.b16 %v1764, %v1764
          %v1797 = vpack.c.b16 %v1765, %v1765
          %v1798 = vpack.c.b16 %v1766, %v1766
          %v1799 = vpack.c.b16 %v1767, %v1767
          %v1800 = vpack.c.b16 %v1768, %v1768
          %v1801 = vpack.c.b16 %v1769, %v1769
          %v1802 = vpack.c.b16 %v1770, %v1770
          %v1803 = vpack.c.b16 %v1771, %v1771
          %v1804 = vpack.c.b16 %v1772, %v1772
          %v1805 = vpack.c.b16 %v1773, %v1773
          %v1806 = vpack.c.b16 %v1774, %v1774
          %v1807 = vpack.c.b16 %v1775, %v1775
          %v1808 = vpack.c.b16 %v1776, %v1776
          %v1809 = vpack.c.b16 %v1777, %v1777
          %v1810 = vpack.c.b16 %v1778, %v1778
          %v1811 = vpack.c.b16 %v1779, %v1779
          %v1812 = vpack.c.b16 %v1780, %v1780
          %v1813 = vpack.c.b16 %v1781, %v1781
          %v1814 = vpack.c.b16 %v1782, %v1782
          %v1815 = vpack.c.b16 %v1783, %v1783
          %v1816 = vpack.c.b16 %v1784, %v1784
          %v1817 = vpack.c.b16 %v1785, %v1785
          %v1818 = vpack.c.b16 %v1786, %v1786
          %v1819 = vpack.c.b16 %v1787, %v1787
          %v1820 = vpack.c.b16 %v1788, %v1788
          %v1821 = vpack.c.b16 %v1789, %v1789
          %v1822 = vpack.c.b16 %v1790, %v1790
          %1855 = vst [vmem:[#allocation3] sm:$0xf] %v1791
          %1856 = vst [vmem:[#allocation3 + $0x4] sm:$0xf] %v1792
          %1857 = vst [vmem:[#allocation3 + $0x8] sm:$0xf] %v1793
          %1858 = vst [vmem:[#allocation3 + $0xc] sm:$0xf] %v1794
          %1859 = vst [vmem:[#allocation3 + $0x10] sm:$0xf] %v1795
          %1860 = vst [vmem:[#allocation3 + $0x14] sm:$0xf] %v1796
          %1861 = vst [vmem:[#allocation3 + $0x18] sm:$0xf] %v1797
          %1862 = vst [vmem:[#allocation3 + $0x1c] sm:$0xf] %v1798
          %1863 = vst [vmem:[#allocation3 + $0x20] sm:$0xf] %v1799
          %1864 = vst [vmem:[#allocation3 + $0x24] sm:$0xf] %v1800
          %1865 = vst [vmem:[#allocation3 + $0x28] sm:$0xf] %v1801
          %1866 = vst [vmem:[#allocation3 + $0x2c] sm:$0xf] %v1802
          %1867 = vst [vmem:[#allocation3 + $0x30] sm:$0xf] %v1803
          %1868 = vst [vmem:[#allocation3 + $0x34] sm:$0xf] %v1804
          %1869 = vst [vmem:[#allocation3 + $0x38] sm:$0xf] %v1805
          %1870 = vst [vmem:[#allocation3 + $0x3c] sm:$0xf] %v1806
          %1871 = vst [vmem:[#allocation3 + $0x40] sm:$0xf] %v1807
          %1872 = vst [vmem:[#allocation3 + $0x44] sm:$0xf] %v1808
          %1873 = vst [vmem:[#allocation3 + $0x48] sm:$0xf] %v1809
          %1874 = vst [vmem:[#allocation3 + $0x4c] sm:$0xf] %v1810
          %1875 = vst [vmem:[#allocation3 + $0x50] sm:$0xf] %v1811
          %1876 = vst [vmem:[#allocation3 + $0x54] sm:$0xf] %v1812
          %1877 = vst [vmem:[#allocation3 + $0x58] sm:$0xf] %v1813
          %1878 = vst [vmem:[#allocation3 + $0x5c] sm:$0xf] %v1814
          %1879 = vst [vmem:[#allocation3 + $0x60] sm:$0xf] %v1815
          %1880 = vst [vmem:[#allocation3 + $0x64] sm:$0xf] %v1816
          %1881 = vst [vmem:[#allocation3 + $0x68] sm:$0xf] %v1817
          %1882 = vst [vmem:[#allocation3 + $0x6c] sm:$0xf] %v1818
          %1883 = vst [vmem:[#allocation3 + $0x70] sm:$0xf] %v1819
          %1884 = vst [vmem:[#allocation3 + $0x74] sm:$0xf] %v1820
          %1885 = vst [vmem:[#allocation3 + $0x78] sm:$0xf] %v1821
          %1886 = vst [vmem:[#allocation3 + $0x7c] sm:$0xf] %v1822
        $region101: #{tpu_custom_call.1} parent=88 // pred_fallthru
          _
        %s1887 = smul.u32 %s27, 128
        %s1888 = smul.u32 %s28, 128
        %v1889 = vld [vmem:[%s406] sm:$0xf]
        %v1890 = vld [vmem:[%s406 + $0x4] sm:$0xf]
        %v1891 = vld [vmem:[%s406 + $0x8] sm:$0xf]
        %v1892 = vld [vmem:[%s406 + $0xc] sm:$0xf]
        %v1893 = vld [vmem:[%s406 + $0x10] sm:$0xf]
        %v1894 = vld [vmem:[%s406 + $0x14] sm:$0xf]
        %v1895 = vld [vmem:[%s406 + $0x18] sm:$0xf]
        %v1896 = vld [vmem:[%s406 + $0x1c] sm:$0xf]
        %v1897 = vld [vmem:[%s406 + $0x20] sm:$0xf]
        %v1898 = vld [vmem:[%s406 + $0x24] sm:$0xf]
        %v1899 = vld [vmem:[%s406 + $0x28] sm:$0xf]
        %v1900 = vld [vmem:[%s406 + $0x2c] sm:$0xf]
        %v1901 = vld [vmem:[%s406 + $0x30] sm:$0xf]
        %v1902 = vld [vmem:[%s406 + $0x34] sm:$0xf]
        %v1903 = vld [vmem:[%s406 + $0x38] sm:$0xf]
        %v1904 = vld [vmem:[%s406 + $0x3c] sm:$0xf]
        %s1905 = sshra.s32 %s1888, 3
        %s1906 = sand.u32 %s1888, 7
        %s1907 = smul.addr %s1905, 4
        %s1908 = scalar_lea.vmem [#allocation3], %s1907
        %v1909 = vld [vmem:[%s1908] sm:$0xf]
        %v1910 = vld [vmem:[%s1908 + $0x4] sm:$0xf]
        %v1911 = vld [vmem:[%s1908 + $0x8] sm:$0xf]
        %v1912 = vld [vmem:[%s1908 + $0xc] sm:$0xf]
        %v1913 = vld [vmem:[%s1908 + $0x10] sm:$0xf]
        %v1914 = vld [vmem:[%s1908 + $0x14] sm:$0xf]
        %v1915 = vld [vmem:[%s1908 + $0x18] sm:$0xf]
        %v1916 = vld [vmem:[%s1908 + $0x1c] sm:$0xf]
        %v1917 = vld [vmem:[%s1908 + $0x20] sm:$0xf]
        %v1918 = vld [vmem:[%s1908 + $0x24] sm:$0xf]
        %v1919 = vld [vmem:[%s1908 + $0x28] sm:$0xf]
        %v1920 = vld [vmem:[%s1908 + $0x2c] sm:$0xf]
        %v1921 = vld [vmem:[%s1908 + $0x30] sm:$0xf]
        %v1922 = vld [vmem:[%s1908 + $0x34] sm:$0xf]
        %v1923 = vld [vmem:[%s1908 + $0x38] sm:$0xf]
        %v1924 = vld [vmem:[%s1908 + $0x3c] sm:$0xf]
        %v1941 = vunpack.c.l.b16 %v1889
        %v1942 = vunpack.c.l.b16 %v1890
        %v1943 = vunpack.c.l.b16 %v1891
        %v1944 = vunpack.c.l.b16 %v1892
        %v1945 = vunpack.c.l.b16 %v1893
        %v1946 = vunpack.c.l.b16 %v1894
        %v1947 = vunpack.c.l.b16 %v1895
        %v1948 = vunpack.c.l.b16 %v1896
        %v1949 = vunpack.c.l.b16 %v1897
        %v1950 = vunpack.c.l.b16 %v1898
        %v1951 = vunpack.c.l.b16 %v1899
        %v1952 = vunpack.c.l.b16 %v1900
        %v1953 = vunpack.c.l.b16 %v1901
        %v1954 = vunpack.c.l.b16 %v1902
        %v1955 = vunpack.c.l.b16 %v1903
        %v1956 = vunpack.c.l.b16 %v1904
        %v1957 = vpack.c.b16 %v1942, %v1941
        %v1958 = vpack.c.b16 %v1944, %v1943
        %v1959 = vpack.c.b16 %v1946, %v1945
        %v1960 = vpack.c.b16 %v1948, %v1947
        %v1961 = vpack.c.b16 %v1950, %v1949
        %v1962 = vpack.c.b16 %v1952, %v1951
        %v1963 = vpack.c.b16 %v1954, %v1953
        %v1964 = vpack.c.b16 %v1956, %v1955
        %v1989 = vunpack.c.l.b16 %v1909
        %v1990 = vunpack.c.l.b16 %v1910
        %v1991 = vunpack.c.l.b16 %v1911
        %v1992 = vunpack.c.l.b16 %v1912
        %v1993 = vunpack.c.l.b16 %v1913
        %v1994 = vunpack.c.l.b16 %v1914
        %v1995 = vunpack.c.l.b16 %v1915
        %v1996 = vunpack.c.l.b16 %v1916
        %v1997 = vunpack.c.l.b16 %v1917
        %v1998 = vunpack.c.l.b16 %v1918
        %v1999 = vunpack.c.l.b16 %v1919
        %v2000 = vunpack.c.l.b16 %v1920
        %v2001 = vunpack.c.l.b16 %v1921
        %v2002 = vunpack.c.l.b16 %v1922
        %v2003 = vunpack.c.l.b16 %v1923
        %v2004 = vunpack.c.l.b16 %v1924
        %v2005 = vpack.c.b16 %v1990, %v1989
        %v2006 = vpack.c.b16 %v1992, %v1991
        %v2007 = vpack.c.b16 %v1994, %v1993
        %v2008 = vpack.c.b16 %v1996, %v1995
        %v2009 = vpack.c.b16 %v1998, %v1997
        %v2010 = vpack.c.b16 %v2000, %v1999
        %v2011 = vpack.c.b16 %v2002, %v2001
        %v2012 = vpack.c.b16 %v2004, %v2003
        %2021 = vmatprep.subr.bf16.mxu0 0
        %2022 = vmatpush1.bf16.msra.mxu0 %v2012
        %2023 = vmatprep.subr.bf16.mxu0 0
        %2024 = vmatpush1.bf16.msra.mxu0 %v2011
        %2025 = vmatprep.subr.bf16.mxu0 0
        %2026 = vmatpush1.bf16.msra.mxu0 %v2010
        %2027 = vmatprep.subr.bf16.mxu0 0
        %2028 = vmatpush1.bf16.msra.mxu0 %v2009
        %2029 = vmatprep.subr.bf16.mxu0 0
        %2030 = vmatpush1.bf16.msra.mxu0 %v2008
        %2031 = vmatprep.subr.bf16.mxu0 0
        %2032 = vmatpush1.bf16.msra.mxu0 %v2007
        %2033 = vmatprep.subr.bf16.mxu0 0
        %2034 = vmatpush1.bf16.msra.mxu0 %v2006
        %2035 = vmatprep.subr.bf16.mxu0 0
        %2036 = vmatpush1.bf16.msra.mxu0 %v2005
        %2037 = vmatprep.subr.bf16.mxu0 0
        %2038 = vmatpush2.bf16.msra.mxu0 0
        %2039 = vmatprep.subr.bf16.mxu0 0
        %2040 = vmatpush2.bf16.msra.mxu0 0
        %2041 = vmatprep.subr.bf16.mxu0 0
        %2042 = vmatpush2.bf16.msra.mxu0 0
        %2043 = vmatprep.subr.bf16.mxu0 0
        %2044 = vmatpush2.bf16.msra.mxu0 0
        %2045 = vmatprep.subr.bf16.mxu0 0
        %2046 = vmatpush2.bf16.msra.mxu0 0
        %2047 = vmatprep.subr.bf16.mxu0 0
        %2048 = vmatpush2.bf16.msra.mxu0 0
        %2049 = vmatprep.subr.bf16.mxu0 0
        %2050 = vmatpush2.bf16.msra.mxu0 0
        %2051 = vmatprep.subr.bf16.mxu0 0
        %2052 = vmatpush2.bf16.msra.mxu0 0
        %2053 = vmatprep.mubr.bf16.mxu0 0
        %2054 = vmatmul.mubr.bf16.gmra.mxu0 %v1957
        %v2055 = vpop.f32.mrf.mxu0
        %v2056 = vadd.f32 0.0, %v2055
        %v2057 = vpop.f32.mrf.mxu0
        %v2058 = vpop.f32.mrf.mxu0
        %v2059 = vadd.f32 0.0, %v2058
        %v2060 = vpop.f32.mrf.mxu0
        %2061 = vmatprep.mubr.bf16.mxu0 0
        %2062 = vmatmul.mubr.bf16.gmra.mxu0 %v1958
        %v2063 = vpop.f32.mrf.mxu0
        %v2064 = vadd.f32 0.0, %v2063
        %v2065 = vpop.f32.mrf.mxu0
        %v2066 = vpop.f32.mrf.mxu0
        %v2067 = vadd.f32 0.0, %v2066
        %v2068 = vpop.f32.mrf.mxu0
        %2069 = vmatprep.mubr.bf16.mxu0 0
        %2070 = vmatmul.mubr.bf16.gmra.mxu0 %v1959
        %v2071 = vpop.f32.mrf.mxu0
        %v2072 = vadd.f32 0.0, %v2071
        %v2073 = vpop.f32.mrf.mxu0
        %v2074 = vpop.f32.mrf.mxu0
        %v2075 = vadd.f32 0.0, %v2074
        %v2076 = vpop.f32.mrf.mxu0
        %2077 = vmatprep.mubr.bf16.mxu0 0
        %2078 = vmatmul.mubr.bf16.gmra.mxu0 %v1960
        %v2079 = vpop.f32.mrf.mxu0
        %v2080 = vadd.f32 0.0, %v2079
        %v2081 = vpop.f32.mrf.mxu0
        %v2082 = vpop.f32.mrf.mxu0
        %v2083 = vadd.f32 0.0, %v2082
        %v2084 = vpop.f32.mrf.mxu0
        %2085 = vmatprep.mubr.bf16.mxu0 0
        %2086 = vmatmul.mubr.bf16.gmra.mxu0 %v1961
        %v2087 = vpop.f32.mrf.mxu0
        %v2088 = vadd.f32 0.0, %v2087
        %v2089 = vpop.f32.mrf.mxu0
        %v2090 = vpop.f32.mrf.mxu0
        %v2091 = vadd.f32 0.0, %v2090
        %v2092 = vpop.f32.mrf.mxu0
        %2093 = vmatprep.mubr.bf16.mxu0 0
        %2094 = vmatmul.mubr.bf16.gmra.mxu0 %v1962
        %v2095 = vpop.f32.mrf.mxu0
        %v2096 = vadd.f32 0.0, %v2095
        %v2097 = vpop.f32.mrf.mxu0
        %v2098 = vpop.f32.mrf.mxu0
        %v2099 = vadd.f32 0.0, %v2098
        %v2100 = vpop.f32.mrf.mxu0
        %2101 = vmatprep.mubr.bf16.mxu0 0
        %2102 = vmatmul.mubr.bf16.gmra.mxu0 %v1963
        %v2103 = vpop.f32.mrf.mxu0
        %v2104 = vadd.f32 0.0, %v2103
        %v2105 = vpop.f32.mrf.mxu0
        %v2106 = vpop.f32.mrf.mxu0
        %v2107 = vadd.f32 0.0, %v2106
        %v2108 = vpop.f32.mrf.mxu0
        %2109 = vmatprep.mubr.bf16.mxu0 0
        %2110 = vmatmul.mubr.bf16.gmra.mxu0 %v1964
        %v2111 = vpop.f32.mrf.mxu0
        %v2112 = vadd.f32 0.0, %v2111
        %v2113 = vpop.f32.mrf.mxu0
        %v2114 = vpop.f32.mrf.mxu0
        %v2115 = vadd.f32 0.0, %v2114
        %v2116 = vpop.f32.mrf.mxu0
        %2117 = vdwg.mxu0
        // Predicated region
        $region102: #{tpu_custom_call.1} parent=88 // pred_check
          %p2118 = pneg %p441
        $region103: #{tpu_custom_call.1} parent=88 // pred_check_branch
          %2120 = sbr.rel (%p2118) target = $region105
        $region104: #{tpu_custom_call.1} parent=88 // pred_region
          %s2121 = scalar_lea.vmem [#allocation2], %s1887
          %2122 = vst [vmem:[%s2121] sm:$0xff] %v2056
          %2123 = vst [vmem:[%s2121 + $0x8] sm:$0xff] %v2059
          %2124 = vst [vmem:[%s2121 + $0x10] sm:$0xff] %v2064
          %2125 = vst [vmem:[%s2121 + $0x18] sm:$0xff] %v2067
          %2126 = vst [vmem:[%s2121 + $0x20] sm:$0xff] %v2072
          %2127 = vst [vmem:[%s2121 + $0x28] sm:$0xff] %v2075
          %2128 = vst [vmem:[%s2121 + $0x30] sm:$0xff] %v2080
          %2129 = vst [vmem:[%s2121 + $0x38] sm:$0xff] %v2083
          %2130 = vst [vmem:[%s2121 + $0x40] sm:$0xff] %v2088
          %2131 = vst [vmem:[%s2121 + $0x48] sm:$0xff] %v2091
          %2132 = vst [vmem:[%s2121 + $0x50] sm:$0xff] %v2096
          %2133 = vst [vmem:[%s2121 + $0x58] sm:$0xff] %v2099
          %2134 = vst [vmem:[%s2121 + $0x60] sm:$0xff] %v2104
          %2135 = vst [vmem:[%s2121 + $0x68] sm:$0xff] %v2107
          %2136 = vst [vmem:[%s2121 + $0x70] sm:$0xff] %v2112
          %2137 = vst [vmem:[%s2121 + $0x78] sm:$0xff] %v2115
        $region105: #{tpu_custom_call.1} parent=88 // pred_fallthru
          _
        %p2138 = scmp.gt.s32.totalorder %s28, 0
        // Predicated region
        $region106: #{tpu_custom_call.1} parent=88 // pred_check
          %p2139 = pneg %p2138
        $region107: #{tpu_custom_call.1} parent=88 // pred_check_branch
          %2141 = sbr.rel (%p2139) target = $region109
        $region108: #{tpu_custom_call.1} parent=88 // pred_region
          %s2142 = scalar_lea.vmem [#allocation2], %s1887
          %v2143 = vld [vmem:[%s2142] sm:$0xff]
          %v2144 = vld [vmem:[%s2142 + $0x8] sm:$0xff]
          %v2145 = vld [vmem:[%s2142 + $0x10] sm:$0xff]
          %v2146 = vld [vmem:[%s2142 + $0x18] sm:$0xff]
          %v2147 = vld [vmem:[%s2142 + $0x20] sm:$0xff]
          %v2148 = vld [vmem:[%s2142 + $0x28] sm:$0xff]
          %v2149 = vld [vmem:[%s2142 + $0x30] sm:$0xff]
          %v2150 = vld [vmem:[%s2142 + $0x38] sm:$0xff]
          %v2151 = vld [vmem:[%s2142 + $0x40] sm:$0xff]
          %v2152 = vld [vmem:[%s2142 + $0x48] sm:$0xff]
          %v2153 = vld [vmem:[%s2142 + $0x50] sm:$0xff]
          %v2154 = vld [vmem:[%s2142 + $0x58] sm:$0xff]
          %v2155 = vld [vmem:[%s2142 + $0x60] sm:$0xff]
          %v2156 = vld [vmem:[%s2142 + $0x68] sm:$0xff]
          %v2157 = vld [vmem:[%s2142 + $0x70] sm:$0xff]
          %v2158 = vld [vmem:[%s2142 + $0x78] sm:$0xff]
          %v2159 = vadd.f32 %v2143, %v2056
          %v2160 = vadd.f32 %v2144, %v2059
          %v2161 = vadd.f32 %v2145, %v2064
          %v2162 = vadd.f32 %v2146, %v2067
          %v2163 = vadd.f32 %v2147, %v2072
          %v2164 = vadd.f32 %v2148, %v2075
          %v2165 = vadd.f32 %v2149, %v2080
          %v2166 = vadd.f32 %v2150, %v2083
          %v2167 = vadd.f32 %v2151, %v2088
          %v2168 = vadd.f32 %v2152, %v2091
          %v2169 = vadd.f32 %v2153, %v2096
          %v2170 = vadd.f32 %v2154, %v2099
          %v2171 = vadd.f32 %v2155, %v2104
          %v2172 = vadd.f32 %v2156, %v2107
          %v2173 = vadd.f32 %v2157, %v2112
          %v2174 = vadd.f32 %v2158, %v2115
          %2175 = vst [vmem:[%s2142] sm:$0xff] %v2159
          %2176 = vst [vmem:[%s2142 + $0x8] sm:$0xff] %v2160
          %2177 = vst [vmem:[%s2142 + $0x10] sm:$0xff] %v2161
          %2178 = vst [vmem:[%s2142 + $0x18] sm:$0xff] %v2162
          %2179 = vst [vmem:[%s2142 + $0x20] sm:$0xff] %v2163
          %2180 = vst [vmem:[%s2142 + $0x28] sm:$0xff] %v2164
          %2181 = vst [vmem:[%s2142 + $0x30] sm:$0xff] %v2165
          %2182 = vst [vmem:[%s2142 + $0x38] sm:$0xff] %v2166
          %2183 = vst [vmem:[%s2142 + $0x40] sm:$0xff] %v2167
          %2184 = vst [vmem:[%s2142 + $0x48] sm:$0xff] %v2168
          %2185 = vst [vmem:[%s2142 + $0x50] sm:$0xff] %v2169
          %2186 = vst [vmem:[%s2142 + $0x58] sm:$0xff] %v2170
          %2187 = vst [vmem:[%s2142 + $0x60] sm:$0xff] %v2171
          %2188 = vst [vmem:[%s2142 + $0x68] sm:$0xff] %v2172
          %2189 = vst [vmem:[%s2142 + $0x70] sm:$0xff] %v2173
          %2190 = vst [vmem:[%s2142 + $0x78] sm:$0xff] %v2174
        $region109: #{tpu_custom_call.1} parent=88 // pred_fallthru
          _
        %p2191 = scmp.eq.s32.totalorder %s27, 1
        %p2192 = scmp.eq.s32.totalorder %s28, 1
        %p2193 = pnand %p2191, %p2192
        %p2194 = pneg %p2193
        // Predicated region
        $region110: #{tpu_custom_call.1} parent=88 // pred_check
          _
        $region111: #{tpu_custom_call.1} parent=88 // pred_check_branch
          %2196 = sbr.rel (%p2193) target = $region113
        $region112: #{tpu_custom_call.1} parent=88 // pred_region
          %v2197 = vld [vmem:[#allocation2] sm:$0xff]
          %v2198 = vld [vmem:[#allocation2 + $0x8] sm:$0xff]
          %v2199 = vld [vmem:[#allocation2 + $0x10] sm:$0xff]
          %v2200 = vld [vmem:[#allocation2 + $0x18] sm:$0xff]
          %v2201 = vld [vmem:[#allocation2 + $0x20] sm:$0xff]
          %v2202 = vld [vmem:[#allocation2 + $0x28] sm:$0xff]
          %v2203 = vld [vmem:[#allocation2 + $0x30] sm:$0xff]
          %v2204 = vld [vmem:[#allocation2 + $0x38] sm:$0xff]
          %v2205 = vld [vmem:[#allocation2 + $0x40] sm:$0xff]
          %v2206 = vld [vmem:[#allocation2 + $0x48] sm:$0xff]
          %v2207 = vld [vmem:[#allocation2 + $0x50] sm:$0xff]
          %v2208 = vld [vmem:[#allocation2 + $0x58] sm:$0xff]
          %v2209 = vld [vmem:[#allocation2 + $0x60] sm:$0xff]
          %v2210 = vld [vmem:[#allocation2 + $0x68] sm:$0xff]
          %v2211 = vld [vmem:[#allocation2 + $0x70] sm:$0xff]
          %v2212 = vld [vmem:[#allocation2 + $0x78] sm:$0xff]
          %v2213 = vld [vmem:[#allocation2 + $0x80] sm:$0xff]
          %v2214 = vld [vmem:[#allocation2 + $0x88] sm:$0xff]
          %v2215 = vld [vmem:[#allocation2 + $0x90] sm:$0xff]
          %v2216 = vld [vmem:[#allocation2 + $0x98] sm:$0xff]
          %v2217 = vld [vmem:[#allocation2 + $0xa0] sm:$0xff]
          %v2218 = vld [vmem:[#allocation2 + $0xa8] sm:$0xff]
          %v2219 = vld [vmem:[#allocation2 + $0xb0] sm:$0xff]
          %v2220 = vld [vmem:[#allocation2 + $0xb8] sm:$0xff]
          %v2221 = vld [vmem:[#allocation2 + $0xc0] sm:$0xff]
          %v2222 = vld [vmem:[#allocation2 + $0xc8] sm:$0xff]
          %v2223 = vld [vmem:[#allocation2 + $0xd0] sm:$0xff]
          %v2224 = vld [vmem:[#allocation2 + $0xd8] sm:$0xff]
          %v2225 = vld [vmem:[#allocation2 + $0xe0] sm:$0xff]
          %v2226 = vld [vmem:[#allocation2 + $0xe8] sm:$0xff]
          %v2227 = vld [vmem:[#allocation2 + $0xf0] sm:$0xff]
          %v2228 = vld [vmem:[#allocation2 + $0xf8] sm:$0xff]
          %v2229 = vmul.f32 %v2197, %v2197
          %v2230 = vmul.f32 %v2198, %v2198
          %v2231 = vmul.f32 %v2199, %v2199
          %v2232 = vmul.f32 %v2200, %v2200
          %v2233 = vmul.f32 %v2201, %v2201
          %v2234 = vmul.f32 %v2202, %v2202
          %v2235 = vmul.f32 %v2203, %v2203
          %v2236 = vmul.f32 %v2204, %v2204
          %v2237 = vmul.f32 %v2205, %v2205
          %v2238 = vmul.f32 %v2206, %v2206
          %v2239 = vmul.f32 %v2207, %v2207
          %v2240 = vmul.f32 %v2208, %v2208
          %v2241 = vmul.f32 %v2209, %v2209
          %v2242 = vmul.f32 %v2210, %v2210
          %v2243 = vmul.f32 %v2211, %v2211
          %v2244 = vmul.f32 %v2212, %v2212
          %v2245 = vmul.f32 %v2213, %v2213
          %v2246 = vmul.f32 %v2214, %v2214
          %v2247 = vmul.f32 %v2215, %v2215
          %v2248 = vmul.f32 %v2216, %v2216
          %v2249 = vmul.f32 %v2217, %v2217
          %v2250 = vmul.f32 %v2218, %v2218
          %v2251 = vmul.f32 %v2219, %v2219
          %v2252 = vmul.f32 %v2220, %v2220
          %v2253 = vmul.f32 %v2221, %v2221
          %v2254 = vmul.f32 %v2222, %v2222
          %v2255 = vmul.f32 %v2223, %v2223
          %v2256 = vmul.f32 %v2224, %v2224
          %v2257 = vmul.f32 %v2225, %v2225
          %v2258 = vmul.f32 %v2226, %v2226
          %v2259 = vmul.f32 %v2227, %v2227
          %v2260 = vmul.f32 %v2228, %v2228
          %v2262 = vlaneseq
          %v2263 = vshrl.u32 %v2262, 7
          %v2264 = vsub.s32 0, %v2263
          %v2265 = vrot.slane %v436, %v2264
          %v2267 = vmul.f32 %v2229, %v2265
          %v2268 = vmul.f32 %v2230, %v2265
          %v2269 = vmul.f32 %v2231, %v2265
          %v2270 = vmul.f32 %v2232, %v2265
          %v2271 = vmul.f32 %v2233, %v2265
          %v2272 = vmul.f32 %v2234, %v2265
          %v2273 = vmul.f32 %v2235, %v2265
          %v2274 = vmul.f32 %v2236, %v2265
          %v2275 = vmul.f32 %v2237, %v2265
          %v2276 = vmul.f32 %v2238, %v2265
          %v2277 = vmul.f32 %v2239, %v2265
          %v2278 = vmul.f32 %v2240, %v2265
          %v2279 = vmul.f32 %v2241, %v2265
          %v2280 = vmul.f32 %v2242, %v2265
          %v2281 = vmul.f32 %v2243, %v2265
          %v2282 = vmul.f32 %v2244, %v2265
          %v2283 = vmul.f32 %v2245, %v2265
          %v2284 = vmul.f32 %v2246, %v2265
          %v2285 = vmul.f32 %v2247, %v2265
          %v2286 = vmul.f32 %v2248, %v2265
          %v2287 = vmul.f32 %v2249, %v2265
          %v2288 = vmul.f32 %v2250, %v2265
          %v2289 = vmul.f32 %v2251, %v2265
          %v2290 = vmul.f32 %v2252, %v2265
          %v2291 = vmul.f32 %v2253, %v2265
          %v2292 = vmul.f32 %v2254, %v2265
          %v2293 = vmul.f32 %v2255, %v2265
          %v2294 = vmul.f32 %v2256, %v2265
          %v2295 = vmul.f32 %v2257, %v2265
          %v2296 = vmul.f32 %v2258, %v2265
          %v2297 = vmul.f32 %v2259, %v2265
          %v2298 = vmul.f32 %v2260, %v2265
          %2299 = vadd.xlane.f32.xlu0 %v2267
          %v2300 = vpop.xlane.xlu0 %2299
          %2301 = vadd.xlane.f32.xlu0 %v2268
          %v2302 = vpop.xlane.xlu0 %2301
          %2303 = vadd.xlane.f32.xlu0 %v2269
          %v2304 = vpop.xlane.xlu0 %2303
          %2305 = vadd.xlane.f32.xlu0 %v2270
          %v2306 = vpop.xlane.xlu0 %2305
          %2307 = vadd.xlane.f32.xlu0 %v2271
          %v2308 = vpop.xlane.xlu0 %2307
          %2309 = vadd.xlane.f32.xlu0 %v2272
          %v2310 = vpop.xlane.xlu0 %2309
          %2311 = vadd.xlane.f32.xlu0 %v2273
          %v2312 = vpop.xlane.xlu0 %2311
          %2313 = vadd.xlane.f32.xlu0 %v2274
          %v2314 = vpop.xlane.xlu0 %2313
          %2315 = vadd.xlane.f32.xlu0 %v2275
          %v2316 = vpop.xlane.xlu0 %2315
          %2317 = vadd.xlane.f32.xlu0 %v2276
          %v2318 = vpop.xlane.xlu0 %2317
          %2319 = vadd.xlane.f32.xlu0 %v2277
          %v2320 = vpop.xlane.xlu0 %2319
          %2321 = vadd.xlane.f32.xlu0 %v2278
          %v2322 = vpop.xlane.xlu0 %2321
          %2323 = vadd.xlane.f32.xlu0 %v2279
          %v2324 = vpop.xlane.xlu0 %2323
          %2325 = vadd.xlane.f32.xlu0 %v2280
          %v2326 = vpop.xlane.xlu0 %2325
          %2327 = vadd.xlane.f32.xlu0 %v2281
          %v2328 = vpop.xlane.xlu0 %2327
          %2329 = vadd.xlane.f32.xlu0 %v2282
          %v2330 = vpop.xlane.xlu0 %2329
          %2331 = vadd.xlane.f32.xlu0 %v2283
          %v2332 = vpop.xlane.xlu0 %2331
          %2333 = vadd.xlane.f32.xlu0 %v2284
          %v2334 = vpop.xlane.xlu0 %2333
          %2335 = vadd.xlane.f32.xlu0 %v2285
          %v2336 = vpop.xlane.xlu0 %2335
          %2337 = vadd.xlane.f32.xlu0 %v2286
          %v2338 = vpop.xlane.xlu0 %2337
          %2339 = vadd.xlane.f32.xlu0 %v2287
          %v2340 = vpop.xlane.xlu0 %2339
          %2341 = vadd.xlane.f32.xlu0 %v2288
          %v2342 = vpop.xlane.xlu0 %2341
          %2343 = vadd.xlane.f32.xlu0 %v2289
          %v2344 = vpop.xlane.xlu0 %2343
          %2345 = vadd.xlane.f32.xlu0 %v2290
          %v2346 = vpop.xlane.xlu0 %2345
          %2347 = vadd.xlane.f32.xlu0 %v2291
          %v2348 = vpop.xlane.xlu0 %2347
          %2349 = vadd.xlane.f32.xlu0 %v2292
          %v2350 = vpop.xlane.xlu0 %2349
          %2351 = vadd.xlane.f32.xlu0 %v2293
          %v2352 = vpop.xlane.xlu0 %2351
          %2353 = vadd.xlane.f32.xlu0 %v2294
          %v2354 = vpop.xlane.xlu0 %2353
          %2355 = vadd.xlane.f32.xlu0 %v2295
          %v2356 = vpop.xlane.xlu0 %2355
          %2357 = vadd.xlane.f32.xlu0 %v2296
          %v2358 = vpop.xlane.xlu0 %2357
          %2359 = vadd.xlane.f32.xlu0 %v2297
          %v2360 = vpop.xlane.xlu0 %2359
          %2361 = vadd.xlane.f32.xlu0 %v2298
          %v2362 = vpop.xlane.xlu0 %2361
          %v2363 = vadd.f32 %v2300, 0.01
          %v2364 = vadd.f32 %v2302, 0.01
          %v2365 = vadd.f32 %v2304, 0.01
          %v2366 = vadd.f32 %v2306, 0.01
          %v2367 = vadd.f32 %v2308, 0.01
          %v2368 = vadd.f32 %v2310, 0.01
          %v2369 = vadd.f32 %v2312, 0.01
          %v2370 = vadd.f32 %v2314, 0.01
          %v2371 = vadd.f32 %v2316, 0.01
          %v2372 = vadd.f32 %v2318, 0.01
          %v2373 = vadd.f32 %v2320, 0.01
          %v2374 = vadd.f32 %v2322, 0.01
          %v2375 = vadd.f32 %v2324, 0.01
          %v2376 = vadd.f32 %v2326, 0.01
          %v2377 = vadd.f32 %v2328, 0.01
          %v2378 = vadd.f32 %v2330, 0.01
          %v2379 = vadd.f32 %v2332, 0.01
          %v2380 = vadd.f32 %v2334, 0.01
          %v2381 = vadd.f32 %v2336, 0.01
          %v2382 = vadd.f32 %v2338, 0.01
          %v2383 = vadd.f32 %v2340, 0.01
          %v2384 = vadd.f32 %v2342, 0.01
          %v2385 = vadd.f32 %v2344, 0.01
          %v2386 = vadd.f32 %v2346, 0.01
          %v2387 = vadd.f32 %v2348, 0.01
          %v2388 = vadd.f32 %v2350, 0.01
          %v2389 = vadd.f32 %v2352, 0.01
          %v2390 = vadd.f32 %v2354, 0.01
          %v2391 = vadd.f32 %v2356, 0.01
          %v2392 = vadd.f32 %v2358, 0.01
          %v2393 = vadd.f32 %v2360, 0.01
          %v2394 = vadd.f32 %v2362, 0.01
          %v2395 = vrsqrt.pop %v2363
          %v2396 = vmul.f32 %v2363, %v2395
          %vm2397 = vcmp.eq.f32.partialorder %v2363, inf
          %v2398 = vsel %vm2397, %v2363, %v2396
          %vm2399 = vcmp.eq.f32.partialorder %v2363, 0.0
          %v2400 = vand.u32 %v2363, 2147483648
          %v2401 = vsel %vm2399, %v2400, %v2398
          %v2402 = vrsqrt.pop %v2364
          %v2403 = vmul.f32 %v2364, %v2402
          %vm2404 = vcmp.eq.f32.partialorder %v2364, inf
          %v2405 = vsel %vm2404, %v2364, %v2403
          %vm2406 = vcmp.eq.f32.partialorder %v2364, 0.0
          %v2407 = vand.u32 %v2364, 2147483648
          %v2408 = vsel %vm2406, %v2407, %v2405
          %v2409 = vrsqrt.pop %v2365
          %v2410 = vmul.f32 %v2365, %v2409
          %vm2411 = vcmp.eq.f32.partialorder %v2365, inf
          %v2412 = vsel %vm2411, %v2365, %v2410
          %vm2413 = vcmp.eq.f32.partialorder %v2365, 0.0
          %v2414 = vand.u32 %v2365, 2147483648
          %v2415 = vsel %vm2413, %v2414, %v2412
          %v2416 = vrsqrt.pop %v2366
          %v2417 = vmul.f32 %v2366, %v2416
          %vm2418 = vcmp.eq.f32.partialorder %v2366, inf
          %v2419 = vsel %vm2418, %v2366, %v2417
          %vm2420 = vcmp.eq.f32.partialorder %v2366, 0.0
          %v2421 = vand.u32 %v2366, 2147483648
          %v2422 = vsel %vm2420, %v2421, %v2419
          %v2423 = vrsqrt.pop %v2367
          %v2424 = vmul.f32 %v2367, %v2423
          %vm2425 = vcmp.eq.f32.partialorder %v2367, inf
          %v2426 = vsel %vm2425, %v2367, %v2424
          %vm2427 = vcmp.eq.f32.partialorder %v2367, 0.0
          %v2428 = vand.u32 %v2367, 2147483648
          %v2429 = vsel %vm2427, %v2428, %v2426
          %v2430 = vrsqrt.pop %v2368
          %v2431 = vmul.f32 %v2368, %v2430
          %vm2432 = vcmp.eq.f32.partialorder %v2368, inf
          %v2433 = vsel %vm2432, %v2368, %v2431
          %vm2434 = vcmp.eq.f32.partialorder %v2368, 0.0
          %v2435 = vand.u32 %v2368, 2147483648
          %v2436 = vsel %vm2434, %v2435, %v2433
          %v2437 = vrsqrt.pop %v2369
          %v2438 = vmul.f32 %v2369, %v2437
          %vm2439 = vcmp.eq.f32.partialorder %v2369, inf
          %v2440 = vsel %vm2439, %v2369, %v2438
          %vm2441 = vcmp.eq.f32.partialorder %v2369, 0.0
          %v2442 = vand.u32 %v2369, 2147483648
          %v2443 = vsel %vm2441, %v2442, %v2440
          %v2444 = vrsqrt.pop %v2370
          %v2445 = vmul.f32 %v2370, %v2444
          %vm2446 = vcmp.eq.f32.partialorder %v2370, inf
          %v2447 = vsel %vm2446, %v2370, %v2445
          %vm2448 = vcmp.eq.f32.partialorder %v2370, 0.0
          %v2449 = vand.u32 %v2370, 2147483648
          %v2450 = vsel %vm2448, %v2449, %v2447
          %v2451 = vrsqrt.pop %v2371
          %v2452 = vmul.f32 %v2371, %v2451
          %vm2453 = vcmp.eq.f32.partialorder %v2371, inf
          %v2454 = vsel %vm2453, %v2371, %v2452
          %vm2455 = vcmp.eq.f32.partialorder %v2371, 0.0
          %v2456 = vand.u32 %v2371, 2147483648
          %v2457 = vsel %vm2455, %v2456, %v2454
          %v2458 = vrsqrt.pop %v2372
          %v2459 = vmul.f32 %v2372, %v2458
          %vm2460 = vcmp.eq.f32.partialorder %v2372, inf
          %v2461 = vsel %vm2460, %v2372, %v2459
          %vm2462 = vcmp.eq.f32.partialorder %v2372, 0.0
          %v2463 = vand.u32 %v2372, 2147483648
          %v2464 = vsel %vm2462, %v2463, %v2461
          %v2465 = vrsqrt.pop %v2373
          %v2466 = vmul.f32 %v2373, %v2465
          %vm2467 = vcmp.eq.f32.partialorder %v2373, inf
          %v2468 = vsel %vm2467, %v2373, %v2466
          %vm2469 = vcmp.eq.f32.partialorder %v2373, 0.0
          %v2470 = vand.u32 %v2373, 2147483648
          %v2471 = vsel %vm2469, %v2470, %v2468
          %v2472 = vrsqrt.pop %v2374
          %v2473 = vmul.f32 %v2374, %v2472
          %vm2474 = vcmp.eq.f32.partialorder %v2374, inf
          %v2475 = vsel %vm2474, %v2374, %v2473
          %vm2476 = vcmp.eq.f32.partialorder %v2374, 0.0
          %v2477 = vand.u32 %v2374, 2147483648
          %v2478 = vsel %vm2476, %v2477, %v2475
          %v2479 = vrsqrt.pop %v2375
          %v2480 = vmul.f32 %v2375, %v2479
          %vm2481 = vcmp.eq.f32.partialorder %v2375, inf
          %v2482 = vsel %vm2481, %v2375, %v2480
          %vm2483 = vcmp.eq.f32.partialorder %v2375, 0.0
          %v2484 = vand.u32 %v2375, 2147483648
          %v2485 = vsel %vm2483, %v2484, %v2482
          %v2486 = vrsqrt.pop %v2376
          %v2487 = vmul.f32 %v2376, %v2486
          %vm2488 = vcmp.eq.f32.partialorder %v2376, inf
          %v2489 = vsel %vm2488, %v2376, %v2487
          %vm2490 = vcmp.eq.f32.partialorder %v2376, 0.0
          %v2491 = vand.u32 %v2376, 2147483648
          %v2492 = vsel %vm2490, %v2491, %v2489
          %v2493 = vrsqrt.pop %v2377
          %v2494 = vmul.f32 %v2377, %v2493
          %vm2495 = vcmp.eq.f32.partialorder %v2377, inf
          %v2496 = vsel %vm2495, %v2377, %v2494
          %vm2497 = vcmp.eq.f32.partialorder %v2377, 0.0
          %v2498 = vand.u32 %v2377, 2147483648
          %v2499 = vsel %vm2497, %v2498, %v2496
          %v2500 = vrsqrt.pop %v2378
          %v2501 = vmul.f32 %v2378, %v2500
          %vm2502 = vcmp.eq.f32.partialorder %v2378, inf
          %v2503 = vsel %vm2502, %v2378, %v2501
          %vm2504 = vcmp.eq.f32.partialorder %v2378, 0.0
          %v2505 = vand.u32 %v2378, 2147483648
          %v2506 = vsel %vm2504, %v2505, %v2503
          %v2507 = vrsqrt.pop %v2379
          %v2508 = vmul.f32 %v2379, %v2507
          %vm2509 = vcmp.eq.f32.partialorder %v2379, inf
          %v2510 = vsel %vm2509, %v2379, %v2508
          %vm2511 = vcmp.eq.f32.partialorder %v2379, 0.0
          %v2512 = vand.u32 %v2379, 2147483648
          %v2513 = vsel %vm2511, %v2512, %v2510
          %v2514 = vrsqrt.pop %v2380
          %v2515 = vmul.f32 %v2380, %v2514
          %vm2516 = vcmp.eq.f32.partialorder %v2380, inf
          %v2517 = vsel %vm2516, %v2380, %v2515
          %vm2518 = vcmp.eq.f32.partialorder %v2380, 0.0
          %v2519 = vand.u32 %v2380, 2147483648
          %v2520 = vsel %vm2518, %v2519, %v2517
          %v2521 = vrsqrt.pop %v2381
          %v2522 = vmul.f32 %v2381, %v2521
          %vm2523 = vcmp.eq.f32.partialorder %v2381, inf
          %v2524 = vsel %vm2523, %v2381, %v2522
          %vm2525 = vcmp.eq.f32.partialorder %v2381, 0.0
          %v2526 = vand.u32 %v2381, 2147483648
          %v2527 = vsel %vm2525, %v2526, %v2524
          %v2528 = vrsqrt.pop %v2382
          %v2529 = vmul.f32 %v2382, %v2528
          %vm2530 = vcmp.eq.f32.partialorder %v2382, inf
          %v2531 = vsel %vm2530, %v2382, %v2529
          %vm2532 = vcmp.eq.f32.partialorder %v2382, 0.0
          %v2533 = vand.u32 %v2382, 2147483648
          %v2534 = vsel %vm2532, %v2533, %v2531
          %v2535 = vrsqrt.pop %v2383
          %v2536 = vmul.f32 %v2383, %v2535
          %vm2537 = vcmp.eq.f32.partialorder %v2383, inf
          %v2538 = vsel %vm2537, %v2383, %v2536
          %vm2539 = vcmp.eq.f32.partialorder %v2383, 0.0
          %v2540 = vand.u32 %v2383, 2147483648
          %v2541 = vsel %vm2539, %v2540, %v2538
          %v2542 = vrsqrt.pop %v2384
          %v2543 = vmul.f32 %v2384, %v2542
          %vm2544 = vcmp.eq.f32.partialorder %v2384, inf
          %v2545 = vsel %vm2544, %v2384, %v2543
          %vm2546 = vcmp.eq.f32.partialorder %v2384, 0.0
          %v2547 = vand.u32 %v2384, 2147483648
          %v2548 = vsel %vm2546, %v2547, %v2545
          %v2549 = vrsqrt.pop %v2385
          %v2550 = vmul.f32 %v2385, %v2549
          %vm2551 = vcmp.eq.f32.partialorder %v2385, inf
          %v2552 = vsel %vm2551, %v2385, %v2550
          %vm2553 = vcmp.eq.f32.partialorder %v2385, 0.0
          %v2554 = vand.u32 %v2385, 2147483648
          %v2555 = vsel %vm2553, %v2554, %v2552
          %v2556 = vrsqrt.pop %v2386
          %v2557 = vmul.f32 %v2386, %v2556
          %vm2558 = vcmp.eq.f32.partialorder %v2386, inf
          %v2559 = vsel %vm2558, %v2386, %v2557
          %vm2560 = vcmp.eq.f32.partialorder %v2386, 0.0
          %v2561 = vand.u32 %v2386, 2147483648
          %v2562 = vsel %vm2560, %v2561, %v2559
          %v2563 = vrsqrt.pop %v2387
          %v2564 = vmul.f32 %v2387, %v2563
          %vm2565 = vcmp.eq.f32.partialorder %v2387, inf
          %v2566 = vsel %vm2565, %v2387, %v2564
          %vm2567 = vcmp.eq.f32.partialorder %v2387, 0.0
          %v2568 = vand.u32 %v2387, 2147483648
          %v2569 = vsel %vm2567, %v2568, %v2566
          %v2570 = vrsqrt.pop %v2388
          %v2571 = vmul.f32 %v2388, %v2570
          %vm2572 = vcmp.eq.f32.partialorder %v2388, inf
          %v2573 = vsel %vm2572, %v2388, %v2571
          %vm2574 = vcmp.eq.f32.partialorder %v2388, 0.0
          %v2575 = vand.u32 %v2388, 2147483648
          %v2576 = vsel %vm2574, %v2575, %v2573
          %v2577 = vrsqrt.pop %v2389
          %v2578 = vmul.f32 %v2389, %v2577
          %vm2579 = vcmp.eq.f32.partialorder %v2389, inf
          %v2580 = vsel %vm2579, %v2389, %v2578
          %vm2581 = vcmp.eq.f32.partialorder %v2389, 0.0
          %v2582 = vand.u32 %v2389, 2147483648
          %v2583 = vsel %vm2581, %v2582, %v2580
          %v2584 = vrsqrt.pop %v2390
          %v2585 = vmul.f32 %v2390, %v2584
          %vm2586 = vcmp.eq.f32.partialorder %v2390, inf
          %v2587 = vsel %vm2586, %v2390, %v2585
          %vm2588 = vcmp.eq.f32.partialorder %v2390, 0.0
          %v2589 = vand.u32 %v2390, 2147483648
          %v2590 = vsel %vm2588, %v2589, %v2587
          %v2591 = vrsqrt.pop %v2391
          %v2592 = vmul.f32 %v2391, %v2591
          %vm2593 = vcmp.eq.f32.partialorder %v2391, inf
          %v2594 = vsel %vm2593, %v2391, %v2592
          %vm2595 = vcmp.eq.f32.partialorder %v2391, 0.0
          %v2596 = vand.u32 %v2391, 2147483648
          %v2597 = vsel %vm2595, %v2596, %v2594
          %v2598 = vrsqrt.pop %v2392
          %v2599 = vmul.f32 %v2392, %v2598
          %vm2600 = vcmp.eq.f32.partialorder %v2392, inf
          %v2601 = vsel %vm2600, %v2392, %v2599
          %vm2602 = vcmp.eq.f32.partialorder %v2392, 0.0
          %v2603 = vand.u32 %v2392, 2147483648
          %v2604 = vsel %vm2602, %v2603, %v2601
          %v2605 = vrsqrt.pop %v2393
          %v2606 = vmul.f32 %v2393, %v2605
          %vm2607 = vcmp.eq.f32.partialorder %v2393, inf
          %v2608 = vsel %vm2607, %v2393, %v2606
          %vm2609 = vcmp.eq.f32.partialorder %v2393, 0.0
          %v2610 = vand.u32 %v2393, 2147483648
          %v2611 = vsel %vm2609, %v2610, %v2608
          %v2612 = vrsqrt.pop %v2394
          %v2613 = vmul.f32 %v2394, %v2612
          %vm2614 = vcmp.eq.f32.partialorder %v2394, inf
          %v2615 = vsel %vm2614, %v2394, %v2613
          %vm2616 = vcmp.eq.f32.partialorder %v2394, 0.0
          %v2617 = vand.u32 %v2394, 2147483648
          %v2618 = vsel %vm2616, %v2617, %v2615
          %v2619 = vadd.f32 %v2401, 0.01
          %v2620 = vadd.f32 %v2408, 0.01
          %v2621 = vadd.f32 %v2415, 0.01
          %v2622 = vadd.f32 %v2422, 0.01
          %v2623 = vadd.f32 %v2429, 0.01
          %v2624 = vadd.f32 %v2436, 0.01
          %v2625 = vadd.f32 %v2443, 0.01
          %v2626 = vadd.f32 %v2450, 0.01
          %v2627 = vadd.f32 %v2457, 0.01
          %v2628 = vadd.f32 %v2464, 0.01
          %v2629 = vadd.f32 %v2471, 0.01
          %v2630 = vadd.f32 %v2478, 0.01
          %v2631 = vadd.f32 %v2485, 0.01
          %v2632 = vadd.f32 %v2492, 0.01
          %v2633 = vadd.f32 %v2499, 0.01
          %v2634 = vadd.f32 %v2506, 0.01
          %v2635 = vadd.f32 %v2513, 0.01
          %v2636 = vadd.f32 %v2520, 0.01
          %v2637 = vadd.f32 %v2527, 0.01
          %v2638 = vadd.f32 %v2534, 0.01
          %v2639 = vadd.f32 %v2541, 0.01
          %v2640 = vadd.f32 %v2548, 0.01
          %v2641 = vadd.f32 %v2555, 0.01
          %v2642 = vadd.f32 %v2562, 0.01
          %v2643 = vadd.f32 %v2569, 0.01
          %v2644 = vadd.f32 %v2576, 0.01
          %v2645 = vadd.f32 %v2583, 0.01
          %v2646 = vadd.f32 %v2590, 0.01
          %v2647 = vadd.f32 %v2597, 0.01
          %v2648 = vadd.f32 %v2604, 0.01
          %v2649 = vadd.f32 %v2611, 0.01
          %v2650 = vadd.f32 %v2618, 0.01
          %v2651 = vrcp.pop %v2619
          %v2652 = vrcp.pop %v2620
          %v2653 = vrcp.pop %v2621
          %v2654 = vrcp.pop %v2622
          %v2655 = vrcp.pop %v2623
          %v2656 = vrcp.pop %v2624
          %v2657 = vrcp.pop %v2625
          %v2658 = vrcp.pop %v2626
          %v2659 = vrcp.pop %v2627
          %v2660 = vrcp.pop %v2628
          %v2661 = vrcp.pop %v2629
          %v2662 = vrcp.pop %v2630
          %v2663 = vrcp.pop %v2631
          %v2664 = vrcp.pop %v2632
          %v2665 = vrcp.pop %v2633
          %v2666 = vrcp.pop %v2634
          %v2667 = vrcp.pop %v2635
          %v2668 = vrcp.pop %v2636
          %v2669 = vrcp.pop %v2637
          %v2670 = vrcp.pop %v2638
          %v2671 = vrcp.pop %v2639
          %v2672 = vrcp.pop %v2640
          %v2673 = vrcp.pop %v2641
          %v2674 = vrcp.pop %v2642
          %v2675 = vrcp.pop %v2643
          %v2676 = vrcp.pop %v2644
          %v2677 = vrcp.pop %v2645
          %v2678 = vrcp.pop %v2646
          %v2679 = vrcp.pop %v2647
          %v2680 = vrcp.pop %v2648
          %v2681 = vrcp.pop %v2649
          %v2682 = vrcp.pop %v2650
          %v2683 = vmul.f32 %v2197, %v2651
          %v2684 = vmul.f32 %v2198, %v2652
          %v2685 = vmul.f32 %v2199, %v2653
          %v2686 = vmul.f32 %v2200, %v2654
          %v2687 = vmul.f32 %v2201, %v2655
          %v2688 = vmul.f32 %v2202, %v2656
          %v2689 = vmul.f32 %v2203, %v2657
          %v2690 = vmul.f32 %v2204, %v2658
          %v2691 = vmul.f32 %v2205, %v2659
          %v2692 = vmul.f32 %v2206, %v2660
          %v2693 = vmul.f32 %v2207, %v2661
          %v2694 = vmul.f32 %v2208, %v2662
          %v2695 = vmul.f32 %v2209, %v2663
          %v2696 = vmul.f32 %v2210, %v2664
          %v2697 = vmul.f32 %v2211, %v2665
          %v2698 = vmul.f32 %v2212, %v2666
          %v2699 = vmul.f32 %v2213, %v2667
          %v2700 = vmul.f32 %v2214, %v2668
          %v2701 = vmul.f32 %v2215, %v2669
          %v2702 = vmul.f32 %v2216, %v2670
          %v2703 = vmul.f32 %v2217, %v2671
          %v2704 = vmul.f32 %v2218, %v2672
          %v2705 = vmul.f32 %v2219, %v2673
          %v2706 = vmul.f32 %v2220, %v2674
          %v2707 = vmul.f32 %v2221, %v2675
          %v2708 = vmul.f32 %v2222, %v2676
          %v2709 = vmul.f32 %v2223, %v2677
          %v2710 = vmul.f32 %v2224, %v2678
          %v2711 = vmul.f32 %v2225, %v2679
          %v2712 = vmul.f32 %v2226, %v2680
          %v2713 = vmul.f32 %v2227, %v2681
          %v2714 = vmul.f32 %v2228, %v2682
          %v2715 = vld [vmem:[#allocation4] sm:$0xff]
          %v2716 = vld [vmem:[#allocation4 + $0x8] sm:$0xff]
          %v2717 = vld [vmem:[#allocation4 + $0x10] sm:$0xff]
          %v2718 = vld [vmem:[#allocation4 + $0x18] sm:$0xff]
          %v2719 = vld [vmem:[#allocation4 + $0x20] sm:$0xff]
          %v2720 = vld [vmem:[#allocation4 + $0x28] sm:$0xff]
          %v2721 = vld [vmem:[#allocation4 + $0x30] sm:$0xff]
          %v2722 = vld [vmem:[#allocation4 + $0x38] sm:$0xff]
          %v2723 = vld [vmem:[#allocation4 + $0x40] sm:$0xff]
          %v2724 = vld [vmem:[#allocation4 + $0x48] sm:$0xff]
          %v2725 = vld [vmem:[#allocation4 + $0x50] sm:$0xff]
          %v2726 = vld [vmem:[#allocation4 + $0x58] sm:$0xff]
          %v2727 = vld [vmem:[#allocation4 + $0x60] sm:$0xff]
          %v2728 = vld [vmem:[#allocation4 + $0x68] sm:$0xff]
          %v2729 = vld [vmem:[#allocation4 + $0x70] sm:$0xff]
          %v2730 = vld [vmem:[#allocation4 + $0x78] sm:$0xff]
          %v2731 = vld [vmem:[#allocation4 + $0x80] sm:$0xff]
          %v2732 = vld [vmem:[#allocation4 + $0x88] sm:$0xff]
          %v2733 = vld [vmem:[#allocation4 + $0x90] sm:$0xff]
          %v2734 = vld [vmem:[#allocation4 + $0x98] sm:$0xff]
          %v2735 = vld [vmem:[#allocation4 + $0xa0] sm:$0xff]
          %v2736 = vld [vmem:[#allocation4 + $0xa8] sm:$0xff]
          %v2737 = vld [vmem:[#allocation4 + $0xb0] sm:$0xff]
          %v2738 = vld [vmem:[#allocation4 + $0xb8] sm:$0xff]
          %v2739 = vld [vmem:[#allocation4 + $0xc0] sm:$0xff]
          %v2740 = vld [vmem:[#allocation4 + $0xc8] sm:$0xff]
          %v2741 = vld [vmem:[#allocation4 + $0xd0] sm:$0xff]
          %v2742 = vld [vmem:[#allocation4 + $0xd8] sm:$0xff]
          %v2743 = vld [vmem:[#allocation4 + $0xe0] sm:$0xff]
          %v2744 = vld [vmem:[#allocation4 + $0xe8] sm:$0xff]
          %v2745 = vld [vmem:[#allocation4 + $0xf0] sm:$0xff]
          %v2746 = vld [vmem:[#allocation4 + $0xf8] sm:$0xff]
          %s2747 = sadd.s32 %s26, 1
          %s2748 = sld [smem:[#allocation5 + %s2747]]
          %v2749 = vstv %s2748
          %v2750 = vmul.f32 %v2749, %v2683
          %v2751 = vmul.f32 %v2749, %v2684
          %v2752 = vmul.f32 %v2749, %v2685
          %v2753 = vmul.f32 %v2749, %v2686
          %v2754 = vmul.f32 %v2749, %v2687
          %v2755 = vmul.f32 %v2749, %v2688
          %v2756 = vmul.f32 %v2749, %v2689
          %v2757 = vmul.f32 %v2749, %v2690
          %v2758 = vmul.f32 %v2749, %v2691
          %v2759 = vmul.f32 %v2749, %v2692
          %v2760 = vmul.f32 %v2749, %v2693
          %v2761 = vmul.f32 %v2749, %v2694
          %v2762 = vmul.f32 %v2749, %v2695
          %v2763 = vmul.f32 %v2749, %v2696
          %v2764 = vmul.f32 %v2749, %v2697
          %v2765 = vmul.f32 %v2749, %v2698
          %v2766 = vmul.f32 %v2749, %v2699
          %v2767 = vmul.f32 %v2749, %v2700
          %v2768 = vmul.f32 %v2749, %v2701
          %v2769 = vmul.f32 %v2749, %v2702
          %v2770 = vmul.f32 %v2749, %v2703
          %v2771 = vmul.f32 %v2749, %v2704
          %v2772 = vmul.f32 %v2749, %v2705
          %v2773 = vmul.f32 %v2749, %v2706
          %v2774 = vmul.f32 %v2749, %v2707
          %v2775 = vmul.f32 %v2749, %v2708
          %v2776 = vmul.f32 %v2749, %v2709
          %v2777 = vmul.f32 %v2749, %v2710
          %v2778 = vmul.f32 %v2749, %v2711
          %v2779 = vmul.f32 %v2749, %v2712
          %v2780 = vmul.f32 %v2749, %v2713
          %v2781 = vmul.f32 %v2749, %v2714
          %v2782 = vadd.f32 %v2715, %v2750
          %v2783 = vadd.f32 %v2716, %v2751
          %v2784 = vadd.f32 %v2717, %v2752
          %v2785 = vadd.f32 %v2718, %v2753
          %v2786 = vadd.f32 %v2719, %v2754
          %v2787 = vadd.f32 %v2720, %v2755
          %v2788 = vadd.f32 %v2721, %v2756
          %v2789 = vadd.f32 %v2722, %v2757
          %v2790 = vadd.f32 %v2723, %v2758
          %v2791 = vadd.f32 %v2724, %v2759
          %v2792 = vadd.f32 %v2725, %v2760
          %v2793 = vadd.f32 %v2726, %v2761
          %v2794 = vadd.f32 %v2727, %v2762
          %v2795 = vadd.f32 %v2728, %v2763
          %v2796 = vadd.f32 %v2729, %v2764
          %v2797 = vadd.f32 %v2730, %v2765
          %v2798 = vadd.f32 %v2731, %v2766
          %v2799 = vadd.f32 %v2732, %v2767
          %v2800 = vadd.f32 %v2733, %v2768
          %v2801 = vadd.f32 %v2734, %v2769
          %v2802 = vadd.f32 %v2735, %v2770
          %v2803 = vadd.f32 %v2736, %v2771
          %v2804 = vadd.f32 %v2737, %v2772
          %v2805 = vadd.f32 %v2738, %v2773
          %v2806 = vadd.f32 %v2739, %v2774
          %v2807 = vadd.f32 %v2740, %v2775
          %v2808 = vadd.f32 %v2741, %v2776
          %v2809 = vadd.f32 %v2742, %v2777
          %v2810 = vadd.f32 %v2743, %v2778
          %v2811 = vadd.f32 %v2744, %v2779
          %v2812 = vadd.f32 %v2745, %v2780
          %v2813 = vadd.f32 %v2746, %v2781
          %2814 = vst [vmem:[#allocation4] sm:$0xff] %v2782
          %2815 = vst [vmem:[#allocation4 + $0x8] sm:$0xff] %v2783
          %2816 = vst [vmem:[#allocation4 + $0x10] sm:$0xff] %v2784
          %2817 = vst [vmem:[#allocation4 + $0x18] sm:$0xff] %v2785
          %2818 = vst [vmem:[#allocation4 + $0x20] sm:$0xff] %v2786
          %2819 = vst [vmem:[#allocation4 + $0x28] sm:$0xff] %v2787
          %2820 = vst [vmem:[#allocation4 + $0x30] sm:$0xff] %v2788
          %2821 = vst [vmem:[#allocation4 + $0x38] sm:$0xff] %v2789
          %2822 = vst [vmem:[#allocation4 + $0x40] sm:$0xff] %v2790
          %2823 = vst [vmem:[#allocation4 + $0x48] sm:$0xff] %v2791
          %2824 = vst [vmem:[#allocation4 + $0x50] sm:$0xff] %v2792
          %2825 = vst [vmem:[#allocation4 + $0x58] sm:$0xff] %v2793
          %2826 = vst [vmem:[#allocation4 + $0x60] sm:$0xff] %v2794
          %2827 = vst [vmem:[#allocation4 + $0x68] sm:$0xff] %v2795
          %2828 = vst [vmem:[#allocation4 + $0x70] sm:$0xff] %v2796
          %2829 = vst [vmem:[#allocation4 + $0x78] sm:$0xff] %v2797
          %2830 = vst [vmem:[#allocation4 + $0x80] sm:$0xff] %v2798
          %2831 = vst [vmem:[#allocation4 + $0x88] sm:$0xff] %v2799
          %2832 = vst [vmem:[#allocation4 + $0x90] sm:$0xff] %v2800
          %2833 = vst [vmem:[#allocation4 + $0x98] sm:$0xff] %v2801
          %2834 = vst [vmem:[#allocation4 + $0xa0] sm:$0xff] %v2802
          %2835 = vst [vmem:[#allocation4 + $0xa8] sm:$0xff] %v2803
          %2836 = vst [vmem:[#allocation4 + $0xb0] sm:$0xff] %v2804
          %2837 = vst [vmem:[#allocation4 + $0xb8] sm:$0xff] %v2805
          %2838 = vst [vmem:[#allocation4 + $0xc0] sm:$0xff] %v2806
          %2839 = vst [vmem:[#allocation4 + $0xc8] sm:$0xff] %v2807
          %2840 = vst [vmem:[#allocation4 + $0xd0] sm:$0xff] %v2808
          %2841 = vst [vmem:[#allocation4 + $0xd8] sm:$0xff] %v2809
          %2842 = vst [vmem:[#allocation4 + $0xe0] sm:$0xff] %v2810
          %2843 = vst [vmem:[#allocation4 + $0xe8] sm:$0xff] %v2811
          %2844 = vst [vmem:[#allocation4 + $0xf0] sm:$0xff] %v2812
          %2845 = vst [vmem:[#allocation4 + $0xf8] sm:$0xff] %v2813
          %v2846 = vpack.c.bf16 %v2684, %v2683
          %v2847 = vpack.c.bf16 %v2686, %v2685
          %v2848 = vpack.c.bf16 %v2688, %v2687
          %v2849 = vpack.c.bf16 %v2690, %v2689
          %v2850 = vpack.c.bf16 %v2692, %v2691
          %v2851 = vpack.c.bf16 %v2694, %v2693
          %v2852 = vpack.c.bf16 %v2696, %v2695
          %v2853 = vpack.c.bf16 %v2698, %v2697
          %v2854 = vpack.c.bf16 %v2700, %v2699
          %v2855 = vpack.c.bf16 %v2702, %v2701
          %v2856 = vpack.c.bf16 %v2704, %v2703
          %v2857 = vpack.c.bf16 %v2706, %v2705
          %v2858 = vpack.c.bf16 %v2708, %v2707
          %v2859 = vpack.c.bf16 %v2710, %v2709
          %v2860 = vpack.c.bf16 %v2712, %v2711
          %v2861 = vpack.c.bf16 %v2714, %v2713
          %v2878 = vunpack.c.l.b16 %v2846
          %v2879 = vunpack.c.h.b16 %v2846
          %v2880 = vunpack.c.l.b16 %v2847
          %v2881 = vunpack.c.h.b16 %v2847
          %v2882 = vunpack.c.l.b16 %v2848
          %v2883 = vunpack.c.h.b16 %v2848
          %v2884 = vunpack.c.l.b16 %v2849
          %v2885 = vunpack.c.h.b16 %v2849
          %v2886 = vunpack.c.l.b16 %v2850
          %v2887 = vunpack.c.h.b16 %v2850
          %v2888 = vunpack.c.l.b16 %v2851
          %v2889 = vunpack.c.h.b16 %v2851
          %v2890 = vunpack.c.l.b16 %v2852
          %v2891 = vunpack.c.h.b16 %v2852
          %v2892 = vunpack.c.l.b16 %v2853
          %v2893 = vunpack.c.h.b16 %v2853
          %v2894 = vunpack.c.l.b16 %v2854
          %v2895 = vunpack.c.h.b16 %v2854
          %v2896 = vunpack.c.l.b16 %v2855
          %v2897 = vunpack.c.h.b16 %v2855
          %v2898 = vunpack.c.l.b16 %v2856
          %v2899 = vunpack.c.h.b16 %v2856
          %v2900 = vunpack.c.l.b16 %v2857
          %v2901 = vunpack.c.h.b16 %v2857
          %v2902 = vunpack.c.l.b16 %v2858
          %v2903 = vunpack.c.h.b16 %v2858
          %v2904 = vunpack.c.l.b16 %v2859
          %v2905 = vunpack.c.h.b16 %v2859
          %v2906 = vunpack.c.l.b16 %v2860
          %v2907 = vunpack.c.h.b16 %v2860
          %v2908 = vunpack.c.l.b16 %v2861
          %v2909 = vunpack.c.h.b16 %v2861
          %v2910 = vpack.c.b16 %v2878, %v2878
          %v2911 = vpack.c.b16 %v2879, %v2879
          %v2912 = vpack.c.b16 %v2880, %v2880
          %v2913 = vpack.c.b16 %v2881, %v2881
          %v2914 = vpack.c.b16 %v2882, %v2882
          %v2915 = vpack.c.b16 %v2883, %v2883
          %v2916 = vpack.c.b16 %v2884, %v2884
          %v2917 = vpack.c.b16 %v2885, %v2885
          %v2918 = vpack.c.b16 %v2886, %v2886
          %v2919 = vpack.c.b16 %v2887, %v2887
          %v2920 = vpack.c.b16 %v2888, %v2888
          %v2921 = vpack.c.b16 %v2889, %v2889
          %v2922 = vpack.c.b16 %v2890, %v2890
          %v2923 = vpack.c.b16 %v2891, %v2891
          %v2924 = vpack.c.b16 %v2892, %v2892
          %v2925 = vpack.c.b16 %v2893, %v2893
          %v2926 = vpack.c.b16 %v2894, %v2894
          %v2927 = vpack.c.b16 %v2895, %v2895
          %v2928 = vpack.c.b16 %v2896, %v2896
          %v2929 = vpack.c.b16 %v2897, %v2897
          %v2930 = vpack.c.b16 %v2898, %v2898
          %v2931 = vpack.c.b16 %v2899, %v2899
          %v2932 = vpack.c.b16 %v2900, %v2900
          %v2933 = vpack.c.b16 %v2901, %v2901
          %v2934 = vpack.c.b16 %v2902, %v2902
          %v2935 = vpack.c.b16 %v2903, %v2903
          %v2936 = vpack.c.b16 %v2904, %v2904
          %v2937 = vpack.c.b16 %v2905, %v2905
          %v2938 = vpack.c.b16 %v2906, %v2906
          %v2939 = vpack.c.b16 %v2907, %v2907
          %v2940 = vpack.c.b16 %v2908, %v2908
          %v2941 = vpack.c.b16 %v2909, %v2909
          %2974 = vst [vmem:[#allocation3] sm:$0xf] %v2910
          %2975 = vst [vmem:[#allocation3 + $0x4] sm:$0xf] %v2911
          %2976 = vst [vmem:[#allocation3 + $0x8] sm:$0xf] %v2912
          %2977 = vst [vmem:[#allocation3 + $0xc] sm:$0xf] %v2913
          %2978 = vst [vmem:[#allocation3 + $0x10] sm:$0xf] %v2914
          %2979 = vst [vmem:[#allocation3 + $0x14] sm:$0xf] %v2915
          %2980 = vst [vmem:[#allocation3 + $0x18] sm:$0xf] %v2916
          %2981 = vst [vmem:[#allocation3 + $0x1c] sm:$0xf] %v2917
          %2982 = vst [vmem:[#allocation3 + $0x20] sm:$0xf] %v2918
          %2983 = vst [vmem:[#allocation3 + $0x24] sm:$0xf] %v2919
          %2984 = vst [vmem:[#allocation3 + $0x28] sm:$0xf] %v2920
          %2985 = vst [vmem:[#allocation3 + $0x2c] sm:$0xf] %v2921
          %2986 = vst [vmem:[#allocation3 + $0x30] sm:$0xf] %v2922
          %2987 = vst [vmem:[#allocation3 + $0x34] sm:$0xf] %v2923
          %2988 = vst [vmem:[#allocation3 + $0x38] sm:$0xf] %v2924
          %2989 = vst [vmem:[#allocation3 + $0x3c] sm:$0xf] %v2925
          %2990 = vst [vmem:[#allocation3 + $0x40] sm:$0xf] %v2926
          %2991 = vst [vmem:[#allocation3 + $0x44] sm:$0xf] %v2927
          %2992 = vst [vmem:[#allocation3 + $0x48] sm:$0xf] %v2928
          %2993 = vst [vmem:[#allocation3 + $0x4c] sm:$0xf] %v2929
          %2994 = vst [vmem:[#allocation3 + $0x50] sm:$0xf] %v2930
          %2995 = vst [vmem:[#allocation3 + $0x54] sm:$0xf] %v2931
          %2996 = vst [vmem:[#allocation3 + $0x58] sm:$0xf] %v2932
          %2997 = vst [vmem:[#allocation3 + $0x5c] sm:$0xf] %v2933
          %2998 = vst [vmem:[#allocation3 + $0x60] sm:$0xf] %v2934
          %2999 = vst [vmem:[#allocation3 + $0x64] sm:$0xf] %v2935
          %3000 = vst [vmem:[#allocation3 + $0x68] sm:$0xf] %v2936
          %3001 = vst [vmem:[#allocation3 + $0x6c] sm:$0xf] %v2937
          %3002 = vst [vmem:[#allocation3 + $0x70] sm:$0xf] %v2938
          %3003 = vst [vmem:[#allocation3 + $0x74] sm:$0xf] %v2939
          %3004 = vst [vmem:[#allocation3 + $0x78] sm:$0xf] %v2940
          %3005 = vst [vmem:[#allocation3 + $0x7c] sm:$0xf] %v2941
        $region113: #{tpu_custom_call.1} parent=88 // pred_fallthru
          _
        %p3006 = scmp.eq.s32.totalorder %s26, 3
        %p3007 = pnand %p3006, %p2191
        %p3008 = pneg %p3007
        %p3009 = pnand %p3008, %p2192
        %p3010 = pneg %p3009
        // Predicated region
        $region114: #{tpu_custom_call.1} parent=88 // pred_check
          _
        $region115: #{tpu_custom_call.1} parent=88 // pred_check_branch
          %3012 = sbr.rel (%p3009) target = $region117
        $region116: #{tpu_custom_call.1} parent=88 // pred_region
          %v3013 = vld [vmem:[#allocation4] sm:$0xff]
          %v3014 = vld [vmem:[#allocation4 + $0x8] sm:$0xff]
          %v3015 = vld [vmem:[#allocation4 + $0x10] sm:$0xff]
          %v3016 = vld [vmem:[#allocation4 + $0x18] sm:$0xff]
          %v3017 = vld [vmem:[#allocation4 + $0x20] sm:$0xff]
          %v3018 = vld [vmem:[#allocation4 + $0x28] sm:$0xff]
          %v3019 = vld [vmem:[#allocation4 + $0x30] sm:$0xff]
          %v3020 = vld [vmem:[#allocation4 + $0x38] sm:$0xff]
          %v3021 = vld [vmem:[#allocation4 + $0x40] sm:$0xff]
          %v3022 = vld [vmem:[#allocation4 + $0x48] sm:$0xff]
          %v3023 = vld [vmem:[#allocation4 + $0x50] sm:$0xff]
          %v3024 = vld [vmem:[#allocation4 + $0x58] sm:$0xff]
          %v3025 = vld [vmem:[#allocation4 + $0x60] sm:$0xff]
          %v3026 = vld [vmem:[#allocation4 + $0x68] sm:$0xff]
          %v3027 = vld [vmem:[#allocation4 + $0x70] sm:$0xff]
          %v3028 = vld [vmem:[#allocation4 + $0x78] sm:$0xff]
          %v3029 = vld [vmem:[#allocation4 + $0x80] sm:$0xff]
          %v3030 = vld [vmem:[#allocation4 + $0x88] sm:$0xff]
          %v3031 = vld [vmem:[#allocation4 + $0x90] sm:$0xff]
          %v3032 = vld [vmem:[#allocation4 + $0x98] sm:$0xff]
          %v3033 = vld [vmem:[#allocation4 + $0xa0] sm:$0xff]
          %v3034 = vld [vmem:[#allocation4 + $0xa8] sm:$0xff]
          %v3035 = vld [vmem:[#allocation4 + $0xb0] sm:$0xff]
          %v3036 = vld [vmem:[#allocation4 + $0xb8] sm:$0xff]
          %v3037 = vld [vmem:[#allocation4 + $0xc0] sm:$0xff]
          %v3038 = vld [vmem:[#allocation4 + $0xc8] sm:$0xff]
          %v3039 = vld [vmem:[#allocation4 + $0xd0] sm:$0xff]
          %v3040 = vld [vmem:[#allocation4 + $0xd8] sm:$0xff]
          %v3041 = vld [vmem:[#allocation4 + $0xe0] sm:$0xff]
          %v3042 = vld [vmem:[#allocation4 + $0xe8] sm:$0xff]
          %v3043 = vld [vmem:[#allocation4 + $0xf0] sm:$0xff]
          %v3044 = vld [vmem:[#allocation4 + $0xf8] sm:$0xff]
          %3045 = vst [vmem:[#allocation9] sm:$0xff] %v3013
          %3046 = vst [vmem:[#allocation9 + $0x8] sm:$0xff] %v3014
          %3047 = vst [vmem:[#allocation9 + $0x10] sm:$0xff] %v3015
          %3048 = vst [vmem:[#allocation9 + $0x18] sm:$0xff] %v3016
          %3049 = vst [vmem:[#allocation9 + $0x20] sm:$0xff] %v3017
          %3050 = vst [vmem:[#allocation9 + $0x28] sm:$0xff] %v3018
          %3051 = vst [vmem:[#allocation9 + $0x30] sm:$0xff] %v3019
          %3052 = vst [vmem:[#allocation9 + $0x38] sm:$0xff] %v3020
          %3053 = vst [vmem:[#allocation9 + $0x40] sm:$0xff] %v3021
          %3054 = vst [vmem:[#allocation9 + $0x48] sm:$0xff] %v3022
          %3055 = vst [vmem:[#allocation9 + $0x50] sm:$0xff] %v3023
          %3056 = vst [vmem:[#allocation9 + $0x58] sm:$0xff] %v3024
          %3057 = vst [vmem:[#allocation9 + $0x60] sm:$0xff] %v3025
          %3058 = vst [vmem:[#allocation9 + $0x68] sm:$0xff] %v3026
          %3059 = vst [vmem:[#allocation9 + $0x70] sm:$0xff] %v3027
          %3060 = vst [vmem:[#allocation9 + $0x78] sm:$0xff] %v3028
          %3061 = vst [vmem:[#allocation9 + $0x80] sm:$0xff] %v3029
          %3062 = vst [vmem:[#allocation9 + $0x88] sm:$0xff] %v3030
          %3063 = vst [vmem:[#allocation9 + $0x90] sm:$0xff] %v3031
          %3064 = vst [vmem:[#allocation9 + $0x98] sm:$0xff] %v3032
          %3065 = vst [vmem:[#allocation9 + $0xa0] sm:$0xff] %v3033
          %3066 = vst [vmem:[#allocation9 + $0xa8] sm:$0xff] %v3034
          %3067 = vst [vmem:[#allocation9 + $0xb0] sm:$0xff] %v3035
          %3068 = vst [vmem:[#allocation9 + $0xb8] sm:$0xff] %v3036
          %3069 = vst [vmem:[#allocation9 + $0xc0] sm:$0xff] %v3037
          %3070 = vst [vmem:[#allocation9 + $0xc8] sm:$0xff] %v3038
          %3071 = vst [vmem:[#allocation9 + $0xd0] sm:$0xff] %v3039
          %3072 = vst [vmem:[#allocation9 + $0xd8] sm:$0xff] %v3040
          %3073 = vst [vmem:[#allocation9 + $0xe0] sm:$0xff] %v3041
          %3074 = vst [vmem:[#allocation9 + $0xe8] sm:$0xff] %v3042
          %3075 = vst [vmem:[#allocation9 + $0xf0] sm:$0xff] %v3043
          %3076 = vst [vmem:[#allocation9 + $0xf8] sm:$0xff] %v3044
        $region117: #{tpu_custom_call.1} parent=88 // pred_fallthru
          _
        // Predicated region
        $region118: #{tpu_custom_call.1} parent=88 // pred_check
          %p3077 = pneg %p228
        $region119: #{tpu_custom_call.1} parent=88 // pred_check_branch
          %3079 = sbr.rel (%p3077) target = $region121
        $region120: #{tpu_custom_call.1} parent=88 // pred_region
          %s3081 = ssub.s32 4096, 4096
          %3082 = vsyncadd [#allocation6], %s3081
          %s3083 = sshll.u32 [#allocation9], 4
          %s3084 = int_to_ptr.vmem [resolvable:$true] %s3083
          %3089 = dma.vmem_to_hbm [thread:$0]  %s3084, 4096, %s8, [#allocation6], 128, 128, 8
        $region121: #{tpu_custom_call.1} parent=88 // pred_fallthru
          _
        // Predicated region
        $region122: #{tpu_custom_call.1} parent=88 // pred_check
          %p3090 = pneg %p228
        $region123: #{tpu_custom_call.1} parent=88 // pred_check_branch
          %3092 = sbr.rel (%p3090) target = $region125
        $region124: #{tpu_custom_call.1} parent=88 // pred_region
          %3093 = dma.done [#allocation6], 4096
        $region125: #{tpu_custom_call.1} parent=88 // pred_fallthru
          _
      $region89: #{tpu_custom_call.1} parent=5 // pred_fallthru
        _
      %p3094 = scmp.le.s32.totalorder 2, %s16
      // Predicated region
      $region126: #{tpu_custom_call.1} parent=5 // pred_check
        %p3095 = pneg %p3094
      $region127: #{tpu_custom_call.1} parent=5 // pred_check_branch
        %3097 = sbr.rel (%p3095) target = $region129
      $region128: #{tpu_custom_call.1} parent=5 // pred_region
        %s3098 = ssub.s32 %s16, 2
      $region129: #{tpu_custom_call.1} parent=5 // pred_fallthru
        _
    $region6: #{tpu_custom_call.1} parent=1 // loop_footer
      %s20 = sadd.s32 1, %s16
    $region7: #{tpu_custom_call.1} parent=1 // loop_footer_branch
      %15 = sbr.rel target = $region3
    $region8: #{tpu_custom_call.1} parent=1 // loop_exit
      _
    %3099 = vsyncpa [#allocation6], 1
    %s3100 = scalar_lea.sflag [#allocation6], 1
    %3101 = vsyncpa %s3100, 1
    %3102 = vsyncpa [#allocation7], 1
    %s3103 = scalar_lea.sflag [#allocation7], 1
    %3104 = vsyncpa %s3103, 1

</llo_original>
